<compile_context>
chip_gen: v6e
topology: v6e:2x2x1
jax: 0.10.0
libtpu: 0.0.40
codegen_flags: <defaults>
</compile_context>

<pallas_src>
import functools
import math

import jax
import jax.numpy as jnp
from jax.experimental import pallas as pl
from jax.experimental.pallas import tpu as pltpu  # noqa: F401  (not needed at this toy size)


# ----------------------------------------------------------------------------
# Pallas kernel: the full encoder stack (all layers, all batch elements).
# ----------------------------------------------------------------------------
def encoder_stack_kernel(
    x_ref,                      # (B, S, E)
    wq_ref, wk_ref, wv_ref,     # (L, E, E) block-diag of W.T; wq pre-scaled by 1/sqrt(E)
    wo_ref, bo_ref,             # (L, E, E) = Wo.T, (L, 1, E)
    g1_ref, beta1_ref,          # (L, 1, E) layernorm_1
    w1_ref, b1_ref,             # (L, E, M) = W1.T, (L, 1, M)   feed_forward[0]
    w2_ref, b2_ref,             # (L, M, E) = W2.T, (L, 1, E)   feed_forward[2]
    g2_ref, beta2_ref,          # (L, 1, E) layernorm_2
    o_ref,                      # (B, S, E)
    *, num_layers, heads, head_dim, batch, seq):
  B, S, H, Dh = batch, seq, heads, head_dim
  E = H * Dh
  BS = B * S

  def layer_norm(y, gamma, beta):
    # nn.LayerNorm: eps=1e-5, biased variance over the last dim.
    mu = jnp.mean(y, axis=-1, keepdims=True)
    var = jnp.mean((y - mu) ** 2, axis=-1, keepdims=True)
    return (y - mu) * jax.lax.rsqrt(var + 1e-5) * gamma + beta

  x = x_ref[...].astype(jnp.float32).reshape(BS, E)   # collapse batch & seq for the Linears

  for l in range(num_layers):   # static unroll; weights stay resident in VMEM
    # --- Multi-head attention ---
    # One (BS,E)@(E,E) matmul per projection; output is already the
    # concatenated-head layout (1/sqrt(E) scale pre-folded into Wq).
    q = jnp.dot(x, wq_ref[l], preferred_element_type=jnp.float32)
    k = jnp.dot(x, wk_ref[l], preferred_element_type=jnp.float32)
    v = jnp.dot(x, wv_ref[l], preferred_element_type=jnp.float32)
    q3 = q.reshape(B, S, E)
    k3 = k.reshape(B, S, E)
    v3 = v.reshape(B, S, E)

    # Scores / PV are inherently per-(batch, head); express them as H batched
    # (over B) einsums on lane slices — no per-head weight matmuls remain.
    head_outs = []
    for h in range(H):
      sl = slice(h * Dh, (h + 1) * Dh)
      qh, kh, vh = q3[:, :, sl], k3[:, :, sl], v3[:, :, sl]
      s = jnp.einsum('bqd,bkd->bqk', qh, kh, preferred_element_type=jnp.float32)
      s = s - jnp.max(s, axis=-1, keepdims=True)
      p = jnp.exp(s)
      p = p * pl.reciprocal(jnp.sum(p, axis=-1, keepdims=True), approx=True)
      head_outs.append(
          jnp.einsum('bqk,bkd->bqd', p, vh, preferred_element_type=jnp.float32))
    attn = jnp.concatenate(head_outs, axis=-1).reshape(BS, E)
    attn = jnp.dot(attn, wo_ref[l], preferred_element_type=jnp.float32) + bo_ref[l]

    # --- Add & LayerNorm 1 ---
    sub1 = layer_norm(x + attn, g1_ref[l], beta1_ref[l])

    # --- Feed-forward: Linear -> ReLU -> Linear ---
    h1 = jnp.dot(sub1, w1_ref[l], preferred_element_type=jnp.float32) + b1_ref[l]
    h1 = jnp.maximum(h1, 0.0)
    ff = jnp.dot(h1, w2_ref[l], preferred_element_type=jnp.float32) + b2_ref[l]

    # --- Add & LayerNorm 2 ---
    x = layer_norm(sub1 + ff, g2_ref[l], beta2_ref[l])

  o_ref[...] = x.reshape(B, S, E).astype(o_ref.dtype)


def encoder_stack(x, layers, heads):
  """Runs the whole transformer stack in a single pallas_call."""
  B, S, E = x.shape
  H = heads
  Dh = E // H
  L = len(layers)
  scale = 1.0 / (E ** 0.5)   # PyTorch module divides scores by sqrt(embedding_dim)
  eye = jnp.eye(H, dtype=jnp.float32)

  def block_diag_t(w):
    # (Dh, Dh) Linear weight -> (E, E) block-diagonal matrix of w.T so that
    # (x @ BD)[:, h*Dh:(h+1)*Dh] == x[:, h*Dh:(h+1)*Dh] @ w.T  (per-head Linear)
    return jnp.kron(eye, w.T)

  wq = jnp.stack([block_diag_t(p["wq"]) * scale for p in layers])
  wk = jnp.stack([block_diag_t(p["wk"]) for p in layers])
  wv = jnp.stack([block_diag_t(p["wv"]) for p in layers])
  wo = jnp.stack([p["wo"].T for p in layers])
  bo = jnp.stack([p["bo"] for p in layers])
  g1 = jnp.stack([p["g1"] for p in layers])
  beta1 = jnp.stack([p["beta1"] for p in layers])
  w1 = jnp.stack([p["w1"].T for p in layers])
  b1 = jnp.stack([p["b1"] for p in layers])
  w2 = jnp.stack([p["w2"].T for p in layers])
  b2 = jnp.stack([p["b2"] for p in layers])
  g2 = jnp.stack([p["g2"] for p in layers])
  beta2 = jnp.stack([p["beta2"] for p in layers])

  kernel = functools.partial(
      encoder_stack_kernel, num_layers=L, heads=H, head_dim=Dh, batch=B, seq=S)

  # Everything (activations + all layers' weights, ~100 KB at this config) fits
  # comfortably in VMEM on every generation, so we use a single invocation with
  # full-array blocks: one launch, zero inter-layer HBM round trips.
  # TODO(synk): at production sizes (large E / multiplier) tile the FF matmuls
  # over the E*mult dim and re-add a 'parallel' batch grid axis so v7x's two
  # TensorCores both get work and the 64 MiB VMEM budget is respected.
  return pl.pallas_call(
      kernel,
      out_shape=jax.ShapeDtypeStruct((B, S, E), x.dtype),
  )(x, wq, wk, wv, wo, bo, g1, beta1, w1, b1, w2, b2, g2, beta2)


# ----------------------------------------------------------------------------
# Plain-JAX glue: positional encoding table, embedding gather, param init.
# ----------------------------------------------------------------------------
def make_positional_encoding(max_len, E):
  pos = jnp.arange(max_len, dtype=jnp.float32)
  k = jnp.arange(E // 2, dtype=jnp.float32)
  omega = jnp.exp(-(2.0 * k / E) * math.log(10000.0))
  base = pos[:, None] * omega[None, :]                 # (L, E/2)
  pe = jnp.zeros((max_len, E), jnp.float32)
  pe = pe.at[:, 0::2].set(jnp.sin(base))
  pe = pe.at[:, 1::2].set(jnp.cos(base))
  return pe


def init_params(key, vocab_size, E, max_len, num_layers, heads, multiplier):
  head_dim = E // heads
  mult_dim = E * multiplier
  keys = jax.random.split(key, 1 + num_layers)
  params = {
      "embedding": jax.random.normal(keys[0], (vocab_size, E), jnp.float32),
      "pos_enc": make_positional_encoding(max_len, E),
      "layers": [],
  }
  for li in range(num_layers):
    lk = jax.random.split(keys[1 + li], 8)
    s = 0.05
    layer = {
        "wq": s * jax.random.normal(lk[0], (head_dim, head_dim), jnp.float32),
        "wk": s * jax.random.normal(lk[1], (head_dim, head_dim), jnp.float32),
        "wv": s * jax.random.normal(lk[2], (head_dim, head_dim), jnp.float32),
        "wo": s * jax.random.normal(lk[3], (E, E), jnp.float32),
        "bo": s * jax.random.normal(lk[4], (1, E), jnp.float32),
        "g1": jnp.ones((1, E), jnp.float32),
        "beta1": jnp.zeros((1, E), jnp.float32),
        "w1": s * jax.random.normal(lk[5], (mult_dim, E), jnp.float32),
        "b1": s * jax.random.normal(lk[6], (1, mult_dim), jnp.float32),
        "w2": s * jax.random.normal(lk[7], (E, mult_dim), jnp.float32),
        "b2": jnp.zeros((1, E), jnp.float32),
        "g2": jnp.ones((1, E), jnp.float32),
        "beta2": jnp.zeros((1, E), jnp.float32),
    }
    params["layers"].append(layer)
  return params


def encoder_forward(tokens, params, heads):
  # embedding lookup (gather) + positional encoding: plain-JAX glue
  out = params["embedding"][tokens]                    # (B, S, E)
  S = tokens.shape[1]
  out = out + params["pos_enc"][None, :S, :]
  # dropout p=0.0 -> identity
  return encoder_stack(out, params["layers"], heads)


# Pure-JAX reference (mirrors the PyTorch module op-for-op) for correctness.
def encoder_forward_ref(tokens, params, heads):
  out = params["embedding"][tokens]
  S = tokens.shape[1]
  out = out + params["pos_enc"][None, :S, :]
  E = out.shape[-1]
  Dh = E // heads

  def ln(y, g, b):
    mu = jnp.mean(y, axis=-1, keepdims=True)
    var = jnp.mean((y - mu) ** 2, axis=-1, keepdims=True)
    return (y - mu) / jnp.sqrt(var + 1e-5) * g + b

  for p in params["layers"]:
    B, S, _ = out.shape
    xh = out.reshape(B, S, heads, Dh)
    q = jnp.einsum('bshd,od->bsho', xh, p["wq"])
    k = jnp.einsum('bshd,od->bsho', xh, p["wk"])
    v = jnp.einsum('bshd,od->bsho', xh, p["wv"])
    scores = jnp.einsum('bqhd,bkhd->bhqk', q, k) / (E ** 0.5)
    pa = jax.nn.softmax(scores, axis=-1)
    attn = jnp.einsum('bhqk,bkhd->bqhd', pa, v).reshape(B, S, E)
    attn = attn @ p["wo"].T + p["bo"][0]
    sub1 = ln(out + attn, p["g1"][0], p["beta1"][0])
    h1 = jnp.maximum(sub1 @ p["w1"].T + p["b1"][0], 0.0)
    ff = h1 @ p["w2"].T + p["b2"][0]
    out = ln(sub1 + ff, p["g2"][0], p["beta2"][0])
  return out


# ----------------------------------------------------------------------------
if __name__ == "__main__":
  src_vocab_size = 50
  embedding_dim = 32
  max_len = 64
  num_layers = 2
  heads = 4
  multiplier = 4
  # dropout = 0.0 -> identity, forward is deterministic

  B, S = 2, 8

  key = jax.random.PRNGKey(0)
  pkey, tkey = jax.random.split(key)
  params = init_params(pkey, src_vocab_size, embedding_dim, max_len,
                       num_layers, heads, multiplier)
  tokens = jax.random.randint(tkey, (B, S), 0, src_vocab_size, dtype=jnp.int32)

  out = encoder_forward(tokens, params, heads)
  out = jax.block_until_ready(out)
  ref = encoder_forward_ref(tokens, params, heads)

  assert out.shape == (B, S, embedding_dim)
  assert bool(jnp.all(jnp.isfinite(out)))
  assert bool(jnp.allclose(out, ref, atol=5e-2, rtol=5e-2)), \
      float(jnp.max(jnp.abs(out - ref)))
  print("KERNEL_OK")
</pallas_src>

<mosaic_0001>
module attributes {stable_mosaic.version = 11 : i64} {
  func.func @encoder_stack_kernel(%arg0: memref<2x8x32xf32, #tpu.memory_space<vmem>>, %arg1: memref<2x32x32xf32, #tpu.memory_space<vmem>>, %arg2: memref<2x32x32xf32, #tpu.memory_space<vmem>>, %arg3: memref<2x32x32xf32, #tpu.memory_space<vmem>>, %arg4: memref<2x32x32xf32, #tpu.memory_space<vmem>>, %arg5: memref<2x1x32xf32, #tpu.memory_space<vmem>>, %arg6: memref<2x1x32xf32, #tpu.memory_space<vmem>>, %arg7: memref<2x1x32xf32, #tpu.memory_space<vmem>>, %arg8: memref<2x32x128xf32, #tpu.memory_space<vmem>>, %arg9: memref<2x1x128xf32, #tpu.memory_space<vmem>>, %arg10: memref<2x128x32xf32, #tpu.memory_space<vmem>>, %arg11: memref<2x1x32xf32, #tpu.memory_space<vmem>>, %arg12: memref<2x1x32xf32, #tpu.memory_space<vmem>>, %arg13: memref<2x1x32xf32, #tpu.memory_space<vmem>>, %arg14: memref<2x8x32xf32, #tpu.memory_space<vmem>>) attributes {dimension_semantics = [], scalar_prefetch = 0 : i64, scratch_operands = 0 : i64, tpu.core_type = #tpu.core_type<tc>} {
    %c0 = arith.constant 0 : index
    %c0_0 = arith.constant 0 : index
    %c0_1 = arith.constant 0 : index
    %0 = vector.load %arg0[%c0, %c0_0, %c0_1] : memref<2x8x32xf32, #tpu.memory_space<vmem>>, vector<2x8x32xf32>
    %1 = vector.shape_cast %0 : vector<2x8x32xf32> to vector<16x32xf32>
    %c0_2 = arith.constant 0 : index
    %c0_3 = arith.constant 0 : index
    %c0_4 = arith.constant 0 : index
    %2 = vector.load %arg1[%c0_2, %c0_3, %c0_4] : memref<2x32x32xf32, #tpu.memory_space<vmem>>, vector<1x32x32xf32>
    %3 = vector.shape_cast %2 : vector<1x32x32xf32> to vector<32x32xf32>
    %cst = arith.constant dense<0.000000e+00> : vector<16x32xf32>
    %4 = tpu.matmul %1, %3, %cst {dimension_numbers = #tpu.dot_dimension_numbers<[1], [0], [0], [1], [0, 0, 1, 1], [], []>} : vector<16x32xf32>, vector<32x32xf32>, vector<16x32xf32> -> vector<16x32xf32>
    %c0_5 = arith.constant 0 : index
    %c0_6 = arith.constant 0 : index
    %c0_7 = arith.constant 0 : index
    %5 = vector.load %arg2[%c0_5, %c0_6, %c0_7] : memref<2x32x32xf32, #tpu.memory_space<vmem>>, vector<1x32x32xf32>
    %6 = vector.shape_cast %5 : vector<1x32x32xf32> to vector<32x32xf32>
    %cst_8 = arith.constant dense<0.000000e+00> : vector<16x32xf32>
    %7 = tpu.matmul %1, %6, %cst_8 {dimension_numbers = #tpu.dot_dimension_numbers<[1], [0], [0], [1], [0, 0, 1, 1], [], []>} : vector<16x32xf32>, vector<32x32xf32>, vector<16x32xf32> -> vector<16x32xf32>
    %c0_9 = arith.constant 0 : index
    %c0_10 = arith.constant 0 : index
    %c0_11 = arith.constant 0 : index
    %8 = vector.load %arg3[%c0_9, %c0_10, %c0_11] : memref<2x32x32xf32, #tpu.memory_space<vmem>>, vector<1x32x32xf32>
    %9 = vector.shape_cast %8 : vector<1x32x32xf32> to vector<32x32xf32>
    %cst_12 = arith.constant dense<0.000000e+00> : vector<16x32xf32>
    %10 = tpu.matmul %1, %9, %cst_12 {dimension_numbers = #tpu.dot_dimension_numbers<[1], [0], [0], [1], [0, 0, 1, 1], [], []>} : vector<16x32xf32>, vector<32x32xf32>, vector<16x32xf32> -> vector<16x32xf32>
    %11 = vector.shape_cast %4 : vector<16x32xf32> to vector<2x8x32xf32>
    %12 = vector.shape_cast %7 : vector<16x32xf32> to vector<2x8x32xf32>
    %13 = vector.shape_cast %10 : vector<16x32xf32> to vector<2x8x32xf32>
    %14 = vector.extract_strided_slice %11 {offsets = [0, 0, 0], sizes = [2, 8, 8], strides = [1, 1, 1]} : vector<2x8x32xf32> to vector<2x8x8xf32>
    %15 = vector.extract_strided_slice %12 {offsets = [0, 0, 0], sizes = [2, 8, 8], strides = [1, 1, 1]} : vector<2x8x32xf32> to vector<2x8x8xf32>
    %16 = vector.extract_strided_slice %13 {offsets = [0, 0, 0], sizes = [2, 8, 8], strides = [1, 1, 1]} : vector<2x8x32xf32> to vector<2x8x8xf32>
    "tpu.trace_start"() <{level = 10 : i32, message = "bqd,bkd->bqk"}> : () -> ()
    %cst_13 = arith.constant dense<0.000000e+00> : vector<2x8x8xf32>
    %17 = tpu.matmul %14, %15, %cst_13 {dimension_numbers = #tpu.dot_dimension_numbers<[2], [2], [1], [1], [0, 0, 0, 1, 1, 1], [0], [0]>} : vector<2x8x8xf32>, vector<2x8x8xf32>, vector<2x8x8xf32> -> vector<2x8x8xf32>
    "tpu.trace_stop"() : () -> ()
    %cst_14 = arith.constant dense<0xFF800000> : vector<2x8xf32>
    %18 = vector.multi_reduction <maximumf>, %17, %cst_14 [2] : vector<2x8x8xf32> to vector<2x8xf32>
    %19 = vector.shape_cast %18 : vector<2x8xf32> to vector<2x8x1xf32>
    %20 = vector.broadcast %19 : vector<2x8x1xf32> to vector<2x8x8xf32>
    %21 = arith.subf %17, %20 : vector<2x8x8xf32>
    %22 = math.exp %21 : vector<2x8x8xf32>
    %cst_15 = arith.constant dense<0.000000e+00> : vector<2x8xf32>
    %23 = vector.multi_reduction <add>, %22, %cst_15 [2] : vector<2x8x8xf32> to vector<2x8xf32>
    %24 = vector.shape_cast %23 : vector<2x8xf32> to vector<2x8x1xf32>
    %25 = tpu.reciprocal %24 {approx = true} : vector<2x8x1xf32> -> vector<2x8x1xf32>
    %26 = vector.broadcast %25 : vector<2x8x1xf32> to vector<2x8x8xf32>
    %27 = arith.mulf %22, %26 : vector<2x8x8xf32>
    "tpu.trace_start"() <{level = 10 : i32, message = "bqk,bkd->bqd"}> : () -> ()
    %cst_16 = arith.constant dense<0.000000e+00> : vector<2x8x8xf32>
    %28 = tpu.matmul %27, %16, %cst_16 {dimension_numbers = #tpu.dot_dimension_numbers<[2], [1], [1], [2], [0, 0, 0, 1, 1, 2], [0], [0]>} : vector<2x8x8xf32>, vector<2x8x8xf32>, vector<2x8x8xf32> -> vector<2x8x8xf32>
    "tpu.trace_stop"() : () -> ()
    %29 = vector.extract_strided_slice %11 {offsets = [0, 0, 8], sizes = [2, 8, 8], strides = [1, 1, 1]} : vector<2x8x32xf32> to vector<2x8x8xf32>
    %30 = vector.extract_strided_slice %12 {offsets = [0, 0, 8], sizes = [2, 8, 8], strides = [1, 1, 1]} : vector<2x8x32xf32> to vector<2x8x8xf32>
    %31 = vector.extract_strided_slice %13 {offsets = [0, 0, 8], sizes = [2, 8, 8], strides = [1, 1, 1]} : vector<2x8x32xf32> to vector<2x8x8xf32>
    "tpu.trace_start"() <{level = 10 : i32, message = "bqd,bkd->bqk"}> : () -> ()
    %cst_17 = arith.constant dense<0.000000e+00> : vector<2x8x8xf32>
    %32 = tpu.matmul %29, %30, %cst_17 {dimension_numbers = #tpu.dot_dimension_numbers<[2], [2], [1], [1], [0, 0, 0, 1, 1, 1], [0], [0]>} : vector<2x8x8xf32>, vector<2x8x8xf32>, vector<2x8x8xf32> -> vector<2x8x8xf32>
    "tpu.trace_stop"() : () -> ()
    %cst_18 = arith.constant dense<0xFF800000> : vector<2x8xf32>
    %33 = vector.multi_reduction <maximumf>, %32, %cst_18 [2] : vector<2x8x8xf32> to vector<2x8xf32>
    %34 = vector.shape_cast %33 : vector<2x8xf32> to vector<2x8x1xf32>
    %35 = vector.broadcast %34 : vector<2x8x1xf32> to vector<2x8x8xf32>
    %36 = arith.subf %32, %35 : vector<2x8x8xf32>
    %37 = math.exp %36 : vector<2x8x8xf32>
    %cst_19 = arith.constant dense<0.000000e+00> : vector<2x8xf32>
    %38 = vector.multi_reduction <add>, %37, %cst_19 [2] : vector<2x8x8xf32> to vector<2x8xf32>
    %39 = vector.shape_cast %38 : vector<2x8xf32> to vector<2x8x1xf32>
    %40 = tpu.reciprocal %39 {approx = true} : vector<2x8x1xf32> -> vector<2x8x1xf32>
    %41 = vector.broadcast %40 : vector<2x8x1xf32> to vector<2x8x8xf32>
    %42 = arith.mulf %37, %41 : vector<2x8x8xf32>
    "tpu.trace_start"() <{level = 10 : i32, message = "bqk,bkd->bqd"}> : () -> ()
    %cst_20 = arith.constant dense<0.000000e+00> : vector<2x8x8xf32>
    %43 = tpu.matmul %42, %31, %cst_20 {dimension_numbers = #tpu.dot_dimension_numbers<[2], [1], [1], [2], [0, 0, 0, 1, 1, 2], [0], [0]>} : vector<2x8x8xf32>, vector<2x8x8xf32>, vector<2x8x8xf32> -> vector<2x8x8xf32>
    "tpu.trace_stop"() : () -> ()
    %44 = vector.extract_strided_slice %11 {offsets = [0, 0, 16], sizes = [2, 8, 8], strides = [1, 1, 1]} : vector<2x8x32xf32> to vector<2x8x8xf32>
    %45 = vector.extract_strided_slice %12 {offsets = [0, 0, 16], sizes = [2, 8, 8], strides = [1, 1, 1]} : vector<2x8x32xf32> to vector<2x8x8xf32>
    %46 = vector.extract_strided_slice %13 {offsets = [0, 0, 16], sizes = [2, 8, 8], strides = [1, 1, 1]} : vector<2x8x32xf32> to vector<2x8x8xf32>
    "tpu.trace_start"() <{level = 10 : i32, message = "bqd,bkd->bqk"}> : () -> ()
    %cst_21 = arith.constant dense<0.000000e+00> : vector<2x8x8xf32>
    %47 = tpu.matmul %44, %45, %cst_21 {dimension_numbers = #tpu.dot_dimension_numbers<[2], [2], [1], [1], [0, 0, 0, 1, 1, 1], [0], [0]>} : vector<2x8x8xf32>, vector<2x8x8xf32>, vector<2x8x8xf32> -> vector<2x8x8xf32>
    "tpu.trace_stop"() : () -> ()
    %cst_22 = arith.constant dense<0xFF800000> : vector<2x8xf32>
    %48 = vector.multi_reduction <maximumf>, %47, %cst_22 [2] : vector<2x8x8xf32> to vector<2x8xf32>
    %49 = vector.shape_cast %48 : vector<2x8xf32> to vector<2x8x1xf32>
    %50 = vector.broadcast %49 : vector<2x8x1xf32> to vector<2x8x8xf32>
    %51 = arith.subf %47, %50 : vector<2x8x8xf32>
    %52 = math.exp %51 : vector<2x8x8xf32>
    %cst_23 = arith.constant dense<0.000000e+00> : vector<2x8xf32>
    %53 = vector.multi_reduction <add>, %52, %cst_23 [2] : vector<2x8x8xf32> to vector<2x8xf32>
    %54 = vector.shape_cast %53 : vector<2x8xf32> to vector<2x8x1xf32>
    %55 = tpu.reciprocal %54 {approx = true} : vector<2x8x1xf32> -> vector<2x8x1xf32>
    %56 = vector.broadcast %55 : vector<2x8x1xf32> to vector<2x8x8xf32>
    %57 = arith.mulf %52, %56 : vector<2x8x8xf32>
    "tpu.trace_start"() <{level = 10 : i32, message = "bqk,bkd->bqd"}> : () -> ()
    %cst_24 = arith.constant dense<0.000000e+00> : vector<2x8x8xf32>
    %58 = tpu.matmul %57, %46, %cst_24 {dimension_numbers = #tpu.dot_dimension_numbers<[2], [1], [1], [2], [0, 0, 0, 1, 1, 2], [0], [0]>} : vector<2x8x8xf32>, vector<2x8x8xf32>, vector<2x8x8xf32> -> vector<2x8x8xf32>
    "tpu.trace_stop"() : () -> ()
    %59 = vector.extract_strided_slice %11 {offsets = [0, 0, 24], sizes = [2, 8, 8], strides = [1, 1, 1]} : vector<2x8x32xf32> to vector<2x8x8xf32>
    %60 = vector.extract_strided_slice %12 {offsets = [0, 0, 24], sizes = [2, 8, 8], strides = [1, 1, 1]} : vector<2x8x32xf32> to vector<2x8x8xf32>
    %61 = vector.extract_strided_slice %13 {offsets = [0, 0, 24], sizes = [2, 8, 8], strides = [1, 1, 1]} : vector<2x8x32xf32> to vector<2x8x8xf32>
    "tpu.trace_start"() <{level = 10 : i32, message = "bqd,bkd->bqk"}> : () -> ()
    %cst_25 = arith.constant dense<0.000000e+00> : vector<2x8x8xf32>
    %62 = tpu.matmul %59, %60, %cst_25 {dimension_numbers = #tpu.dot_dimension_numbers<[2], [2], [1], [1], [0, 0, 0, 1, 1, 1], [0], [0]>} : vector<2x8x8xf32>, vector<2x8x8xf32>, vector<2x8x8xf32> -> vector<2x8x8xf32>
    "tpu.trace_stop"() : () -> ()
    %cst_26 = arith.constant dense<0xFF800000> : vector<2x8xf32>
    %63 = vector.multi_reduction <maximumf>, %62, %cst_26 [2] : vector<2x8x8xf32> to vector<2x8xf32>
    %64 = vector.shape_cast %63 : vector<2x8xf32> to vector<2x8x1xf32>
    %65 = vector.broadcast %64 : vector<2x8x1xf32> to vector<2x8x8xf32>
    %66 = arith.subf %62, %65 : vector<2x8x8xf32>
    %67 = math.exp %66 : vector<2x8x8xf32>
    %cst_27 = arith.constant dense<0.000000e+00> : vector<2x8xf32>
    %68 = vector.multi_reduction <add>, %67, %cst_27 [2] : vector<2x8x8xf32> to vector<2x8xf32>
    %69 = vector.shape_cast %68 : vector<2x8xf32> to vector<2x8x1xf32>
    %70 = tpu.reciprocal %69 {approx = true} : vector<2x8x1xf32> -> vector<2x8x1xf32>
    %71 = vector.broadcast %70 : vector<2x8x1xf32> to vector<2x8x8xf32>
    %72 = arith.mulf %67, %71 : vector<2x8x8xf32>
    "tpu.trace_start"() <{level = 10 : i32, message = "bqk,bkd->bqd"}> : () -> ()
    %cst_28 = arith.constant dense<0.000000e+00> : vector<2x8x8xf32>
    %73 = tpu.matmul %72, %61, %cst_28 {dimension_numbers = #tpu.dot_dimension_numbers<[2], [1], [1], [2], [0, 0, 0, 1, 1, 2], [0], [0]>} : vector<2x8x8xf32>, vector<2x8x8xf32>, vector<2x8x8xf32> -> vector<2x8x8xf32>
    "tpu.trace_stop"() : () -> ()
    %74 = tpu.concatenate %28, %43, %58, %73 in 2 : vector<2x8x8xf32>, vector<2x8x8xf32>, vector<2x8x8xf32>, vector<2x8x8xf32> -> vector<2x8x32xf32>
    %75 = vector.shape_cast %74 : vector<2x8x32xf32> to vector<16x32xf32>
    %c0_29 = arith.constant 0 : index
    %c0_30 = arith.constant 0 : index
    %c0_31 = arith.constant 0 : index
    %76 = vector.load %arg4[%c0_29, %c0_30, %c0_31] : memref<2x32x32xf32, #tpu.memory_space<vmem>>, vector<1x32x32xf32>
    %77 = vector.shape_cast %76 : vector<1x32x32xf32> to vector<32x32xf32>
    %cst_32 = arith.constant dense<0.000000e+00> : vector<16x32xf32>
    %78 = tpu.matmul %75, %77, %cst_32 {dimension_numbers = #tpu.dot_dimension_numbers<[1], [0], [0], [1], [0, 0, 1, 1], [], []>} : vector<16x32xf32>, vector<32x32xf32>, vector<16x32xf32> -> vector<16x32xf32>
    %c0_33 = arith.constant 0 : index
    %c0_34 = arith.constant 0 : index
    %c0_35 = arith.constant 0 : index
    %79 = vector.load %arg5[%c0_33, %c0_34, %c0_35] : memref<2x1x32xf32, #tpu.memory_space<vmem>>, vector<1x1x32xf32>
    %80 = vector.shape_cast %79 : vector<1x1x32xf32> to vector<1x32xf32>
    %81 = vector.broadcast %80 : vector<1x32xf32> to vector<16x32xf32>
    %82 = arith.addf %78, %81 : vector<16x32xf32>
    %83 = arith.addf %1, %82 : vector<16x32xf32>
    %c0_36 = arith.constant 0 : index
    %c0_37 = arith.constant 0 : index
    %c0_38 = arith.constant 0 : index
    %84 = vector.load %arg6[%c0_36, %c0_37, %c0_38] : memref<2x1x32xf32, #tpu.memory_space<vmem>>, vector<1x1x32xf32>
    %85 = vector.shape_cast %84 : vector<1x1x32xf32> to vector<1x32xf32>
    %c0_39 = arith.constant 0 : index
    %c0_40 = arith.constant 0 : index
    %c0_41 = arith.constant 0 : index
    %86 = vector.load %arg7[%c0_39, %c0_40, %c0_41] : memref<2x1x32xf32, #tpu.memory_space<vmem>>, vector<1x1x32xf32>
    %87 = vector.shape_cast %86 : vector<1x1x32xf32> to vector<1x32xf32>
    %cst_42 = arith.constant dense<0.000000e+00> : vector<16xf32>
    %88 = vector.multi_reduction <add>, %83, %cst_42 [1] : vector<16x32xf32> to vector<16xf32>
    %89 = vector.shape_cast %88 : vector<16xf32> to vector<16x1xf32>
    %cst_43 = arith.constant 3.200000e+01 : f32
    %90 = vector.broadcast %cst_43 : f32 to vector<16x1xf32>
    %91 = arith.divf %89, %90 : vector<16x1xf32>
    %92 = vector.broadcast %91 : vector<16x1xf32> to vector<16x32xf32>
    %93 = arith.subf %83, %92 : vector<16x32xf32>
    %94 = arith.mulf %93, %93 : vector<16x32xf32>
    %cst_44 = arith.constant dense<0.000000e+00> : vector<16xf32>
    %95 = vector.multi_reduction <add>, %94, %cst_44 [1] : vector<16x32xf32> to vector<16xf32>
    %96 = vector.shape_cast %95 : vector<16xf32> to vector<16x1xf32>
    %cst_45 = arith.constant 3.200000e+01 : f32
    %97 = vector.broadcast %cst_45 : f32 to vector<16x1xf32>
    %98 = arith.divf %96, %97 : vector<16x1xf32>
    %99 = vector.broadcast %91 : vector<16x1xf32> to vector<16x32xf32>
    %100 = arith.subf %83, %99 : vector<16x32xf32>
    %cst_46 = arith.constant 9.99999974E-6 : f32
    %101 = vector.broadcast %cst_46 : f32 to vector<16x1xf32>
    %102 = arith.addf %98, %101 : vector<16x1xf32>
    %103 = math.rsqrt %102 : vector<16x1xf32>
    %104 = vector.broadcast %103 : vector<16x1xf32> to vector<16x32xf32>
    %105 = arith.mulf %100, %104 : vector<16x32xf32>
    %106 = vector.broadcast %85 : vector<1x32xf32> to vector<16x32xf32>
    %107 = arith.mulf %105, %106 : vector<16x32xf32>
    %108 = vector.broadcast %87 : vector<1x32xf32> to vector<16x32xf32>
    %109 = arith.addf %107, %108 : vector<16x32xf32>
    %c0_47 = arith.constant 0 : index
    %c0_48 = arith.constant 0 : index
    %c0_49 = arith.constant 0 : index
    %110 = vector.load %arg8[%c0_47, %c0_48, %c0_49] : memref<2x32x128xf32, #tpu.memory_space<vmem>>, vector<1x32x128xf32>
    %111 = vector.shape_cast %110 : vector<1x32x128xf32> to vector<32x128xf32>
    %cst_50 = arith.constant dense<0.000000e+00> : vector<16x128xf32>
    %112 = tpu.matmul %109, %111, %cst_50 {dimension_numbers = #tpu.dot_dimension_numbers<[1], [0], [0], [1], [0, 0, 1, 1], [], []>} : vector<16x32xf32>, vector<32x128xf32>, vector<16x128xf32> -> vector<16x128xf32>
    %c0_51 = arith.constant 0 : index
    %c0_52 = arith.constant 0 : index
    %c0_53 = arith.constant 0 : index
    %113 = vector.load %arg9[%c0_51, %c0_52, %c0_53] : memref<2x1x128xf32, #tpu.memory_space<vmem>>, vector<1x1x128xf32>
    %114 = vector.shape_cast %113 : vector<1x1x128xf32> to vector<1x128xf32>
    %115 = vector.broadcast %114 : vector<1x128xf32> to vector<16x128xf32>
    %116 = arith.addf %112, %115 : vector<16x128xf32>
    %cst_54 = arith.constant 0.000000e+00 : f32
    %117 = vector.broadcast %cst_54 : f32 to vector<16x128xf32>
    %118 = arith.maximumf %116, %117 : vector<16x128xf32>
    %c0_55 = arith.constant 0 : index
    %c0_56 = arith.constant 0 : index
    %c0_57 = arith.constant 0 : index
    %119 = vector.load %arg10[%c0_55, %c0_56, %c0_57] : memref<2x128x32xf32, #tpu.memory_space<vmem>>, vector<1x128x32xf32>
    %120 = vector.shape_cast %119 : vector<1x128x32xf32> to vector<128x32xf32>
    %cst_58 = arith.constant dense<0.000000e+00> : vector<16x32xf32>
    %121 = tpu.matmul %118, %120, %cst_58 {dimension_numbers = #tpu.dot_dimension_numbers<[1], [0], [0], [1], [0, 0, 1, 1], [], []>} : vector<16x128xf32>, vector<128x32xf32>, vector<16x32xf32> -> vector<16x32xf32>
    %c0_59 = arith.constant 0 : index
    %c0_60 = arith.constant 0 : index
    %c0_61 = arith.constant 0 : index
    %122 = vector.load %arg11[%c0_59, %c0_60, %c0_61] : memref<2x1x32xf32, #tpu.memory_space<vmem>>, vector<1x1x32xf32>
    %123 = vector.shape_cast %122 : vector<1x1x32xf32> to vector<1x32xf32>
    %124 = vector.broadcast %123 : vector<1x32xf32> to vector<16x32xf32>
    %125 = arith.addf %121, %124 : vector<16x32xf32>
    %126 = arith.addf %109, %125 : vector<16x32xf32>
    %c0_62 = arith.constant 0 : index
    %c0_63 = arith.constant 0 : index
    %c0_64 = arith.constant 0 : index
    %127 = vector.load %arg12[%c0_62, %c0_63, %c0_64] : memref<2x1x32xf32, #tpu.memory_space<vmem>>, vector<1x1x32xf32>
    %128 = vector.shape_cast %127 : vector<1x1x32xf32> to vector<1x32xf32>
    %c0_65 = arith.constant 0 : index
    %c0_66 = arith.constant 0 : index
    %c0_67 = arith.constant 0 : index
    %129 = vector.load %arg13[%c0_65, %c0_66, %c0_67] : memref<2x1x32xf32, #tpu.memory_space<vmem>>, vector<1x1x32xf32>
    %130 = vector.shape_cast %129 : vector<1x1x32xf32> to vector<1x32xf32>
    %cst_68 = arith.constant dense<0.000000e+00> : vector<16xf32>
    %131 = vector.multi_reduction <add>, %126, %cst_68 [1] : vector<16x32xf32> to vector<16xf32>
    %132 = vector.shape_cast %131 : vector<16xf32> to vector<16x1xf32>
    %cst_69 = arith.constant 3.200000e+01 : f32
    %133 = vector.broadcast %cst_69 : f32 to vector<16x1xf32>
    %134 = arith.divf %132, %133 : vector<16x1xf32>
    %135 = vector.broadcast %134 : vector<16x1xf32> to vector<16x32xf32>
    %136 = arith.subf %126, %135 : vector<16x32xf32>
    %137 = arith.mulf %136, %136 : vector<16x32xf32>
    %cst_70 = arith.constant dense<0.000000e+00> : vector<16xf32>
    %138 = vector.multi_reduction <add>, %137, %cst_70 [1] : vector<16x32xf32> to vector<16xf32>
    %139 = vector.shape_cast %138 : vector<16xf32> to vector<16x1xf32>
    %cst_71 = arith.constant 3.200000e+01 : f32
    %140 = vector.broadcast %cst_71 : f32 to vector<16x1xf32>
    %141 = arith.divf %139, %140 : vector<16x1xf32>
    %142 = vector.broadcast %134 : vector<16x1xf32> to vector<16x32xf32>
    %143 = arith.subf %126, %142 : vector<16x32xf32>
    %cst_72 = arith.constant 9.99999974E-6 : f32
    %144 = vector.broadcast %cst_72 : f32 to vector<16x1xf32>
    %145 = arith.addf %141, %144 : vector<16x1xf32>
    %146 = math.rsqrt %145 : vector<16x1xf32>
    %147 = vector.broadcast %146 : vector<16x1xf32> to vector<16x32xf32>
    %148 = arith.mulf %143, %147 : vector<16x32xf32>
    %149 = vector.broadcast %128 : vector<1x32xf32> to vector<16x32xf32>
    %150 = arith.mulf %148, %149 : vector<16x32xf32>
    %151 = vector.broadcast %130 : vector<1x32xf32> to vector<16x32xf32>
    %152 = arith.addf %150, %151 : vector<16x32xf32>
    %c1 = arith.constant 1 : index
    %c0_73 = arith.constant 0 : index
    %c0_74 = arith.constant 0 : index
    %153 = vector.load %arg1[%c1, %c0_73, %c0_74] : memref<2x32x32xf32, #tpu.memory_space<vmem>>, vector<1x32x32xf32>
    %154 = vector.shape_cast %153 : vector<1x32x32xf32> to vector<32x32xf32>
    %cst_75 = arith.constant dense<0.000000e+00> : vector<16x32xf32>
    %155 = tpu.matmul %152, %154, %cst_75 {dimension_numbers = #tpu.dot_dimension_numbers<[1], [0], [0], [1], [0, 0, 1, 1], [], []>} : vector<16x32xf32>, vector<32x32xf32>, vector<16x32xf32> -> vector<16x32xf32>
    %c1_76 = arith.constant 1 : index
    %c0_77 = arith.constant 0 : index
    %c0_78 = arith.constant 0 : index
    %156 = vector.load %arg2[%c1_76, %c0_77, %c0_78] : memref<2x32x32xf32, #tpu.memory_space<vmem>>, vector<1x32x32xf32>
    %157 = vector.shape_cast %156 : vector<1x32x32xf32> to vector<32x32xf32>
    %cst_79 = arith.constant dense<0.000000e+00> : vector<16x32xf32>
    %158 = tpu.matmul %152, %157, %cst_79 {dimension_numbers = #tpu.dot_dimension_numbers<[1], [0], [0], [1], [0, 0, 1, 1], [], []>} : vector<16x32xf32>, vector<32x32xf32>, vector<16x32xf32> -> vector<16x32xf32>
    %c1_80 = arith.constant 1 : index
    %c0_81 = arith.constant 0 : index
    %c0_82 = arith.constant 0 : index
    %159 = vector.load %arg3[%c1_80, %c0_81, %c0_82] : memref<2x32x32xf32, #tpu.memory_space<vmem>>, vector<1x32x32xf32>
    %160 = vector.shape_cast %159 : vector<1x32x32xf32> to vector<32x32xf32>
    %cst_83 = arith.constant dense<0.000000e+00> : vector<16x32xf32>
    %161 = tpu.matmul %152, %160, %cst_83 {dimension_numbers = #tpu.dot_dimension_numbers<[1], [0], [0], [1], [0, 0, 1, 1], [], []>} : vector<16x32xf32>, vector<32x32xf32>, vector<16x32xf32> -> vector<16x32xf32>
    %162 = vector.shape_cast %155 : vector<16x32xf32> to vector<2x8x32xf32>
    %163 = vector.shape_cast %158 : vector<16x32xf32> to vector<2x8x32xf32>
    %164 = vector.shape_cast %161 : vector<16x32xf32> to vector<2x8x32xf32>
    %165 = vector.extract_strided_slice %162 {offsets = [0, 0, 0], sizes = [2, 8, 8], strides = [1, 1, 1]} : vector<2x8x32xf32> to vector<2x8x8xf32>
    %166 = vector.extract_strided_slice %163 {offsets = [0, 0, 0], sizes = [2, 8, 8], strides = [1, 1, 1]} : vector<2x8x32xf32> to vector<2x8x8xf32>
    %167 = vector.extract_strided_slice %164 {offsets = [0, 0, 0], sizes = [2, 8, 8], strides = [1, 1, 1]} : vector<2x8x32xf32> to vector<2x8x8xf32>
    "tpu.trace_start"() <{level = 10 : i32, message = "bqd,bkd->bqk"}> : () -> ()
    %cst_84 = arith.constant dense<0.000000e+00> : vector<2x8x8xf32>
    %168 = tpu.matmul %165, %166, %cst_84 {dimension_numbers = #tpu.dot_dimension_numbers<[2], [2], [1], [1], [0, 0, 0, 1, 1, 1], [0], [0]>} : vector<2x8x8xf32>, vector<2x8x8xf32>, vector<2x8x8xf32> -> vector<2x8x8xf32>
    "tpu.trace_stop"() : () -> ()
    %cst_85 = arith.constant dense<0xFF800000> : vector<2x8xf32>
    %169 = vector.multi_reduction <maximumf>, %168, %cst_85 [2] : vector<2x8x8xf32> to vector<2x8xf32>
    %170 = vector.shape_cast %169 : vector<2x8xf32> to vector<2x8x1xf32>
    %171 = vector.broadcast %170 : vector<2x8x1xf32> to vector<2x8x8xf32>
    %172 = arith.subf %168, %171 : vector<2x8x8xf32>
    %173 = math.exp %172 : vector<2x8x8xf32>
    %cst_86 = arith.constant dense<0.000000e+00> : vector<2x8xf32>
    %174 = vector.multi_reduction <add>, %173, %cst_86 [2] : vector<2x8x8xf32> to vector<2x8xf32>
    %175 = vector.shape_cast %174 : vector<2x8xf32> to vector<2x8x1xf32>
    %176 = tpu.reciprocal %175 {approx = true} : vector<2x8x1xf32> -> vector<2x8x1xf32>
    %177 = vector.broadcast %176 : vector<2x8x1xf32> to vector<2x8x8xf32>
    %178 = arith.mulf %173, %177 : vector<2x8x8xf32>
    "tpu.trace_start"() <{level = 10 : i32, message = "bqk,bkd->bqd"}> : () -> ()
    %cst_87 = arith.constant dense<0.000000e+00> : vector<2x8x8xf32>
    %179 = tpu.matmul %178, %167, %cst_87 {dimension_numbers = #tpu.dot_dimension_numbers<[2], [1], [1], [2], [0, 0, 0, 1, 1, 2], [0], [0]>} : vector<2x8x8xf32>, vector<2x8x8xf32>, vector<2x8x8xf32> -> vector<2x8x8xf32>
    "tpu.trace_stop"() : () -> ()
    %180 = vector.extract_strided_slice %162 {offsets = [0, 0, 8], sizes = [2, 8, 8], strides = [1, 1, 1]} : vector<2x8x32xf32> to vector<2x8x8xf32>
    %181 = vector.extract_strided_slice %163 {offsets = [0, 0, 8], sizes = [2, 8, 8], strides = [1, 1, 1]} : vector<2x8x32xf32> to vector<2x8x8xf32>
    %182 = vector.extract_strided_slice %164 {offsets = [0, 0, 8], sizes = [2, 8, 8], strides = [1, 1, 1]} : vector<2x8x32xf32> to vector<2x8x8xf32>
    "tpu.trace_start"() <{level = 10 : i32, message = "bqd,bkd->bqk"}> : () -> ()
    %cst_88 = arith.constant dense<0.000000e+00> : vector<2x8x8xf32>
    %183 = tpu.matmul %180, %181, %cst_88 {dimension_numbers = #tpu.dot_dimension_numbers<[2], [2], [1], [1], [0, 0, 0, 1, 1, 1], [0], [0]>} : vector<2x8x8xf32>, vector<2x8x8xf32>, vector<2x8x8xf32> -> vector<2x8x8xf32>
    "tpu.trace_stop"() : () -> ()
    %cst_89 = arith.constant dense<0xFF800000> : vector<2x8xf32>
    %184 = vector.multi_reduction <maximumf>, %183, %cst_89 [2] : vector<2x8x8xf32> to vector<2x8xf32>
    %185 = vector.shape_cast %184 : vector<2x8xf32> to vector<2x8x1xf32>
    %186 = vector.broadcast %185 : vector<2x8x1xf32> to vector<2x8x8xf32>
    %187 = arith.subf %183, %186 : vector<2x8x8xf32>
    %188 = math.exp %187 : vector<2x8x8xf32>
    %cst_90 = arith.constant dense<0.000000e+00> : vector<2x8xf32>
    %189 = vector.multi_reduction <add>, %188, %cst_90 [2] : vector<2x8x8xf32> to vector<2x8xf32>
    %190 = vector.shape_cast %189 : vector<2x8xf32> to vector<2x8x1xf32>
    %191 = tpu.reciprocal %190 {approx = true} : vector<2x8x1xf32> -> vector<2x8x1xf32>
    %192 = vector.broadcast %191 : vector<2x8x1xf32> to vector<2x8x8xf32>
    %193 = arith.mulf %188, %192 : vector<2x8x8xf32>
    "tpu.trace_start"() <{level = 10 : i32, message = "bqk,bkd->bqd"}> : () -> ()
    %cst_91 = arith.constant dense<0.000000e+00> : vector<2x8x8xf32>
    %194 = tpu.matmul %193, %182, %cst_91 {dimension_numbers = #tpu.dot_dimension_numbers<[2], [1], [1], [2], [0, 0, 0, 1, 1, 2], [0], [0]>} : vector<2x8x8xf32>, vector<2x8x8xf32>, vector<2x8x8xf32> -> vector<2x8x8xf32>
    "tpu.trace_stop"() : () -> ()
    %195 = vector.extract_strided_slice %162 {offsets = [0, 0, 16], sizes = [2, 8, 8], strides = [1, 1, 1]} : vector<2x8x32xf32> to vector<2x8x8xf32>
    %196 = vector.extract_strided_slice %163 {offsets = [0, 0, 16], sizes = [2, 8, 8], strides = [1, 1, 1]} : vector<2x8x32xf32> to vector<2x8x8xf32>
    %197 = vector.extract_strided_slice %164 {offsets = [0, 0, 16], sizes = [2, 8, 8], strides = [1, 1, 1]} : vector<2x8x32xf32> to vector<2x8x8xf32>
    "tpu.trace_start"() <{level = 10 : i32, message = "bqd,bkd->bqk"}> : () -> ()
    %cst_92 = arith.constant dense<0.000000e+00> : vector<2x8x8xf32>
    %198 = tpu.matmul %195, %196, %cst_92 {dimension_numbers = #tpu.dot_dimension_numbers<[2], [2], [1], [1], [0, 0, 0, 1, 1, 1], [0], [0]>} : vector<2x8x8xf32>, vector<2x8x8xf32>, vector<2x8x8xf32> -> vector<2x8x8xf32>
    "tpu.trace_stop"() : () -> ()
    %cst_93 = arith.constant dense<0xFF800000> : vector<2x8xf32>
    %199 = vector.multi_reduction <maximumf>, %198, %cst_93 [2] : vector<2x8x8xf32> to vector<2x8xf32>
    %200 = vector.shape_cast %199 : vector<2x8xf32> to vector<2x8x1xf32>
    %201 = vector.broadcast %200 : vector<2x8x1xf32> to vector<2x8x8xf32>
    %202 = arith.subf %198, %201 : vector<2x8x8xf32>
    %203 = math.exp %202 : vector<2x8x8xf32>
    %cst_94 = arith.constant dense<0.000000e+00> : vector<2x8xf32>
    %204 = vector.multi_reduction <add>, %203, %cst_94 [2] : vector<2x8x8xf32> to vector<2x8xf32>
    %205 = vector.shape_cast %204 : vector<2x8xf32> to vector<2x8x1xf32>
    %206 = tpu.reciprocal %205 {approx = true} : vector<2x8x1xf32> -> vector<2x8x1xf32>
    %207 = vector.broadcast %206 : vector<2x8x1xf32> to vector<2x8x8xf32>
    %208 = arith.mulf %203, %207 : vector<2x8x8xf32>
    "tpu.trace_start"() <{level = 10 : i32, message = "bqk,bkd->bqd"}> : () -> ()
    %cst_95 = arith.constant dense<0.000000e+00> : vector<2x8x8xf32>
    %209 = tpu.matmul %208, %197, %cst_95 {dimension_numbers = #tpu.dot_dimension_numbers<[2], [1], [1], [2], [0, 0, 0, 1, 1, 2], [0], [0]>} : vector<2x8x8xf32>, vector<2x8x8xf32>, vector<2x8x8xf32> -> vector<2x8x8xf32>
    "tpu.trace_stop"() : () -> ()
    %210 = vector.extract_strided_slice %162 {offsets = [0, 0, 24], sizes = [2, 8, 8], strides = [1, 1, 1]} : vector<2x8x32xf32> to vector<2x8x8xf32>
    %211 = vector.extract_strided_slice %163 {offsets = [0, 0, 24], sizes = [2, 8, 8], strides = [1, 1, 1]} : vector<2x8x32xf32> to vector<2x8x8xf32>
    %212 = vector.extract_strided_slice %164 {offsets = [0, 0, 24], sizes = [2, 8, 8], strides = [1, 1, 1]} : vector<2x8x32xf32> to vector<2x8x8xf32>
    "tpu.trace_start"() <{level = 10 : i32, message = "bqd,bkd->bqk"}> : () -> ()
    %cst_96 = arith.constant dense<0.000000e+00> : vector<2x8x8xf32>
    %213 = tpu.matmul %210, %211, %cst_96 {dimension_numbers = #tpu.dot_dimension_numbers<[2], [2], [1], [1], [0, 0, 0, 1, 1, 1], [0], [0]>} : vector<2x8x8xf32>, vector<2x8x8xf32>, vector<2x8x8xf32> -> vector<2x8x8xf32>
    "tpu.trace_stop"() : () -> ()
    %cst_97 = arith.constant dense<0xFF800000> : vector<2x8xf32>
    %214 = vector.multi_reduction <maximumf>, %213, %cst_97 [2] : vector<2x8x8xf32> to vector<2x8xf32>
    %215 = vector.shape_cast %214 : vector<2x8xf32> to vector<2x8x1xf32>
    %216 = vector.broadcast %215 : vector<2x8x1xf32> to vector<2x8x8xf32>
    %217 = arith.subf %213, %216 : vector<2x8x8xf32>
    %218 = math.exp %217 : vector<2x8x8xf32>
    %cst_98 = arith.constant dense<0.000000e+00> : vector<2x8xf32>
    %219 = vector.multi_reduction <add>, %218, %cst_98 [2] : vector<2x8x8xf32> to vector<2x8xf32>
    %220 = vector.shape_cast %219 : vector<2x8xf32> to vector<2x8x1xf32>
    %221 = tpu.reciprocal %220 {approx = true} : vector<2x8x1xf32> -> vector<2x8x1xf32>
    %222 = vector.broadcast %221 : vector<2x8x1xf32> to vector<2x8x8xf32>
    %223 = arith.mulf %218, %222 : vector<2x8x8xf32>
    "tpu.trace_start"() <{level = 10 : i32, message = "bqk,bkd->bqd"}> : () -> ()
    %cst_99 = arith.constant dense<0.000000e+00> : vector<2x8x8xf32>
    %224 = tpu.matmul %223, %212, %cst_99 {dimension_numbers = #tpu.dot_dimension_numbers<[2], [1], [1], [2], [0, 0, 0, 1, 1, 2], [0], [0]>} : vector<2x8x8xf32>, vector<2x8x8xf32>, vector<2x8x8xf32> -> vector<2x8x8xf32>
    "tpu.trace_stop"() : () -> ()
    %225 = tpu.concatenate %179, %194, %209, %224 in 2 : vector<2x8x8xf32>, vector<2x8x8xf32>, vector<2x8x8xf32>, vector<2x8x8xf32> -> vector<2x8x32xf32>
    %226 = vector.shape_cast %225 : vector<2x8x32xf32> to vector<16x32xf32>
    %c1_100 = arith.constant 1 : index
    %c0_101 = arith.constant 0 : index
    %c0_102 = arith.constant 0 : index
    %227 = vector.load %arg4[%c1_100, %c0_101, %c0_102] : memref<2x32x32xf32, #tpu.memory_space<vmem>>, vector<1x32x32xf32>
    %228 = vector.shape_cast %227 : vector<1x32x32xf32> to vector<32x32xf32>
    %cst_103 = arith.constant dense<0.000000e+00> : vector<16x32xf32>
    %229 = tpu.matmul %226, %228, %cst_103 {dimension_numbers = #tpu.dot_dimension_numbers<[1], [0], [0], [1], [0, 0, 1, 1], [], []>} : vector<16x32xf32>, vector<32x32xf32>, vector<16x32xf32> -> vector<16x32xf32>
    %c1_104 = arith.constant 1 : index
    %c0_105 = arith.constant 0 : index
    %c0_106 = arith.constant 0 : index
    %230 = vector.load %arg5[%c1_104, %c0_105, %c0_106] : memref<2x1x32xf32, #tpu.memory_space<vmem>>, vector<1x1x32xf32>
    %231 = vector.shape_cast %230 : vector<1x1x32xf32> to vector<1x32xf32>
    %232 = vector.broadcast %231 : vector<1x32xf32> to vector<16x32xf32>
    %233 = arith.addf %229, %232 : vector<16x32xf32>
    %234 = arith.addf %152, %233 : vector<16x32xf32>
    %c1_107 = arith.constant 1 : index
    %c0_108 = arith.constant 0 : index
    %c0_109 = arith.constant 0 : index
    %235 = vector.load %arg6[%c1_107, %c0_108, %c0_109] : memref<2x1x32xf32, #tpu.memory_space<vmem>>, vector<1x1x32xf32>
    %236 = vector.shape_cast %235 : vector<1x1x32xf32> to vector<1x32xf32>
    %c1_110 = arith.constant 1 : index
    %c0_111 = arith.constant 0 : index
    %c0_112 = arith.constant 0 : index
    %237 = vector.load %arg7[%c1_110, %c0_111, %c0_112] : memref<2x1x32xf32, #tpu.memory_space<vmem>>, vector<1x1x32xf32>
    %238 = vector.shape_cast %237 : vector<1x1x32xf32> to vector<1x32xf32>
    %cst_113 = arith.constant dense<0.000000e+00> : vector<16xf32>
    %239 = vector.multi_reduction <add>, %234, %cst_113 [1] : vector<16x32xf32> to vector<16xf32>
    %240 = vector.shape_cast %239 : vector<16xf32> to vector<16x1xf32>
    %cst_114 = arith.constant 3.200000e+01 : f32
    %241 = vector.broadcast %cst_114 : f32 to vector<16x1xf32>
    %242 = arith.divf %240, %241 : vector<16x1xf32>
    %243 = vector.broadcast %242 : vector<16x1xf32> to vector<16x32xf32>
    %244 = arith.subf %234, %243 : vector<16x32xf32>
    %245 = arith.mulf %244, %244 : vector<16x32xf32>
    %cst_115 = arith.constant dense<0.000000e+00> : vector<16xf32>
    %246 = vector.multi_reduction <add>, %245, %cst_115 [1] : vector<16x32xf32> to vector<16xf32>
    %247 = vector.shape_cast %246 : vector<16xf32> to vector<16x1xf32>
    %cst_116 = arith.constant 3.200000e+01 : f32
    %248 = vector.broadcast %cst_116 : f32 to vector<16x1xf32>
    %249 = arith.divf %247, %248 : vector<16x1xf32>
    %250 = vector.broadcast %242 : vector<16x1xf32> to vector<16x32xf32>
    %251 = arith.subf %234, %250 : vector<16x32xf32>
    %cst_117 = arith.constant 9.99999974E-6 : f32
    %252 = vector.broadcast %cst_117 : f32 to vector<16x1xf32>
    %253 = arith.addf %249, %252 : vector<16x1xf32>
    %254 = math.rsqrt %253 : vector<16x1xf32>
    %255 = vector.broadcast %254 : vector<16x1xf32> to vector<16x32xf32>
    %256 = arith.mulf %251, %255 : vector<16x32xf32>
    %257 = vector.broadcast %236 : vector<1x32xf32> to vector<16x32xf32>
    %258 = arith.mulf %256, %257 : vector<16x32xf32>
    %259 = vector.broadcast %238 : vector<1x32xf32> to vector<16x32xf32>
    %260 = arith.addf %258, %259 : vector<16x32xf32>
    %c1_118 = arith.constant 1 : index
    %c0_119 = arith.constant 0 : index
    %c0_120 = arith.constant 0 : index
    %261 = vector.load %arg8[%c1_118, %c0_119, %c0_120] : memref<2x32x128xf32, #tpu.memory_space<vmem>>, vector<1x32x128xf32>
    %262 = vector.shape_cast %261 : vector<1x32x128xf32> to vector<32x128xf32>
    %cst_121 = arith.constant dense<0.000000e+00> : vector<16x128xf32>
    %263 = tpu.matmul %260, %262, %cst_121 {dimension_numbers = #tpu.dot_dimension_numbers<[1], [0], [0], [1], [0, 0, 1, 1], [], []>} : vector<16x32xf32>, vector<32x128xf32>, vector<16x128xf32> -> vector<16x128xf32>
    %c1_122 = arith.constant 1 : index
    %c0_123 = arith.constant 0 : index
    %c0_124 = arith.constant 0 : index
    %264 = vector.load %arg9[%c1_122, %c0_123, %c0_124] : memref<2x1x128xf32, #tpu.memory_space<vmem>>, vector<1x1x128xf32>
    %265 = vector.shape_cast %264 : vector<1x1x128xf32> to vector<1x128xf32>
    %266 = vector.broadcast %265 : vector<1x128xf32> to vector<16x128xf32>
    %267 = arith.addf %263, %266 : vector<16x128xf32>
    %cst_125 = arith.constant 0.000000e+00 : f32
    %268 = vector.broadcast %cst_125 : f32 to vector<16x128xf32>
    %269 = arith.maximumf %267, %268 : vector<16x128xf32>
    %c1_126 = arith.constant 1 : index
    %c0_127 = arith.constant 0 : index
    %c0_128 = arith.constant 0 : index
    %270 = vector.load %arg10[%c1_126, %c0_127, %c0_128] : memref<2x128x32xf32, #tpu.memory_space<vmem>>, vector<1x128x32xf32>
    %271 = vector.shape_cast %270 : vector<1x128x32xf32> to vector<128x32xf32>
    %cst_129 = arith.constant dense<0.000000e+00> : vector<16x32xf32>
    %272 = tpu.matmul %269, %271, %cst_129 {dimension_numbers = #tpu.dot_dimension_numbers<[1], [0], [0], [1], [0, 0, 1, 1], [], []>} : vector<16x128xf32>, vector<128x32xf32>, vector<16x32xf32> -> vector<16x32xf32>
    %c1_130 = arith.constant 1 : index
    %c0_131 = arith.constant 0 : index
    %c0_132 = arith.constant 0 : index
    %273 = vector.load %arg11[%c1_130, %c0_131, %c0_132] : memref<2x1x32xf32, #tpu.memory_space<vmem>>, vector<1x1x32xf32>
    %274 = vector.shape_cast %273 : vector<1x1x32xf32> to vector<1x32xf32>
    %275 = vector.broadcast %274 : vector<1x32xf32> to vector<16x32xf32>
    %276 = arith.addf %272, %275 : vector<16x32xf32>
    %277 = arith.addf %260, %276 : vector<16x32xf32>
    %c1_133 = arith.constant 1 : index
    %c0_134 = arith.constant 0 : index
    %c0_135 = arith.constant 0 : index
    %278 = vector.load %arg12[%c1_133, %c0_134, %c0_135] : memref<2x1x32xf32, #tpu.memory_space<vmem>>, vector<1x1x32xf32>
    %279 = vector.shape_cast %278 : vector<1x1x32xf32> to vector<1x32xf32>
    %c1_136 = arith.constant 1 : index
    %c0_137 = arith.constant 0 : index
    %c0_138 = arith.constant 0 : index
    %280 = vector.load %arg13[%c1_136, %c0_137, %c0_138] : memref<2x1x32xf32, #tpu.memory_space<vmem>>, vector<1x1x32xf32>
    %281 = vector.shape_cast %280 : vector<1x1x32xf32> to vector<1x32xf32>
    %cst_139 = arith.constant dense<0.000000e+00> : vector<16xf32>
    %282 = vector.multi_reduction <add>, %277, %cst_139 [1] : vector<16x32xf32> to vector<16xf32>
    %283 = vector.shape_cast %282 : vector<16xf32> to vector<16x1xf32>
    %cst_140 = arith.constant 3.200000e+01 : f32
    %284 = vector.broadcast %cst_140 : f32 to vector<16x1xf32>
    %285 = arith.divf %283, %284 : vector<16x1xf32>
    %286 = vector.broadcast %285 : vector<16x1xf32> to vector<16x32xf32>
    %287 = arith.subf %277, %286 : vector<16x32xf32>
    %288 = arith.mulf %287, %287 : vector<16x32xf32>
    %cst_141 = arith.constant dense<0.000000e+00> : vector<16xf32>
    %289 = vector.multi_reduction <add>, %288, %cst_141 [1] : vector<16x32xf32> to vector<16xf32>
    %290 = vector.shape_cast %289 : vector<16xf32> to vector<16x1xf32>
    %cst_142 = arith.constant 3.200000e+01 : f32
    %291 = vector.broadcast %cst_142 : f32 to vector<16x1xf32>
    %292 = arith.divf %290, %291 : vector<16x1xf32>
    %293 = vector.broadcast %285 : vector<16x1xf32> to vector<16x32xf32>
    %294 = arith.subf %277, %293 : vector<16x32xf32>
    %cst_143 = arith.constant 9.99999974E-6 : f32
    %295 = vector.broadcast %cst_143 : f32 to vector<16x1xf32>
    %296 = arith.addf %292, %295 : vector<16x1xf32>
    %297 = math.rsqrt %296 : vector<16x1xf32>
    %298 = vector.broadcast %297 : vector<16x1xf32> to vector<16x32xf32>
    %299 = arith.mulf %294, %298 : vector<16x32xf32>
    %300 = vector.broadcast %279 : vector<1x32xf32> to vector<16x32xf32>
    %301 = arith.mulf %299, %300 : vector<16x32xf32>
    %302 = vector.broadcast %281 : vector<1x32xf32> to vector<16x32xf32>
    %303 = arith.addf %301, %302 : vector<16x32xf32>
    %304 = vector.shape_cast %303 : vector<16x32xf32> to vector<2x8x32xf32>
    %c0_144 = arith.constant 0 : index
    %c0_145 = arith.constant 0 : index
    %c0_146 = arith.constant 0 : index
    %305 = vector.load %arg14[%c0_144, %c0_145, %c0_146] : memref<2x8x32xf32, #tpu.memory_space<vmem>>, vector<2x8x32xf32>
    tpu.vector_store %arg14[%c0_144, %c0_145, %c0_146], %304 {strides = array<i32>} : memref<2x8x32xf32, #tpu.memory_space<vmem>>, vector<2x8x32xf32>,
    return
  }
}

</mosaic_0001>

<llo_original>
// kernel: tpu_custom_call.1
$region0: #{tpu_custom_call.1}
  #allocation0 [shape = 'u32[]', space=smem, size = 0x4, offset = 0x4, fixed_abs, tag = 'smem constant byte address 0x4 - core index']
  #allocation1 [shape = 'u32[144,128]{1,0:T(1,128)}', space=vmem, size = 0x12000, scoped, tag = 'internal scratch']
  %s0 = inlined_call_operand.hbm [shape: f32[2,8,32], index: 0, kind: input, shape index: {}]
  %s1 = inlined_call_operand.vmem [shape: f32[2,32,32], index: 1, kind: input, shape index: {}]
  %s2 = inlined_call_operand.vmem [shape: f32[2,32,32], index: 2, kind: input, shape index: {}]
  %s3 = inlined_call_operand.vmem [shape: f32[2,32,32], index: 3, kind: input, shape index: {}]
  %s4 = inlined_call_operand.vmem [shape: f32[2,32,32], index: 4, kind: input, shape index: {}]
  %s5 = inlined_call_operand.vmem [shape: f32[2,1,32], index: 5, kind: input, shape index: {}]
  %s6 = inlined_call_operand.vmem [shape: f32[2,1,32], index: 6, kind: input, shape index: {}]
  %s7 = inlined_call_operand.vmem [shape: f32[2,1,32], index: 7, kind: input, shape index: {}]
  %s8 = inlined_call_operand.vmem [shape: f32[2,32,128], index: 8, kind: input, shape index: {}]
  %s9 = inlined_call_operand.vmem [shape: f32[2,1,128], index: 9, kind: input, shape index: {}]
  %s10 = inlined_call_operand.vmem [shape: f32[2,128,32], index: 10, kind: input, shape index: {}]
  %s11 = inlined_call_operand.vmem [shape: f32[2,1,32], index: 11, kind: input, shape index: {}]
  %s12 = inlined_call_operand.vmem [shape: f32[2,1,32], index: 12, kind: input, shape index: {}]
  %s13 = inlined_call_operand.vmem [shape: f32[2,1,32], index: 13, kind: input, shape index: {}]
  %s14 = inlined_call_operand.hbm [shape: f32[2,8,32], index: 14, kind: output, shape index: {}]
  %s15 = sld [smem:[#allocation0]]
  $region70: #{tpu_custom_call.1} parent=0
    _
  %s17 = ssub.s32 1, %s15
  %s18 = scalar_select 0, %s17, %s15
  $region1: #{tpu_custom_call.1} parent=0
    #allocation2 [shape = 'u8[8192]{0}', space=vmem, size = 0x2000, scoped, tag = 'input window, operand 0, single buffered']
    #allocation3 [shape = 's32[1]{0}', space=sflag, size = 0x4, scoped, tag = 'scoped memory for tpu_custom_call.1']
    #allocation4 [shape = 's32[1]{0}', space=sflag, size = 0x4, scoped, tag = 'scoped memory for tpu_custom_call.1']
    #allocation5 [shape = 'u8[8192]{0}', space=vmem, size = 0x2000, scoped, tag = 'output window, operand 0, single buffered']
    %19 = vsyncpa [#allocation3], 0
    %20 = vsyncpa [#allocation4], 0
    // Predicated region
    $region2: #{tpu_custom_call.1} parent=1 // pred_check
      _
    $region3: #{tpu_custom_call.1} parent=1 // pred_check_branch
      %22 = sbr.rel (0) target = $region5
    $region4: #{tpu_custom_call.1} parent=1 // pred_region
      %s24 = ssub.s32 256, 256
      %25 = vsyncadd [#allocation3], %s24
      %s26 = sshll.u32 [#allocation2], 4
      %s27 = int_to_ptr.vmem [resolvable:$true] %s26
      %32 = dma.hbm_to_vmem [thread:$0]  %s0, 256, %s27, [#allocation3], 128, 128, 8
    $region5: #{tpu_custom_call.1} parent=1 // pred_fallthru
      _
    // Predicated region
    $region6: #{tpu_custom_call.1} parent=1 // pred_check
      _
    $region7: #{tpu_custom_call.1} parent=1 // pred_check_branch
      %34 = sbr.rel (0) target = $region9
    $region8: #{tpu_custom_call.1} parent=1 // pred_region
      _
    $region9: #{tpu_custom_call.1} parent=1 // pred_fallthru
      _
    // Predicated region
    $region10: #{tpu_custom_call.1} parent=1 // pred_check
      _
    $region11: #{tpu_custom_call.1} parent=1 // pred_check_branch
      %36 = sbr.rel (0) target = $region13
    $region12: #{tpu_custom_call.1} parent=1 // pred_region
      _
    $region13: #{tpu_custom_call.1} parent=1 // pred_fallthru
      _
    // Predicated region
    $region14: #{tpu_custom_call.1} parent=1 // pred_check
      _
    $region15: #{tpu_custom_call.1} parent=1 // pred_check_branch
      %38 = sbr.rel (0) target = $region17
    $region16: #{tpu_custom_call.1} parent=1 // pred_region
      _
    $region17: #{tpu_custom_call.1} parent=1 // pred_fallthru
      _
    // Predicated region
    $region18: #{tpu_custom_call.1} parent=1 // pred_check
      _
    $region19: #{tpu_custom_call.1} parent=1 // pred_check_branch
      %40 = sbr.rel (0) target = $region21
    $region20: #{tpu_custom_call.1} parent=1 // pred_region
      _
    $region21: #{tpu_custom_call.1} parent=1 // pred_fallthru
      _
    // Predicated region
    $region22: #{tpu_custom_call.1} parent=1 // pred_check
      _
    $region23: #{tpu_custom_call.1} parent=1 // pred_check_branch
      %42 = sbr.rel (0) target = $region25
    $region24: #{tpu_custom_call.1} parent=1 // pred_region
      _
    $region25: #{tpu_custom_call.1} parent=1 // pred_fallthru
      _
    // Predicated region
    $region26: #{tpu_custom_call.1} parent=1 // pred_check
      _
    $region27: #{tpu_custom_call.1} parent=1 // pred_check_branch
      %44 = sbr.rel (0) target = $region29
    $region28: #{tpu_custom_call.1} parent=1 // pred_region
      _
    $region29: #{tpu_custom_call.1} parent=1 // pred_fallthru
      _
    // Predicated region
    $region30: #{tpu_custom_call.1} parent=1 // pred_check
      _
    $region31: #{tpu_custom_call.1} parent=1 // pred_check_branch
      %46 = sbr.rel (0) target = $region33
    $region32: #{tpu_custom_call.1} parent=1 // pred_region
      _
    $region33: #{tpu_custom_call.1} parent=1 // pred_fallthru
      _
    // Predicated region
    $region34: #{tpu_custom_call.1} parent=1 // pred_check
      _
    $region35: #{tpu_custom_call.1} parent=1 // pred_check_branch
      %48 = sbr.rel (0) target = $region37
    $region36: #{tpu_custom_call.1} parent=1 // pred_region
      _
    $region37: #{tpu_custom_call.1} parent=1 // pred_fallthru
      _
    // Predicated region
    $region38: #{tpu_custom_call.1} parent=1 // pred_check
      _
    $region39: #{tpu_custom_call.1} parent=1 // pred_check_branch
      %50 = sbr.rel (0) target = $region41
    $region40: #{tpu_custom_call.1} parent=1 // pred_region
      _
    $region41: #{tpu_custom_call.1} parent=1 // pred_fallthru
      _
    // Predicated region
    $region42: #{tpu_custom_call.1} parent=1 // pred_check
      _
    $region43: #{tpu_custom_call.1} parent=1 // pred_check_branch
      %52 = sbr.rel (0) target = $region45
    $region44: #{tpu_custom_call.1} parent=1 // pred_region
      _
    $region45: #{tpu_custom_call.1} parent=1 // pred_fallthru
      _
    // Predicated region
    $region46: #{tpu_custom_call.1} parent=1 // pred_check
      _
    $region47: #{tpu_custom_call.1} parent=1 // pred_check_branch
      %54 = sbr.rel (0) target = $region49
    $region48: #{tpu_custom_call.1} parent=1 // pred_region
      _
    $region49: #{tpu_custom_call.1} parent=1 // pred_fallthru
      _
    // Predicated region
    $region50: #{tpu_custom_call.1} parent=1 // pred_check
      _
    $region51: #{tpu_custom_call.1} parent=1 // pred_check_branch
      %56 = sbr.rel (0) target = $region53
    $region52: #{tpu_custom_call.1} parent=1 // pred_region
      _
    $region53: #{tpu_custom_call.1} parent=1 // pred_fallthru
      _
    // Predicated region
    $region54: #{tpu_custom_call.1} parent=1 // pred_check
      _
    $region55: #{tpu_custom_call.1} parent=1 // pred_check_branch
      %58 = sbr.rel (0) target = $region57
    $region56: #{tpu_custom_call.1} parent=1 // pred_region
      _
    $region57: #{tpu_custom_call.1} parent=1 // pred_fallthru
      _
    // Predicated region
    $region58: #{tpu_custom_call.1} parent=1 // pred_check
      _
    $region59: #{tpu_custom_call.1} parent=1 // pred_check_branch
      %60 = sbr.rel (0) target = $region61
    $region60: #{tpu_custom_call.1} parent=1 // pred_region
      %61 = dma.done [#allocation3], 256
    $region61: #{tpu_custom_call.1} parent=1 // pred_fallthru
      _
    %v62 = vld [vmem:[#allocation2] sm:$0xff]
    %v63 = vld [vmem:[#allocation2 + $0x8] sm:$0xff]
    %v64 = vld [vmem:[%s1] sm:$0xff]
    %v65 = vld [vmem:[%s1 + $0x8] sm:$0xff]
    %v66 = vld [vmem:[%s1 + $0x10] sm:$0xff]
    %v67 = vld [vmem:[%s1 + $0x18] sm:$0xff]
    %vm68 = vcmask 261120
    %v70 = vsel %vm68, %v62, 0
    %v73 = vsel %vm68, %v63, 0
    %75 = vmatprep.subr.mxu0 0.0
    %76 = vmatpush1.msra.mxu0 0.0
    %77 = vmatprep.subr.mxu0 0.0
    %78 = vmatpush1.msra.mxu0 0.0
    %79 = vmatprep.subr.mxu0 0.0
    %80 = vmatpush1.msra.mxu0 0.0
    %81 = vmatprep.subr.mxu0 0.0
    %82 = vmatpush1.msra.mxu0 0.0
    %83 = vmatprep.subr.mxu0 0.0
    %84 = vmatpush1.msra.mxu0 0.0
    %85 = vmatprep.subr.mxu0 0.0
    %86 = vmatpush1.msra.mxu0 0.0
    %87 = vmatprep.subr.mxu0 0.0
    %88 = vmatpush1.msra.mxu0 0.0
    %89 = vmatprep.subr.mxu0 0.0
    %90 = vmatpush1.msra.mxu0 0.0
    %91 = vmatprep.subr.mxu0 0.0
    %92 = vmatpush1.msra.mxu0 0.0
    %93 = vmatprep.subr.mxu0 0.0
    %94 = vmatpush1.msra.mxu0 0.0
    %95 = vmatprep.subr.mxu0 0.0
    %96 = vmatpush1.msra.mxu0 0.0
    %97 = vmatprep.subr.mxu0 0.0
    %98 = vmatpush1.msra.mxu0 0.0
    %99 = vmatprep.subr.mxu0 0.0
    %100 = vmatpush1.msra.mxu0 %v67
    %101 = vmatprep.subr.mxu0 0.0
    %102 = vmatpush1.msra.mxu0 %v66
    %103 = vmatprep.subr.mxu0 0.0
    %104 = vmatpush1.msra.mxu0 %v65
    %105 = vmatprep.subr.mxu0 0.0
    %106 = vmatpush1.msra.mxu0 %v64
    %107 = vmatprep.subr.mxu0 0.0
    %108 = vmatpush2.msra.mxu0 0.0
    %109 = vmatprep.subr.mxu0 0.0
    %110 = vmatpush2.msra.mxu0 0.0
    %111 = vmatprep.subr.mxu0 0.0
    %112 = vmatpush2.msra.mxu0 0.0
    %113 = vmatprep.subr.mxu0 0.0
    %114 = vmatpush2.msra.mxu0 0.0
    %115 = vmatprep.subr.mxu0 0.0
    %116 = vmatpush2.msra.mxu0 0.0
    %117 = vmatprep.subr.mxu0 0.0
    %118 = vmatpush2.msra.mxu0 0.0
    %119 = vmatprep.subr.mxu0 0.0
    %120 = vmatpush2.msra.mxu0 0.0
    %121 = vmatprep.subr.mxu0 0.0
    %122 = vmatpush2.msra.mxu0 0.0
    %123 = vmatprep.subr.mxu0 0.0
    %124 = vmatpush2.msra.mxu0 0.0
    %125 = vmatprep.subr.mxu0 0.0
    %126 = vmatpush2.msra.mxu0 0.0
    %127 = vmatprep.subr.mxu0 0.0
    %128 = vmatpush2.msra.mxu0 0.0
    %129 = vmatprep.subr.mxu0 0.0
    %130 = vmatpush2.msra.mxu0 0.0
    %131 = vmatprep.subr.mxu0 0.0
    %132 = vmatpush2.msra.mxu0 0.0
    %133 = vmatprep.subr.mxu0 0.0
    %134 = vmatpush2.msra.mxu0 0.0
    %135 = vmatprep.subr.mxu0 0.0
    %136 = vmatpush2.msra.mxu0 0.0
    %137 = vmatprep.subr.mxu0 0.0
    %138 = vmatpush2.msra.mxu0 0.0
    %139 = vmatprep.mubr.f32.mxu0 0.0
    %140 = vmatmul.mubr.f32.gmra.mxu0 %v70
    %v141 = vpop.f32.mrf.mxu0
    %v142 = vadd.f32 0.0, %v141
    %v143 = vpop.f32.mrf.mxu0
    %144 = vmatprep.mubr.f32.mxu0 0.0
    %145 = vmatmul.mubr.f32.gmra.mxu0 %v73
    %v146 = vpop.f32.mrf.mxu0
    %v147 = vadd.f32 0.0, %v146
    %v148 = vpop.f32.mrf.mxu0
    %149 = vdwg.mxu0
    %v150 = vld [vmem:[%s2] sm:$0xff]
    %v151 = vld [vmem:[%s2 + $0x8] sm:$0xff]
    %v152 = vld [vmem:[%s2 + $0x10] sm:$0xff]
    %v153 = vld [vmem:[%s2 + $0x18] sm:$0xff]
    %154 = vmatprep.subr.mxu0 0.0
    %155 = vmatpush1.msra.mxu0 0.0
    %156 = vmatprep.subr.mxu0 0.0
    %157 = vmatpush1.msra.mxu0 0.0
    %158 = vmatprep.subr.mxu0 0.0
    %159 = vmatpush1.msra.mxu0 0.0
    %160 = vmatprep.subr.mxu0 0.0
    %161 = vmatpush1.msra.mxu0 0.0
    %162 = vmatprep.subr.mxu0 0.0
    %163 = vmatpush1.msra.mxu0 0.0
    %164 = vmatprep.subr.mxu0 0.0
    %165 = vmatpush1.msra.mxu0 0.0
    %166 = vmatprep.subr.mxu0 0.0
    %167 = vmatpush1.msra.mxu0 0.0
    %168 = vmatprep.subr.mxu0 0.0
    %169 = vmatpush1.msra.mxu0 0.0
    %170 = vmatprep.subr.mxu0 0.0
    %171 = vmatpush1.msra.mxu0 0.0
    %172 = vmatprep.subr.mxu0 0.0
    %173 = vmatpush1.msra.mxu0 0.0
    %174 = vmatprep.subr.mxu0 0.0
    %175 = vmatpush1.msra.mxu0 0.0
    %176 = vmatprep.subr.mxu0 0.0
    %177 = vmatpush1.msra.mxu0 0.0
    %178 = vmatprep.subr.mxu0 0.0
    %179 = vmatpush1.msra.mxu0 %v153
    %180 = vmatprep.subr.mxu0 0.0
    %181 = vmatpush1.msra.mxu0 %v152
    %182 = vmatprep.subr.mxu0 0.0
    %183 = vmatpush1.msra.mxu0 %v151
    %184 = vmatprep.subr.mxu0 0.0
    %185 = vmatpush1.msra.mxu0 %v150
    %186 = vmatprep.subr.mxu0 0.0
    %187 = vmatpush2.msra.mxu0 0.0
    %188 = vmatprep.subr.mxu0 0.0
    %189 = vmatpush2.msra.mxu0 0.0
    %190 = vmatprep.subr.mxu0 0.0
    %191 = vmatpush2.msra.mxu0 0.0
    %192 = vmatprep.subr.mxu0 0.0
    %193 = vmatpush2.msra.mxu0 0.0
    %194 = vmatprep.subr.mxu0 0.0
    %195 = vmatpush2.msra.mxu0 0.0
    %196 = vmatprep.subr.mxu0 0.0
    %197 = vmatpush2.msra.mxu0 0.0
    %198 = vmatprep.subr.mxu0 0.0
    %199 = vmatpush2.msra.mxu0 0.0
    %200 = vmatprep.subr.mxu0 0.0
    %201 = vmatpush2.msra.mxu0 0.0
    %202 = vmatprep.subr.mxu0 0.0
    %203 = vmatpush2.msra.mxu0 0.0
    %204 = vmatprep.subr.mxu0 0.0
    %205 = vmatpush2.msra.mxu0 0.0
    %206 = vmatprep.subr.mxu0 0.0
    %207 = vmatpush2.msra.mxu0 0.0
    %208 = vmatprep.subr.mxu0 0.0
    %209 = vmatpush2.msra.mxu0 0.0
    %210 = vmatprep.subr.mxu0 0.0
    %211 = vmatpush2.msra.mxu0 0.0
    %212 = vmatprep.subr.mxu0 0.0
    %213 = vmatpush2.msra.mxu0 0.0
    %214 = vmatprep.subr.mxu0 0.0
    %215 = vmatpush2.msra.mxu0 0.0
    %216 = vmatprep.subr.mxu0 0.0
    %217 = vmatpush2.msra.mxu0 0.0
    %218 = vmatprep.mubr.f32.mxu0 0.0
    %219 = vmatmul.mubr.f32.gmra.mxu0 %v70
    %v220 = vpop.f32.mrf.mxu0
    %v221 = vadd.f32 0.0, %v220
    %v222 = vpop.f32.mrf.mxu0
    %223 = vmatprep.mubr.f32.mxu0 0.0
    %224 = vmatmul.mubr.f32.gmra.mxu0 %v73
    %v225 = vpop.f32.mrf.mxu0
    %v226 = vadd.f32 0.0, %v225
    %v227 = vpop.f32.mrf.mxu0
    %228 = vdwg.mxu0
    %v229 = vld [vmem:[%s3] sm:$0xff]
    %v230 = vld [vmem:[%s3 + $0x8] sm:$0xff]
    %v231 = vld [vmem:[%s3 + $0x10] sm:$0xff]
    %v232 = vld [vmem:[%s3 + $0x18] sm:$0xff]
    %233 = vmatprep.subr.mxu0 0.0
    %234 = vmatpush1.msra.mxu0 0.0
    %235 = vmatprep.subr.mxu0 0.0
    %236 = vmatpush1.msra.mxu0 0.0
    %237 = vmatprep.subr.mxu0 0.0
    %238 = vmatpush1.msra.mxu0 0.0
    %239 = vmatprep.subr.mxu0 0.0
    %240 = vmatpush1.msra.mxu0 0.0
    %241 = vmatprep.subr.mxu0 0.0
    %242 = vmatpush1.msra.mxu0 0.0
    %243 = vmatprep.subr.mxu0 0.0
    %244 = vmatpush1.msra.mxu0 0.0
    %245 = vmatprep.subr.mxu0 0.0
    %246 = vmatpush1.msra.mxu0 0.0
    %247 = vmatprep.subr.mxu0 0.0
    %248 = vmatpush1.msra.mxu0 0.0
    %249 = vmatprep.subr.mxu0 0.0
    %250 = vmatpush1.msra.mxu0 0.0
    %251 = vmatprep.subr.mxu0 0.0
    %252 = vmatpush1.msra.mxu0 0.0
    %253 = vmatprep.subr.mxu0 0.0
    %254 = vmatpush1.msra.mxu0 0.0
    %255 = vmatprep.subr.mxu0 0.0
    %256 = vmatpush1.msra.mxu0 0.0
    %257 = vmatprep.subr.mxu0 0.0
    %258 = vmatpush1.msra.mxu0 %v232
    %259 = vmatprep.subr.mxu0 0.0
    %260 = vmatpush1.msra.mxu0 %v231
    %261 = vmatprep.subr.mxu0 0.0
    %262 = vmatpush1.msra.mxu0 %v230
    %263 = vmatprep.subr.mxu0 0.0
    %264 = vmatpush1.msra.mxu0 %v229
    %265 = vmatprep.subr.mxu0 0.0
    %266 = vmatpush2.msra.mxu0 0.0
    %267 = vmatprep.subr.mxu0 0.0
    %268 = vmatpush2.msra.mxu0 0.0
    %269 = vmatprep.subr.mxu0 0.0
    %270 = vmatpush2.msra.mxu0 0.0
    %271 = vmatprep.subr.mxu0 0.0
    %272 = vmatpush2.msra.mxu0 0.0
    %273 = vmatprep.subr.mxu0 0.0
    %274 = vmatpush2.msra.mxu0 0.0
    %275 = vmatprep.subr.mxu0 0.0
    %276 = vmatpush2.msra.mxu0 0.0
    %277 = vmatprep.subr.mxu0 0.0
    %278 = vmatpush2.msra.mxu0 0.0
    %279 = vmatprep.subr.mxu0 0.0
    %280 = vmatpush2.msra.mxu0 0.0
    %281 = vmatprep.subr.mxu0 0.0
    %282 = vmatpush2.msra.mxu0 0.0
    %283 = vmatprep.subr.mxu0 0.0
    %284 = vmatpush2.msra.mxu0 0.0
    %285 = vmatprep.subr.mxu0 0.0
    %286 = vmatpush2.msra.mxu0 0.0
    %287 = vmatprep.subr.mxu0 0.0
    %288 = vmatpush2.msra.mxu0 0.0
    %289 = vmatprep.subr.mxu0 0.0
    %290 = vmatpush2.msra.mxu0 0.0
    %291 = vmatprep.subr.mxu0 0.0
    %292 = vmatpush2.msra.mxu0 0.0
    %293 = vmatprep.subr.mxu0 0.0
    %294 = vmatpush2.msra.mxu0 0.0
    %295 = vmatprep.subr.mxu0 0.0
    %296 = vmatpush2.msra.mxu0 0.0
    %297 = vmatprep.mubr.f32.mxu0 0.0
    %298 = vmatmul.mubr.f32.gmra.mxu0 %v70
    %v299 = vpop.f32.mrf.mxu0
    %v300 = vadd.f32 0.0, %v299
    %v301 = vpop.f32.mrf.mxu0
    %302 = vmatprep.mubr.f32.mxu0 0.0
    %303 = vmatmul.mubr.f32.gmra.mxu0 %v73
    %v304 = vpop.f32.mrf.mxu0
    %v305 = vadd.f32 0.0, %v304
    %v306 = vpop.f32.mrf.mxu0
    %307 = vdwg.mxu0
    %vm308 = vcmask 64512
    %v310 = vsel %vm308, %v142, 0
    %v313 = vsel %vm308, %v221, 0
    %315 = vmatprep.subr.mxu0 0.0
    %316 = vmatpush1.xpose.msra.mxu0 0.0
    %317 = vmatprep.subr.mxu0 0.0
    %318 = vmatpush1.xpose.msra.mxu0 0.0
    %319 = vmatprep.subr.mxu0 0.0
    %320 = vmatpush1.xpose.msra.mxu0 0.0
    %321 = vmatprep.subr.mxu0 0.0
    %322 = vmatpush1.xpose.msra.mxu0 0.0
    %323 = vmatprep.subr.mxu0 0.0
    %324 = vmatpush1.xpose.msra.mxu0 0.0
    %325 = vmatprep.subr.mxu0 0.0
    %326 = vmatpush1.xpose.msra.mxu0 0.0
    %327 = vmatprep.subr.mxu0 0.0
    %328 = vmatpush1.xpose.msra.mxu0 0.0
    %329 = vmatprep.subr.mxu0 0.0
    %330 = vmatpush1.xpose.msra.mxu0 0.0
    %331 = vmatprep.subr.mxu0 0.0
    %332 = vmatpush1.xpose.msra.mxu0 0.0
    %333 = vmatprep.subr.mxu0 0.0
    %334 = vmatpush1.xpose.msra.mxu0 0.0
    %335 = vmatprep.subr.mxu0 0.0
    %336 = vmatpush1.xpose.msra.mxu0 0.0
    %337 = vmatprep.subr.mxu0 0.0
    %338 = vmatpush1.xpose.msra.mxu0 0.0
    %339 = vmatprep.subr.mxu0 0.0
    %340 = vmatpush1.xpose.msra.mxu0 0.0
    %341 = vmatprep.subr.mxu0 0.0
    %342 = vmatpush1.xpose.msra.mxu0 0.0
    %343 = vmatprep.subr.mxu0 0.0
    %344 = vmatpush1.xpose.msra.mxu0 0.0
    %345 = vmatprep.subr.mxu0 0.0
    %346 = vmatpush1.xpose.msra.mxu0 %v313
    %347 = vmatprep.subr.mxu0 0.0
    %348 = vmatpush2.xpose.msra.mxu0 0.0
    %349 = vmatprep.subr.mxu0 0.0
    %350 = vmatpush2.xpose.msra.mxu0 0.0
    %351 = vmatprep.subr.mxu0 0.0
    %352 = vmatpush2.xpose.msra.mxu0 0.0
    %353 = vmatprep.subr.mxu0 0.0
    %354 = vmatpush2.xpose.msra.mxu0 0.0
    %355 = vmatprep.subr.mxu0 0.0
    %356 = vmatpush2.xpose.msra.mxu0 0.0
    %357 = vmatprep.subr.mxu0 0.0
    %358 = vmatpush2.xpose.msra.mxu0 0.0
    %359 = vmatprep.subr.mxu0 0.0
    %360 = vmatpush2.xpose.msra.mxu0 0.0
    %361 = vmatprep.subr.mxu0 0.0
    %362 = vmatpush2.xpose.msra.mxu0 0.0
    %363 = vmatprep.subr.mxu0 0.0
    %364 = vmatpush2.xpose.msra.mxu0 0.0
    %365 = vmatprep.subr.mxu0 0.0
    %366 = vmatpush2.xpose.msra.mxu0 0.0
    %367 = vmatprep.subr.mxu0 0.0
    %368 = vmatpush2.xpose.msra.mxu0 0.0
    %369 = vmatprep.subr.mxu0 0.0
    %370 = vmatpush2.xpose.msra.mxu0 0.0
    %371 = vmatprep.subr.mxu0 0.0
    %372 = vmatpush2.xpose.msra.mxu0 0.0
    %373 = vmatprep.subr.mxu0 0.0
    %374 = vmatpush2.xpose.msra.mxu0 0.0
    %375 = vmatprep.subr.mxu0 0.0
    %376 = vmatpush2.xpose.msra.mxu0 0.0
    %377 = vmatprep.subr.mxu0 0.0
    %378 = vmatpush2.xpose.msra.mxu0 0.0
    %379 = vmatprep.mubr.f32.mxu0 0.0
    %380 = vmatmul.mubr.f32.gmra.mxu0 %v310
    %v381 = vpop.f32.mrf.mxu0
    %v382 = vadd.f32 0.0, %v381
    %v383 = vpop.f32.mrf.mxu0
    %384 = vdwg.mxu0
    %v386 = vsel %vm308, %v147, 0
    %v389 = vsel %vm308, %v226, 0
    %391 = vmatprep.subr.mxu0 0.0
    %392 = vmatpush1.xpose.msra.mxu0 0.0
    %393 = vmatprep.subr.mxu0 0.0
    %394 = vmatpush1.xpose.msra.mxu0 0.0
    %395 = vmatprep.subr.mxu0 0.0
    %396 = vmatpush1.xpose.msra.mxu0 0.0
    %397 = vmatprep.subr.mxu0 0.0
    %398 = vmatpush1.xpose.msra.mxu0 0.0
    %399 = vmatprep.subr.mxu0 0.0
    %400 = vmatpush1.xpose.msra.mxu0 0.0
    %401 = vmatprep.subr.mxu0 0.0
    %402 = vmatpush1.xpose.msra.mxu0 0.0
    %403 = vmatprep.subr.mxu0 0.0
    %404 = vmatpush1.xpose.msra.mxu0 0.0
    %405 = vmatprep.subr.mxu0 0.0
    %406 = vmatpush1.xpose.msra.mxu0 0.0
    %407 = vmatprep.subr.mxu0 0.0
    %408 = vmatpush1.xpose.msra.mxu0 0.0
    %409 = vmatprep.subr.mxu0 0.0
    %410 = vmatpush1.xpose.msra.mxu0 0.0
    %411 = vmatprep.subr.mxu0 0.0
    %412 = vmatpush1.xpose.msra.mxu0 0.0
    %413 = vmatprep.subr.mxu0 0.0
    %414 = vmatpush1.xpose.msra.mxu0 0.0
    %415 = vmatprep.subr.mxu0 0.0
    %416 = vmatpush1.xpose.msra.mxu0 0.0
    %417 = vmatprep.subr.mxu0 0.0
    %418 = vmatpush1.xpose.msra.mxu0 0.0
    %419 = vmatprep.subr.mxu0 0.0
    %420 = vmatpush1.xpose.msra.mxu0 0.0
    %421 = vmatprep.subr.mxu0 0.0
    %422 = vmatpush1.xpose.msra.mxu0 %v389
    %423 = vmatprep.subr.mxu0 0.0
    %424 = vmatpush2.xpose.msra.mxu0 0.0
    %425 = vmatprep.subr.mxu0 0.0
    %426 = vmatpush2.xpose.msra.mxu0 0.0
    %427 = vmatprep.subr.mxu0 0.0
    %428 = vmatpush2.xpose.msra.mxu0 0.0
    %429 = vmatprep.subr.mxu0 0.0
    %430 = vmatpush2.xpose.msra.mxu0 0.0
    %431 = vmatprep.subr.mxu0 0.0
    %432 = vmatpush2.xpose.msra.mxu0 0.0
    %433 = vmatprep.subr.mxu0 0.0
    %434 = vmatpush2.xpose.msra.mxu0 0.0
    %435 = vmatprep.subr.mxu0 0.0
    %436 = vmatpush2.xpose.msra.mxu0 0.0
    %437 = vmatprep.subr.mxu0 0.0
    %438 = vmatpush2.xpose.msra.mxu0 0.0
    %439 = vmatprep.subr.mxu0 0.0
    %440 = vmatpush2.xpose.msra.mxu0 0.0
    %441 = vmatprep.subr.mxu0 0.0
    %442 = vmatpush2.xpose.msra.mxu0 0.0
    %443 = vmatprep.subr.mxu0 0.0
    %444 = vmatpush2.xpose.msra.mxu0 0.0
    %445 = vmatprep.subr.mxu0 0.0
    %446 = vmatpush2.xpose.msra.mxu0 0.0
    %447 = vmatprep.subr.mxu0 0.0
    %448 = vmatpush2.xpose.msra.mxu0 0.0
    %449 = vmatprep.subr.mxu0 0.0
    %450 = vmatpush2.xpose.msra.mxu0 0.0
    %451 = vmatprep.subr.mxu0 0.0
    %452 = vmatpush2.xpose.msra.mxu0 0.0
    %453 = vmatprep.subr.mxu0 0.0
    %454 = vmatpush2.xpose.msra.mxu0 0.0
    %455 = vmatprep.mubr.f32.mxu0 0.0
    %456 = vmatmul.mubr.f32.gmra.mxu0 %v386
    %v457 = vpop.f32.mrf.mxu0
    %v458 = vadd.f32 0.0, %v457
    %v459 = vpop.f32.mrf.mxu0
    %460 = vdwg.mxu0
    %v461 = vsel %vm308, %v382, -inf
    %462 = vmax.xlane.f32.xlu0 %v461
    %v463 = vpop.xlane.xlu0 %462
    %v464 = vsel %vm308, %v458, -inf
    %465 = vmax.xlane.f32.xlu0 %v464
    %v466 = vpop.xlane.xlu0 %465
    %v467 = vsub.f32 %v382, %v463
    %v468 = vsub.f32 %v458, %v466
    %v469 = vmul.f32 %v467, 1.442695
    %v470 = vpow.pop %v469
    %v471 = vmul.f32 %v468, 1.442695
    %v472 = vpow.pop %v471
    %v473 = vsel %vm308, %v470, 0.0
    %474 = vadd.xlane.f32.xlu0 %v473
    %v475 = vpop.xlane.xlu0 %474
    %v476 = vsel %vm308, %v472, 0.0
    %477 = vadd.xlane.f32.xlu0 %v476
    %v478 = vpop.xlane.xlu0 %477
    %v479 = vrcp.pop %v475
    %v480 = vrcp.pop %v478
    %v481 = vmul.f32 %v470, %v479
    %v482 = vmul.f32 %v472, %v480
    %v484 = vsel %vm308, %v481, 0
    %486 = vmatprep.subr.mxu0 0.0
    %487 = vmatpush1.msra.mxu0 0.0
    %488 = vmatprep.subr.mxu0 0.0
    %489 = vmatpush1.msra.mxu0 0.0
    %490 = vmatprep.subr.mxu0 0.0
    %491 = vmatpush1.msra.mxu0 0.0
    %492 = vmatprep.subr.mxu0 0.0
    %493 = vmatpush1.msra.mxu0 0.0
    %494 = vmatprep.subr.mxu0 0.0
    %495 = vmatpush1.msra.mxu0 0.0
    %496 = vmatprep.subr.mxu0 0.0
    %497 = vmatpush1.msra.mxu0 0.0
    %498 = vmatprep.subr.mxu0 0.0
    %499 = vmatpush1.msra.mxu0 0.0
    %500 = vmatprep.subr.mxu0 0.0
    %501 = vmatpush1.msra.mxu0 0.0
    %502 = vmatprep.subr.mxu0 0.0
    %503 = vmatpush1.msra.mxu0 0.0
    %504 = vmatprep.subr.mxu0 0.0
    %505 = vmatpush1.msra.mxu0 0.0
    %506 = vmatprep.subr.mxu0 0.0
    %507 = vmatpush1.msra.mxu0 0.0
    %508 = vmatprep.subr.mxu0 0.0
    %509 = vmatpush1.msra.mxu0 0.0
    %510 = vmatprep.subr.mxu0 0.0
    %511 = vmatpush1.msra.mxu0 0.0
    %512 = vmatprep.subr.mxu0 0.0
    %513 = vmatpush1.msra.mxu0 0.0
    %514 = vmatprep.subr.mxu0 0.0
    %515 = vmatpush1.msra.mxu0 0.0
    %516 = vmatprep.subr.mxu0 0.0
    %517 = vmatpush1.msra.mxu0 %v300
    %518 = vmatprep.subr.mxu0 0.0
    %519 = vmatpush2.msra.mxu0 0.0
    %520 = vmatprep.subr.mxu0 0.0
    %521 = vmatpush2.msra.mxu0 0.0
    %522 = vmatprep.subr.mxu0 0.0
    %523 = vmatpush2.msra.mxu0 0.0
    %524 = vmatprep.subr.mxu0 0.0
    %525 = vmatpush2.msra.mxu0 0.0
    %526 = vmatprep.subr.mxu0 0.0
    %527 = vmatpush2.msra.mxu0 0.0
    %528 = vmatprep.subr.mxu0 0.0
    %529 = vmatpush2.msra.mxu0 0.0
    %530 = vmatprep.subr.mxu0 0.0
    %531 = vmatpush2.msra.mxu0 0.0
    %532 = vmatprep.subr.mxu0 0.0
    %533 = vmatpush2.msra.mxu0 0.0
    %534 = vmatprep.subr.mxu0 0.0
    %535 = vmatpush2.msra.mxu0 0.0
    %536 = vmatprep.subr.mxu0 0.0
    %537 = vmatpush2.msra.mxu0 0.0
    %538 = vmatprep.subr.mxu0 0.0
    %539 = vmatpush2.msra.mxu0 0.0
    %540 = vmatprep.subr.mxu0 0.0
    %541 = vmatpush2.msra.mxu0 0.0
    %542 = vmatprep.subr.mxu0 0.0
    %543 = vmatpush2.msra.mxu0 0.0
    %544 = vmatprep.subr.mxu0 0.0
    %545 = vmatpush2.msra.mxu0 0.0
    %546 = vmatprep.subr.mxu0 0.0
    %547 = vmatpush2.msra.mxu0 0.0
    %548 = vmatprep.subr.mxu0 0.0
    %549 = vmatpush2.msra.mxu0 0.0
    %550 = vmatprep.mubr.f32.mxu0 0.0
    %551 = vmatmul.mubr.f32.gmra.mxu0 %v484
    %v552 = vpop.f32.mrf.mxu0
    %v553 = vadd.f32 0.0, %v552
    %v554 = vpop.f32.mrf.mxu0
    %555 = vdwg.mxu0
    %v557 = vsel %vm308, %v482, 0
    %559 = vmatprep.subr.mxu0 0.0
    %560 = vmatpush1.msra.mxu0 0.0
    %561 = vmatprep.subr.mxu0 0.0
    %562 = vmatpush1.msra.mxu0 0.0
    %563 = vmatprep.subr.mxu0 0.0
    %564 = vmatpush1.msra.mxu0 0.0
    %565 = vmatprep.subr.mxu0 0.0
    %566 = vmatpush1.msra.mxu0 0.0
    %567 = vmatprep.subr.mxu0 0.0
    %568 = vmatpush1.msra.mxu0 0.0
    %569 = vmatprep.subr.mxu0 0.0
    %570 = vmatpush1.msra.mxu0 0.0
    %571 = vmatprep.subr.mxu0 0.0
    %572 = vmatpush1.msra.mxu0 0.0
    %573 = vmatprep.subr.mxu0 0.0
    %574 = vmatpush1.msra.mxu0 0.0
    %575 = vmatprep.subr.mxu0 0.0
    %576 = vmatpush1.msra.mxu0 0.0
    %577 = vmatprep.subr.mxu0 0.0
    %578 = vmatpush1.msra.mxu0 0.0
    %579 = vmatprep.subr.mxu0 0.0
    %580 = vmatpush1.msra.mxu0 0.0
    %581 = vmatprep.subr.mxu0 0.0
    %582 = vmatpush1.msra.mxu0 0.0
    %583 = vmatprep.subr.mxu0 0.0
    %584 = vmatpush1.msra.mxu0 0.0
    %585 = vmatprep.subr.mxu0 0.0
    %586 = vmatpush1.msra.mxu0 0.0
    %587 = vmatprep.subr.mxu0 0.0
    %588 = vmatpush1.msra.mxu0 0.0
    %589 = vmatprep.subr.mxu0 0.0
    %590 = vmatpush1.msra.mxu0 %v305
    %591 = vmatprep.subr.mxu0 0.0
    %592 = vmatpush2.msra.mxu0 0.0
    %593 = vmatprep.subr.mxu0 0.0
    %594 = vmatpush2.msra.mxu0 0.0
    %595 = vmatprep.subr.mxu0 0.0
    %596 = vmatpush2.msra.mxu0 0.0
    %597 = vmatprep.subr.mxu0 0.0
    %598 = vmatpush2.msra.mxu0 0.0
    %599 = vmatprep.subr.mxu0 0.0
    %600 = vmatpush2.msra.mxu0 0.0
    %601 = vmatprep.subr.mxu0 0.0
    %602 = vmatpush2.msra.mxu0 0.0
    %603 = vmatprep.subr.mxu0 0.0
    %604 = vmatpush2.msra.mxu0 0.0
    %605 = vmatprep.subr.mxu0 0.0
    %606 = vmatpush2.msra.mxu0 0.0
    %607 = vmatprep.subr.mxu0 0.0
    %608 = vmatpush2.msra.mxu0 0.0
    %609 = vmatprep.subr.mxu0 0.0
    %610 = vmatpush2.msra.mxu0 0.0
    %611 = vmatprep.subr.mxu0 0.0
    %612 = vmatpush2.msra.mxu0 0.0
    %613 = vmatprep.subr.mxu0 0.0
    %614 = vmatpush2.msra.mxu0 0.0
    %615 = vmatprep.subr.mxu0 0.0
    %616 = vmatpush2.msra.mxu0 0.0
    %617 = vmatprep.subr.mxu0 0.0
    %618 = vmatpush2.msra.mxu0 0.0
    %619 = vmatprep.subr.mxu0 0.0
    %620 = vmatpush2.msra.mxu0 0.0
    %621 = vmatprep.subr.mxu0 0.0
    %622 = vmatpush2.msra.mxu0 0.0
    %623 = vmatprep.mubr.f32.mxu0 0.0
    %624 = vmatmul.mubr.f32.gmra.mxu0 %v557
    %v625 = vpop.f32.mrf.mxu0
    %v626 = vadd.f32 0.0, %v625
    %v627 = vpop.f32.mrf.mxu0
    %628 = vdwg.mxu0
    %629 = vrot.lane.b32.xlu0 %v142, 120
    %v630 = vpop.permute.xlu0 %629
    %631 = vrot.lane.b32.xlu0 %v221, 120
    %v632 = vpop.permute.xlu0 %631
    %v633 = vsel %vm308, %v630, 0
    %v635 = vsel %vm308, %v632, 0
    %637 = vmatprep.subr.mxu0 0.0
    %638 = vmatpush1.xpose.msra.mxu0 0.0
    %639 = vmatprep.subr.mxu0 0.0
    %640 = vmatpush1.xpose.msra.mxu0 0.0
    %641 = vmatprep.subr.mxu0 0.0
    %642 = vmatpush1.xpose.msra.mxu0 0.0
    %643 = vmatprep.subr.mxu0 0.0
    %644 = vmatpush1.xpose.msra.mxu0 0.0
    %645 = vmatprep.subr.mxu0 0.0
    %646 = vmatpush1.xpose.msra.mxu0 0.0
    %647 = vmatprep.subr.mxu0 0.0
    %648 = vmatpush1.xpose.msra.mxu0 0.0
    %649 = vmatprep.subr.mxu0 0.0
    %650 = vmatpush1.xpose.msra.mxu0 0.0
    %651 = vmatprep.subr.mxu0 0.0
    %652 = vmatpush1.xpose.msra.mxu0 0.0
    %653 = vmatprep.subr.mxu0 0.0
    %654 = vmatpush1.xpose.msra.mxu0 0.0
    %655 = vmatprep.subr.mxu0 0.0
    %656 = vmatpush1.xpose.msra.mxu0 0.0
    %657 = vmatprep.subr.mxu0 0.0
    %658 = vmatpush1.xpose.msra.mxu0 0.0
    %659 = vmatprep.subr.mxu0 0.0
    %660 = vmatpush1.xpose.msra.mxu0 0.0
    %661 = vmatprep.subr.mxu0 0.0
    %662 = vmatpush1.xpose.msra.mxu0 0.0
    %663 = vmatprep.subr.mxu0 0.0
    %664 = vmatpush1.xpose.msra.mxu0 0.0
    %665 = vmatprep.subr.mxu0 0.0
    %666 = vmatpush1.xpose.msra.mxu0 0.0
    %667 = vmatprep.subr.mxu0 0.0
    %668 = vmatpush1.xpose.msra.mxu0 %v635
    %669 = vmatprep.subr.mxu0 0.0
    %670 = vmatpush2.xpose.msra.mxu0 0.0
    %671 = vmatprep.subr.mxu0 0.0
    %672 = vmatpush2.xpose.msra.mxu0 0.0
    %673 = vmatprep.subr.mxu0 0.0
    %674 = vmatpush2.xpose.msra.mxu0 0.0
    %675 = vmatprep.subr.mxu0 0.0
    %676 = vmatpush2.xpose.msra.mxu0 0.0
    %677 = vmatprep.subr.mxu0 0.0
    %678 = vmatpush2.xpose.msra.mxu0 0.0
    %679 = vmatprep.subr.mxu0 0.0
    %680 = vmatpush2.xpose.msra.mxu0 0.0
    %681 = vmatprep.subr.mxu0 0.0
    %682 = vmatpush2.xpose.msra.mxu0 0.0
    %683 = vmatprep.subr.mxu0 0.0
    %684 = vmatpush2.xpose.msra.mxu0 0.0
    %685 = vmatprep.subr.mxu0 0.0
    %686 = vmatpush2.xpose.msra.mxu0 0.0
    %687 = vmatprep.subr.mxu0 0.0
    %688 = vmatpush2.xpose.msra.mxu0 0.0
    %689 = vmatprep.subr.mxu0 0.0
    %690 = vmatpush2.xpose.msra.mxu0 0.0
    %691 = vmatprep.subr.mxu0 0.0
    %692 = vmatpush2.xpose.msra.mxu0 0.0
    %693 = vmatprep.subr.mxu0 0.0
    %694 = vmatpush2.xpose.msra.mxu0 0.0
    %695 = vmatprep.subr.mxu0 0.0
    %696 = vmatpush2.xpose.msra.mxu0 0.0
    %697 = vmatprep.subr.mxu0 0.0
    %698 = vmatpush2.xpose.msra.mxu0 0.0
    %699 = vmatprep.subr.mxu0 0.0
    %700 = vmatpush2.xpose.msra.mxu0 0.0
    %701 = vmatprep.mubr.f32.mxu0 0.0
    %702 = vmatmul.mubr.f32.gmra.mxu0 %v633
    %v703 = vpop.f32.mrf.mxu0
    %v704 = vadd.f32 0.0, %v703
    %v705 = vpop.f32.mrf.mxu0
    %706 = vdwg.mxu0
    %707 = vrot.lane.b32.xlu0 %v147, 120
    %v708 = vpop.permute.xlu0 %707
    %709 = vrot.lane.b32.xlu0 %v226, 120
    %v710 = vpop.permute.xlu0 %709
    %v711 = vsel %vm308, %v708, 0
    %v713 = vsel %vm308, %v710, 0
    %715 = vmatprep.subr.mxu0 0.0
    %716 = vmatpush1.xpose.msra.mxu0 0.0
    %717 = vmatprep.subr.mxu0 0.0
    %718 = vmatpush1.xpose.msra.mxu0 0.0
    %719 = vmatprep.subr.mxu0 0.0
    %720 = vmatpush1.xpose.msra.mxu0 0.0
    %721 = vmatprep.subr.mxu0 0.0
    %722 = vmatpush1.xpose.msra.mxu0 0.0
    %723 = vmatprep.subr.mxu0 0.0
    %724 = vmatpush1.xpose.msra.mxu0 0.0
    %725 = vmatprep.subr.mxu0 0.0
    %726 = vmatpush1.xpose.msra.mxu0 0.0
    %727 = vmatprep.subr.mxu0 0.0
    %728 = vmatpush1.xpose.msra.mxu0 0.0
    %729 = vmatprep.subr.mxu0 0.0
    %730 = vmatpush1.xpose.msra.mxu0 0.0
    %731 = vmatprep.subr.mxu0 0.0
    %732 = vmatpush1.xpose.msra.mxu0 0.0
    %733 = vmatprep.subr.mxu0 0.0
    %734 = vmatpush1.xpose.msra.mxu0 0.0
    %735 = vmatprep.subr.mxu0 0.0
    %736 = vmatpush1.xpose.msra.mxu0 0.0
    %737 = vmatprep.subr.mxu0 0.0
    %738 = vmatpush1.xpose.msra.mxu0 0.0
    %739 = vmatprep.subr.mxu0 0.0
    %740 = vmatpush1.xpose.msra.mxu0 0.0
    %741 = vmatprep.subr.mxu0 0.0
    %742 = vmatpush1.xpose.msra.mxu0 0.0
    %743 = vmatprep.subr.mxu0 0.0
    %744 = vmatpush1.xpose.msra.mxu0 0.0
    %745 = vmatprep.subr.mxu0 0.0
    %746 = vmatpush1.xpose.msra.mxu0 %v713
    %747 = vmatprep.subr.mxu0 0.0
    %748 = vmatpush2.xpose.msra.mxu0 0.0
    %749 = vmatprep.subr.mxu0 0.0
    %750 = vmatpush2.xpose.msra.mxu0 0.0
    %751 = vmatprep.subr.mxu0 0.0
    %752 = vmatpush2.xpose.msra.mxu0 0.0
    %753 = vmatprep.subr.mxu0 0.0
    %754 = vmatpush2.xpose.msra.mxu0 0.0
    %755 = vmatprep.subr.mxu0 0.0
    %756 = vmatpush2.xpose.msra.mxu0 0.0
    %757 = vmatprep.subr.mxu0 0.0
    %758 = vmatpush2.xpose.msra.mxu0 0.0
    %759 = vmatprep.subr.mxu0 0.0
    %760 = vmatpush2.xpose.msra.mxu0 0.0
    %761 = vmatprep.subr.mxu0 0.0
    %762 = vmatpush2.xpose.msra.mxu0 0.0
    %763 = vmatprep.subr.mxu0 0.0
    %764 = vmatpush2.xpose.msra.mxu0 0.0
    %765 = vmatprep.subr.mxu0 0.0
    %766 = vmatpush2.xpose.msra.mxu0 0.0
    %767 = vmatprep.subr.mxu0 0.0
    %768 = vmatpush2.xpose.msra.mxu0 0.0
    %769 = vmatprep.subr.mxu0 0.0
    %770 = vmatpush2.xpose.msra.mxu0 0.0
    %771 = vmatprep.subr.mxu0 0.0
    %772 = vmatpush2.xpose.msra.mxu0 0.0
    %773 = vmatprep.subr.mxu0 0.0
    %774 = vmatpush2.xpose.msra.mxu0 0.0
    %775 = vmatprep.subr.mxu0 0.0
    %776 = vmatpush2.xpose.msra.mxu0 0.0
    %777 = vmatprep.subr.mxu0 0.0
    %778 = vmatpush2.xpose.msra.mxu0 0.0
    %779 = vmatprep.mubr.f32.mxu0 0.0
    %780 = vmatmul.mubr.f32.gmra.mxu0 %v711
    %v781 = vpop.f32.mrf.mxu0
    %v782 = vadd.f32 0.0, %v781
    %v783 = vpop.f32.mrf.mxu0
    %784 = vdwg.mxu0
    %v785 = vsel %vm308, %v704, -inf
    %786 = vmax.xlane.f32.xlu0 %v785
    %v787 = vpop.xlane.xlu0 %786
    %v788 = vsel %vm308, %v782, -inf
    %789 = vmax.xlane.f32.xlu0 %v788
    %v790 = vpop.xlane.xlu0 %789
    %v791 = vsub.f32 %v704, %v787
    %v792 = vsub.f32 %v782, %v790
    %v793 = vmul.f32 %v791, 1.442695
    %v794 = vpow.pop %v793
    %v795 = vmul.f32 %v792, 1.442695
    %v796 = vpow.pop %v795
    %v797 = vsel %vm308, %v794, 0.0
    %798 = vadd.xlane.f32.xlu0 %v797
    %v799 = vpop.xlane.xlu0 %798
    %v800 = vsel %vm308, %v796, 0.0
    %801 = vadd.xlane.f32.xlu0 %v800
    %v802 = vpop.xlane.xlu0 %801
    %v803 = vrcp.pop %v799
    %v804 = vrcp.pop %v802
    %v805 = vmul.f32 %v794, %v803
    %v806 = vmul.f32 %v796, %v804
    %808 = vrot.lane.b32.xlu0 %v300, 120
    %v809 = vpop.permute.xlu0 %808
    %v812 = vsel %vm308, %v805, 0
    %814 = vmatprep.subr.mxu0 0.0
    %815 = vmatpush1.msra.mxu0 0.0
    %816 = vmatprep.subr.mxu0 0.0
    %817 = vmatpush1.msra.mxu0 0.0
    %818 = vmatprep.subr.mxu0 0.0
    %819 = vmatpush1.msra.mxu0 0.0
    %820 = vmatprep.subr.mxu0 0.0
    %821 = vmatpush1.msra.mxu0 0.0
    %822 = vmatprep.subr.mxu0 0.0
    %823 = vmatpush1.msra.mxu0 0.0
    %824 = vmatprep.subr.mxu0 0.0
    %825 = vmatpush1.msra.mxu0 0.0
    %826 = vmatprep.subr.mxu0 0.0
    %827 = vmatpush1.msra.mxu0 0.0
    %828 = vmatprep.subr.mxu0 0.0
    %829 = vmatpush1.msra.mxu0 0.0
    %830 = vmatprep.subr.mxu0 0.0
    %831 = vmatpush1.msra.mxu0 0.0
    %832 = vmatprep.subr.mxu0 0.0
    %833 = vmatpush1.msra.mxu0 0.0
    %834 = vmatprep.subr.mxu0 0.0
    %835 = vmatpush1.msra.mxu0 0.0
    %836 = vmatprep.subr.mxu0 0.0
    %837 = vmatpush1.msra.mxu0 0.0
    %838 = vmatprep.subr.mxu0 0.0
    %839 = vmatpush1.msra.mxu0 0.0
    %840 = vmatprep.subr.mxu0 0.0
    %841 = vmatpush1.msra.mxu0 0.0
    %842 = vmatprep.subr.mxu0 0.0
    %843 = vmatpush1.msra.mxu0 0.0
    %844 = vmatprep.subr.mxu0 0.0
    %845 = vmatpush1.msra.mxu0 %v809
    %846 = vmatprep.subr.mxu0 0.0
    %847 = vmatpush2.msra.mxu0 0.0
    %848 = vmatprep.subr.mxu0 0.0
    %849 = vmatpush2.msra.mxu0 0.0
    %850 = vmatprep.subr.mxu0 0.0
    %851 = vmatpush2.msra.mxu0 0.0
    %852 = vmatprep.subr.mxu0 0.0
    %853 = vmatpush2.msra.mxu0 0.0
    %854 = vmatprep.subr.mxu0 0.0
    %855 = vmatpush2.msra.mxu0 0.0
    %856 = vmatprep.subr.mxu0 0.0
    %857 = vmatpush2.msra.mxu0 0.0
    %858 = vmatprep.subr.mxu0 0.0
    %859 = vmatpush2.msra.mxu0 0.0
    %860 = vmatprep.subr.mxu0 0.0
    %861 = vmatpush2.msra.mxu0 0.0
    %862 = vmatprep.subr.mxu0 0.0
    %863 = vmatpush2.msra.mxu0 0.0
    %864 = vmatprep.subr.mxu0 0.0
    %865 = vmatpush2.msra.mxu0 0.0
    %866 = vmatprep.subr.mxu0 0.0
    %867 = vmatpush2.msra.mxu0 0.0
    %868 = vmatprep.subr.mxu0 0.0
    %869 = vmatpush2.msra.mxu0 0.0
    %870 = vmatprep.subr.mxu0 0.0
    %871 = vmatpush2.msra.mxu0 0.0
    %872 = vmatprep.subr.mxu0 0.0
    %873 = vmatpush2.msra.mxu0 0.0
    %874 = vmatprep.subr.mxu0 0.0
    %875 = vmatpush2.msra.mxu0 0.0
    %876 = vmatprep.subr.mxu0 0.0
    %877 = vmatpush2.msra.mxu0 0.0
    %878 = vmatprep.mubr.f32.mxu0 0.0
    %879 = vmatmul.mubr.f32.gmra.mxu0 %v812
    %v880 = vpop.f32.mrf.mxu0
    %v881 = vadd.f32 0.0, %v880
    %v882 = vpop.f32.mrf.mxu0
    %883 = vdwg.mxu0
    %885 = vrot.lane.b32.xlu0 %v305, 120
    %v886 = vpop.permute.xlu0 %885
    %v889 = vsel %vm308, %v806, 0
    %891 = vmatprep.subr.mxu0 0.0
    %892 = vmatpush1.msra.mxu0 0.0
    %893 = vmatprep.subr.mxu0 0.0
    %894 = vmatpush1.msra.mxu0 0.0
    %895 = vmatprep.subr.mxu0 0.0
    %896 = vmatpush1.msra.mxu0 0.0
    %897 = vmatprep.subr.mxu0 0.0
    %898 = vmatpush1.msra.mxu0 0.0
    %899 = vmatprep.subr.mxu0 0.0
    %900 = vmatpush1.msra.mxu0 0.0
    %901 = vmatprep.subr.mxu0 0.0
    %902 = vmatpush1.msra.mxu0 0.0
    %903 = vmatprep.subr.mxu0 0.0
    %904 = vmatpush1.msra.mxu0 0.0
    %905 = vmatprep.subr.mxu0 0.0
    %906 = vmatpush1.msra.mxu0 0.0
    %907 = vmatprep.subr.mxu0 0.0
    %908 = vmatpush1.msra.mxu0 0.0
    %909 = vmatprep.subr.mxu0 0.0
    %910 = vmatpush1.msra.mxu0 0.0
    %911 = vmatprep.subr.mxu0 0.0
    %912 = vmatpush1.msra.mxu0 0.0
    %913 = vmatprep.subr.mxu0 0.0
    %914 = vmatpush1.msra.mxu0 0.0
    %915 = vmatprep.subr.mxu0 0.0
    %916 = vmatpush1.msra.mxu0 0.0
    %917 = vmatprep.subr.mxu0 0.0
    %918 = vmatpush1.msra.mxu0 0.0
    %919 = vmatprep.subr.mxu0 0.0
    %920 = vmatpush1.msra.mxu0 0.0
    %921 = vmatprep.subr.mxu0 0.0
    %922 = vmatpush1.msra.mxu0 %v886
    %923 = vmatprep.subr.mxu0 0.0
    %924 = vmatpush2.msra.mxu0 0.0
    %925 = vmatprep.subr.mxu0 0.0
    %926 = vmatpush2.msra.mxu0 0.0
    %927 = vmatprep.subr.mxu0 0.0
    %928 = vmatpush2.msra.mxu0 0.0
    %929 = vmatprep.subr.mxu0 0.0
    %930 = vmatpush2.msra.mxu0 0.0
    %931 = vmatprep.subr.mxu0 0.0
    %932 = vmatpush2.msra.mxu0 0.0
    %933 = vmatprep.subr.mxu0 0.0
    %934 = vmatpush2.msra.mxu0 0.0
    %935 = vmatprep.subr.mxu0 0.0
    %936 = vmatpush2.msra.mxu0 0.0
    %937 = vmatprep.subr.mxu0 0.0
    %938 = vmatpush2.msra.mxu0 0.0
    %939 = vmatprep.subr.mxu0 0.0
    %940 = vmatpush2.msra.mxu0 0.0
    %941 = vmatprep.subr.mxu0 0.0
    %942 = vmatpush2.msra.mxu0 0.0
    %943 = vmatprep.subr.mxu0 0.0
    %944 = vmatpush2.msra.mxu0 0.0
    %945 = vmatprep.subr.mxu0 0.0
    %946 = vmatpush2.msra.mxu0 0.0
    %947 = vmatprep.subr.mxu0 0.0
    %948 = vmatpush2.msra.mxu0 0.0
    %949 = vmatprep.subr.mxu0 0.0
    %950 = vmatpush2.msra.mxu0 0.0
    %951 = vmatprep.subr.mxu0 0.0
    %952 = vmatpush2.msra.mxu0 0.0
    %953 = vmatprep.subr.mxu0 0.0
    %954 = vmatpush2.msra.mxu0 0.0
    %955 = vmatprep.mubr.f32.mxu0 0.0
    %956 = vmatmul.mubr.f32.gmra.mxu0 %v889
    %v957 = vpop.f32.mrf.mxu0
    %v958 = vadd.f32 0.0, %v957
    %v959 = vpop.f32.mrf.mxu0
    %960 = vdwg.mxu0
    %961 = vrot.lane.b32.xlu0 %v142, 112
    %v962 = vpop.permute.xlu0 %961
    %963 = vrot.lane.b32.xlu0 %v221, 112
    %v964 = vpop.permute.xlu0 %963
    %v965 = vsel %vm308, %v962, 0
    %v967 = vsel %vm308, %v964, 0
    %969 = vmatprep.subr.mxu0 0.0
    %970 = vmatpush1.xpose.msra.mxu0 0.0
    %971 = vmatprep.subr.mxu0 0.0
    %972 = vmatpush1.xpose.msra.mxu0 0.0
    %973 = vmatprep.subr.mxu0 0.0
    %974 = vmatpush1.xpose.msra.mxu0 0.0
    %975 = vmatprep.subr.mxu0 0.0
    %976 = vmatpush1.xpose.msra.mxu0 0.0
    %977 = vmatprep.subr.mxu0 0.0
    %978 = vmatpush1.xpose.msra.mxu0 0.0
    %979 = vmatprep.subr.mxu0 0.0
    %980 = vmatpush1.xpose.msra.mxu0 0.0
    %981 = vmatprep.subr.mxu0 0.0
    %982 = vmatpush1.xpose.msra.mxu0 0.0
    %983 = vmatprep.subr.mxu0 0.0
    %984 = vmatpush1.xpose.msra.mxu0 0.0
    %985 = vmatprep.subr.mxu0 0.0
    %986 = vmatpush1.xpose.msra.mxu0 0.0
    %987 = vmatprep.subr.mxu0 0.0
    %988 = vmatpush1.xpose.msra.mxu0 0.0
    %989 = vmatprep.subr.mxu0 0.0
    %990 = vmatpush1.xpose.msra.mxu0 0.0
    %991 = vmatprep.subr.mxu0 0.0
    %992 = vmatpush1.xpose.msra.mxu0 0.0
    %993 = vmatprep.subr.mxu0 0.0
    %994 = vmatpush1.xpose.msra.mxu0 0.0
    %995 = vmatprep.subr.mxu0 0.0
    %996 = vmatpush1.xpose.msra.mxu0 0.0
    %997 = vmatprep.subr.mxu0 0.0
    %998 = vmatpush1.xpose.msra.mxu0 0.0
    %999 = vmatprep.subr.mxu0 0.0
    %1000 = vmatpush1.xpose.msra.mxu0 %v967
    %1001 = vmatprep.subr.mxu0 0.0
    %1002 = vmatpush2.xpose.msra.mxu0 0.0
    %1003 = vmatprep.subr.mxu0 0.0
    %1004 = vmatpush2.xpose.msra.mxu0 0.0
    %1005 = vmatprep.subr.mxu0 0.0
    %1006 = vmatpush2.xpose.msra.mxu0 0.0
    %1007 = vmatprep.subr.mxu0 0.0
    %1008 = vmatpush2.xpose.msra.mxu0 0.0
    %1009 = vmatprep.subr.mxu0 0.0
    %1010 = vmatpush2.xpose.msra.mxu0 0.0
    %1011 = vmatprep.subr.mxu0 0.0
    %1012 = vmatpush2.xpose.msra.mxu0 0.0
    %1013 = vmatprep.subr.mxu0 0.0
    %1014 = vmatpush2.xpose.msra.mxu0 0.0
    %1015 = vmatprep.subr.mxu0 0.0
    %1016 = vmatpush2.xpose.msra.mxu0 0.0
    %1017 = vmatprep.subr.mxu0 0.0
    %1018 = vmatpush2.xpose.msra.mxu0 0.0
    %1019 = vmatprep.subr.mxu0 0.0
    %1020 = vmatpush2.xpose.msra.mxu0 0.0
    %1021 = vmatprep.subr.mxu0 0.0
    %1022 = vmatpush2.xpose.msra.mxu0 0.0
    %1023 = vmatprep.subr.mxu0 0.0
    %1024 = vmatpush2.xpose.msra.mxu0 0.0
    %1025 = vmatprep.subr.mxu0 0.0
    %1026 = vmatpush2.xpose.msra.mxu0 0.0
    %1027 = vmatprep.subr.mxu0 0.0
    %1028 = vmatpush2.xpose.msra.mxu0 0.0
    %1029 = vmatprep.subr.mxu0 0.0
    %1030 = vmatpush2.xpose.msra.mxu0 0.0
    %1031 = vmatprep.subr.mxu0 0.0
    %1032 = vmatpush2.xpose.msra.mxu0 0.0
    %1033 = vmatprep.mubr.f32.mxu0 0.0
    %1034 = vmatmul.mubr.f32.gmra.mxu0 %v965
    %v1035 = vpop.f32.mrf.mxu0
    %v1036 = vadd.f32 0.0, %v1035
    %v1037 = vpop.f32.mrf.mxu0
    %1038 = vdwg.mxu0
    %1039 = vrot.lane.b32.xlu0 %v147, 112
    %v1040 = vpop.permute.xlu0 %1039
    %1041 = vrot.lane.b32.xlu0 %v226, 112
    %v1042 = vpop.permute.xlu0 %1041
    %v1043 = vsel %vm308, %v1040, 0
    %v1045 = vsel %vm308, %v1042, 0
    %1047 = vmatprep.subr.mxu0 0.0
    %1048 = vmatpush1.xpose.msra.mxu0 0.0
    %1049 = vmatprep.subr.mxu0 0.0
    %1050 = vmatpush1.xpose.msra.mxu0 0.0
    %1051 = vmatprep.subr.mxu0 0.0
    %1052 = vmatpush1.xpose.msra.mxu0 0.0
    %1053 = vmatprep.subr.mxu0 0.0
    %1054 = vmatpush1.xpose.msra.mxu0 0.0
    %1055 = vmatprep.subr.mxu0 0.0
    %1056 = vmatpush1.xpose.msra.mxu0 0.0
    %1057 = vmatprep.subr.mxu0 0.0
    %1058 = vmatpush1.xpose.msra.mxu0 0.0
    %1059 = vmatprep.subr.mxu0 0.0
    %1060 = vmatpush1.xpose.msra.mxu0 0.0
    %1061 = vmatprep.subr.mxu0 0.0
    %1062 = vmatpush1.xpose.msra.mxu0 0.0
    %1063 = vmatprep.subr.mxu0 0.0
    %1064 = vmatpush1.xpose.msra.mxu0 0.0
    %1065 = vmatprep.subr.mxu0 0.0
    %1066 = vmatpush1.xpose.msra.mxu0 0.0
    %1067 = vmatprep.subr.mxu0 0.0
    %1068 = vmatpush1.xpose.msra.mxu0 0.0
    %1069 = vmatprep.subr.mxu0 0.0
    %1070 = vmatpush1.xpose.msra.mxu0 0.0
    %1071 = vmatprep.subr.mxu0 0.0
    %1072 = vmatpush1.xpose.msra.mxu0 0.0
    %1073 = vmatprep.subr.mxu0 0.0
    %1074 = vmatpush1.xpose.msra.mxu0 0.0
    %1075 = vmatprep.subr.mxu0 0.0
    %1076 = vmatpush1.xpose.msra.mxu0 0.0
    %1077 = vmatprep.subr.mxu0 0.0
    %1078 = vmatpush1.xpose.msra.mxu0 %v1045
    %1079 = vmatprep.subr.mxu0 0.0
    %1080 = vmatpush2.xpose.msra.mxu0 0.0
    %1081 = vmatprep.subr.mxu0 0.0
    %1082 = vmatpush2.xpose.msra.mxu0 0.0
    %1083 = vmatprep.subr.mxu0 0.0
    %1084 = vmatpush2.xpose.msra.mxu0 0.0
    %1085 = vmatprep.subr.mxu0 0.0
    %1086 = vmatpush2.xpose.msra.mxu0 0.0
    %1087 = vmatprep.subr.mxu0 0.0
    %1088 = vmatpush2.xpose.msra.mxu0 0.0
    %1089 = vmatprep.subr.mxu0 0.0
    %1090 = vmatpush2.xpose.msra.mxu0 0.0
    %1091 = vmatprep.subr.mxu0 0.0
    %1092 = vmatpush2.xpose.msra.mxu0 0.0
    %1093 = vmatprep.subr.mxu0 0.0
    %1094 = vmatpush2.xpose.msra.mxu0 0.0
    %1095 = vmatprep.subr.mxu0 0.0
    %1096 = vmatpush2.xpose.msra.mxu0 0.0
    %1097 = vmatprep.subr.mxu0 0.0
    %1098 = vmatpush2.xpose.msra.mxu0 0.0
    %1099 = vmatprep.subr.mxu0 0.0
    %1100 = vmatpush2.xpose.msra.mxu0 0.0
    %1101 = vmatprep.subr.mxu0 0.0
    %1102 = vmatpush2.xpose.msra.mxu0 0.0
    %1103 = vmatprep.subr.mxu0 0.0
    %1104 = vmatpush2.xpose.msra.mxu0 0.0
    %1105 = vmatprep.subr.mxu0 0.0
    %1106 = vmatpush2.xpose.msra.mxu0 0.0
    %1107 = vmatprep.subr.mxu0 0.0
    %1108 = vmatpush2.xpose.msra.mxu0 0.0
    %1109 = vmatprep.subr.mxu0 0.0
    %1110 = vmatpush2.xpose.msra.mxu0 0.0
    %1111 = vmatprep.mubr.f32.mxu0 0.0
    %1112 = vmatmul.mubr.f32.gmra.mxu0 %v1043
    %v1113 = vpop.f32.mrf.mxu0
    %v1114 = vadd.f32 0.0, %v1113
    %v1115 = vpop.f32.mrf.mxu0
    %1116 = vdwg.mxu0
    %v1117 = vsel %vm308, %v1036, -inf
    %1118 = vmax.xlane.f32.xlu0 %v1117
    %v1119 = vpop.xlane.xlu0 %1118
    %v1120 = vsel %vm308, %v1114, -inf
    %1121 = vmax.xlane.f32.xlu0 %v1120
    %v1122 = vpop.xlane.xlu0 %1121
    %v1123 = vsub.f32 %v1036, %v1119
    %v1124 = vsub.f32 %v1114, %v1122
    %v1125 = vmul.f32 %v1123, 1.442695
    %v1126 = vpow.pop %v1125
    %v1127 = vmul.f32 %v1124, 1.442695
    %v1128 = vpow.pop %v1127
    %v1129 = vsel %vm308, %v1126, 0.0
    %1130 = vadd.xlane.f32.xlu0 %v1129
    %v1131 = vpop.xlane.xlu0 %1130
    %v1132 = vsel %vm308, %v1128, 0.0
    %1133 = vadd.xlane.f32.xlu0 %v1132
    %v1134 = vpop.xlane.xlu0 %1133
    %v1135 = vrcp.pop %v1131
    %v1136 = vrcp.pop %v1134
    %v1137 = vmul.f32 %v1126, %v1135
    %v1138 = vmul.f32 %v1128, %v1136
    %1139 = vrot.lane.b32.xlu0 %v300, 112
    %v1140 = vpop.permute.xlu0 %1139
    %v1143 = vsel %vm308, %v1137, 0
    %1145 = vmatprep.subr.mxu0 0.0
    %1146 = vmatpush1.msra.mxu0 0.0
    %1147 = vmatprep.subr.mxu0 0.0
    %1148 = vmatpush1.msra.mxu0 0.0
    %1149 = vmatprep.subr.mxu0 0.0
    %1150 = vmatpush1.msra.mxu0 0.0
    %1151 = vmatprep.subr.mxu0 0.0
    %1152 = vmatpush1.msra.mxu0 0.0
    %1153 = vmatprep.subr.mxu0 0.0
    %1154 = vmatpush1.msra.mxu0 0.0
    %1155 = vmatprep.subr.mxu0 0.0
    %1156 = vmatpush1.msra.mxu0 0.0
    %1157 = vmatprep.subr.mxu0 0.0
    %1158 = vmatpush1.msra.mxu0 0.0
    %1159 = vmatprep.subr.mxu0 0.0
    %1160 = vmatpush1.msra.mxu0 0.0
    %1161 = vmatprep.subr.mxu0 0.0
    %1162 = vmatpush1.msra.mxu0 0.0
    %1163 = vmatprep.subr.mxu0 0.0
    %1164 = vmatpush1.msra.mxu0 0.0
    %1165 = vmatprep.subr.mxu0 0.0
    %1166 = vmatpush1.msra.mxu0 0.0
    %1167 = vmatprep.subr.mxu0 0.0
    %1168 = vmatpush1.msra.mxu0 0.0
    %1169 = vmatprep.subr.mxu0 0.0
    %1170 = vmatpush1.msra.mxu0 0.0
    %1171 = vmatprep.subr.mxu0 0.0
    %1172 = vmatpush1.msra.mxu0 0.0
    %1173 = vmatprep.subr.mxu0 0.0
    %1174 = vmatpush1.msra.mxu0 0.0
    %1175 = vmatprep.subr.mxu0 0.0
    %1176 = vmatpush1.msra.mxu0 %v1140
    %1177 = vmatprep.subr.mxu0 0.0
    %1178 = vmatpush2.msra.mxu0 0.0
    %1179 = vmatprep.subr.mxu0 0.0
    %1180 = vmatpush2.msra.mxu0 0.0
    %1181 = vmatprep.subr.mxu0 0.0
    %1182 = vmatpush2.msra.mxu0 0.0
    %1183 = vmatprep.subr.mxu0 0.0
    %1184 = vmatpush2.msra.mxu0 0.0
    %1185 = vmatprep.subr.mxu0 0.0
    %1186 = vmatpush2.msra.mxu0 0.0
    %1187 = vmatprep.subr.mxu0 0.0
    %1188 = vmatpush2.msra.mxu0 0.0
    %1189 = vmatprep.subr.mxu0 0.0
    %1190 = vmatpush2.msra.mxu0 0.0
    %1191 = vmatprep.subr.mxu0 0.0
    %1192 = vmatpush2.msra.mxu0 0.0
    %1193 = vmatprep.subr.mxu0 0.0
    %1194 = vmatpush2.msra.mxu0 0.0
    %1195 = vmatprep.subr.mxu0 0.0
    %1196 = vmatpush2.msra.mxu0 0.0
    %1197 = vmatprep.subr.mxu0 0.0
    %1198 = vmatpush2.msra.mxu0 0.0
    %1199 = vmatprep.subr.mxu0 0.0
    %1200 = vmatpush2.msra.mxu0 0.0
    %1201 = vmatprep.subr.mxu0 0.0
    %1202 = vmatpush2.msra.mxu0 0.0
    %1203 = vmatprep.subr.mxu0 0.0
    %1204 = vmatpush2.msra.mxu0 0.0
    %1205 = vmatprep.subr.mxu0 0.0
    %1206 = vmatpush2.msra.mxu0 0.0
    %1207 = vmatprep.subr.mxu0 0.0
    %1208 = vmatpush2.msra.mxu0 0.0
    %1209 = vmatprep.mubr.f32.mxu0 0.0
    %1210 = vmatmul.mubr.f32.gmra.mxu0 %v1143
    %v1211 = vpop.f32.mrf.mxu0
    %v1212 = vadd.f32 0.0, %v1211
    %v1213 = vpop.f32.mrf.mxu0
    %1214 = vdwg.mxu0
    %1215 = vrot.lane.b32.xlu0 %v305, 112
    %v1216 = vpop.permute.xlu0 %1215
    %v1219 = vsel %vm308, %v1138, 0
    %1221 = vmatprep.subr.mxu0 0.0
    %1222 = vmatpush1.msra.mxu0 0.0
    %1223 = vmatprep.subr.mxu0 0.0
    %1224 = vmatpush1.msra.mxu0 0.0
    %1225 = vmatprep.subr.mxu0 0.0
    %1226 = vmatpush1.msra.mxu0 0.0
    %1227 = vmatprep.subr.mxu0 0.0
    %1228 = vmatpush1.msra.mxu0 0.0
    %1229 = vmatprep.subr.mxu0 0.0
    %1230 = vmatpush1.msra.mxu0 0.0
    %1231 = vmatprep.subr.mxu0 0.0
    %1232 = vmatpush1.msra.mxu0 0.0
    %1233 = vmatprep.subr.mxu0 0.0
    %1234 = vmatpush1.msra.mxu0 0.0
    %1235 = vmatprep.subr.mxu0 0.0
    %1236 = vmatpush1.msra.mxu0 0.0
    %1237 = vmatprep.subr.mxu0 0.0
    %1238 = vmatpush1.msra.mxu0 0.0
    %1239 = vmatprep.subr.mxu0 0.0
    %1240 = vmatpush1.msra.mxu0 0.0
    %1241 = vmatprep.subr.mxu0 0.0
    %1242 = vmatpush1.msra.mxu0 0.0
    %1243 = vmatprep.subr.mxu0 0.0
    %1244 = vmatpush1.msra.mxu0 0.0
    %1245 = vmatprep.subr.mxu0 0.0
    %1246 = vmatpush1.msra.mxu0 0.0
    %1247 = vmatprep.subr.mxu0 0.0
    %1248 = vmatpush1.msra.mxu0 0.0
    %1249 = vmatprep.subr.mxu0 0.0
    %1250 = vmatpush1.msra.mxu0 0.0
    %1251 = vmatprep.subr.mxu0 0.0
    %1252 = vmatpush1.msra.mxu0 %v1216
    %1253 = vmatprep.subr.mxu0 0.0
    %1254 = vmatpush2.msra.mxu0 0.0
    %1255 = vmatprep.subr.mxu0 0.0
    %1256 = vmatpush2.msra.mxu0 0.0
    %1257 = vmatprep.subr.mxu0 0.0
    %1258 = vmatpush2.msra.mxu0 0.0
    %1259 = vmatprep.subr.mxu0 0.0
    %1260 = vmatpush2.msra.mxu0 0.0
    %1261 = vmatprep.subr.mxu0 0.0
    %1262 = vmatpush2.msra.mxu0 0.0
    %1263 = vmatprep.subr.mxu0 0.0
    %1264 = vmatpush2.msra.mxu0 0.0
    %1265 = vmatprep.subr.mxu0 0.0
    %1266 = vmatpush2.msra.mxu0 0.0
    %1267 = vmatprep.subr.mxu0 0.0
    %1268 = vmatpush2.msra.mxu0 0.0
    %1269 = vmatprep.subr.mxu0 0.0
    %1270 = vmatpush2.msra.mxu0 0.0
    %1271 = vmatprep.subr.mxu0 0.0
    %1272 = vmatpush2.msra.mxu0 0.0
    %1273 = vmatprep.subr.mxu0 0.0
    %1274 = vmatpush2.msra.mxu0 0.0
    %1275 = vmatprep.subr.mxu0 0.0
    %1276 = vmatpush2.msra.mxu0 0.0
    %1277 = vmatprep.subr.mxu0 0.0
    %1278 = vmatpush2.msra.mxu0 0.0
    %1279 = vmatprep.subr.mxu0 0.0
    %1280 = vmatpush2.msra.mxu0 0.0
    %1281 = vmatprep.subr.mxu0 0.0
    %1282 = vmatpush2.msra.mxu0 0.0
    %1283 = vmatprep.subr.mxu0 0.0
    %1284 = vmatpush2.msra.mxu0 0.0
    %1285 = vmatprep.mubr.f32.mxu0 0.0
    %1286 = vmatmul.mubr.f32.gmra.mxu0 %v1219
    %v1287 = vpop.f32.mrf.mxu0
    %v1288 = vadd.f32 0.0, %v1287
    %v1289 = vpop.f32.mrf.mxu0
    %1290 = vdwg.mxu0
    %1291 = vrot.lane.b32.xlu0 %v142, 104
    %v1292 = vpop.permute.xlu0 %1291
    %1293 = vrot.lane.b32.xlu0 %v221, 104
    %v1294 = vpop.permute.xlu0 %1293
    %v1295 = vsel %vm308, %v1292, 0
    %v1297 = vsel %vm308, %v1294, 0
    %1299 = vmatprep.subr.mxu0 0.0
    %1300 = vmatpush1.xpose.msra.mxu0 0.0
    %1301 = vmatprep.subr.mxu0 0.0
    %1302 = vmatpush1.xpose.msra.mxu0 0.0
    %1303 = vmatprep.subr.mxu0 0.0
    %1304 = vmatpush1.xpose.msra.mxu0 0.0
    %1305 = vmatprep.subr.mxu0 0.0
    %1306 = vmatpush1.xpose.msra.mxu0 0.0
    %1307 = vmatprep.subr.mxu0 0.0
    %1308 = vmatpush1.xpose.msra.mxu0 0.0
    %1309 = vmatprep.subr.mxu0 0.0
    %1310 = vmatpush1.xpose.msra.mxu0 0.0
    %1311 = vmatprep.subr.mxu0 0.0
    %1312 = vmatpush1.xpose.msra.mxu0 0.0
    %1313 = vmatprep.subr.mxu0 0.0
    %1314 = vmatpush1.xpose.msra.mxu0 0.0
    %1315 = vmatprep.subr.mxu0 0.0
    %1316 = vmatpush1.xpose.msra.mxu0 0.0
    %1317 = vmatprep.subr.mxu0 0.0
    %1318 = vmatpush1.xpose.msra.mxu0 0.0
    %1319 = vmatprep.subr.mxu0 0.0
    %1320 = vmatpush1.xpose.msra.mxu0 0.0
    %1321 = vmatprep.subr.mxu0 0.0
    %1322 = vmatpush1.xpose.msra.mxu0 0.0
    %1323 = vmatprep.subr.mxu0 0.0
    %1324 = vmatpush1.xpose.msra.mxu0 0.0
    %1325 = vmatprep.subr.mxu0 0.0
    %1326 = vmatpush1.xpose.msra.mxu0 0.0
    %1327 = vmatprep.subr.mxu0 0.0
    %1328 = vmatpush1.xpose.msra.mxu0 0.0
    %1329 = vmatprep.subr.mxu0 0.0
    %1330 = vmatpush1.xpose.msra.mxu0 %v1297
    %1331 = vmatprep.subr.mxu0 0.0
    %1332 = vmatpush2.xpose.msra.mxu0 0.0
    %1333 = vmatprep.subr.mxu0 0.0
    %1334 = vmatpush2.xpose.msra.mxu0 0.0
    %1335 = vmatprep.subr.mxu0 0.0
    %1336 = vmatpush2.xpose.msra.mxu0 0.0
    %1337 = vmatprep.subr.mxu0 0.0
    %1338 = vmatpush2.xpose.msra.mxu0 0.0
    %1339 = vmatprep.subr.mxu0 0.0
    %1340 = vmatpush2.xpose.msra.mxu0 0.0
    %1341 = vmatprep.subr.mxu0 0.0
    %1342 = vmatpush2.xpose.msra.mxu0 0.0
    %1343 = vmatprep.subr.mxu0 0.0
    %1344 = vmatpush2.xpose.msra.mxu0 0.0
    %1345 = vmatprep.subr.mxu0 0.0
    %1346 = vmatpush2.xpose.msra.mxu0 0.0
    %1347 = vmatprep.subr.mxu0 0.0
    %1348 = vmatpush2.xpose.msra.mxu0 0.0
    %1349 = vmatprep.subr.mxu0 0.0
    %1350 = vmatpush2.xpose.msra.mxu0 0.0
    %1351 = vmatprep.subr.mxu0 0.0
    %1352 = vmatpush2.xpose.msra.mxu0 0.0
    %1353 = vmatprep.subr.mxu0 0.0
    %1354 = vmatpush2.xpose.msra.mxu0 0.0
    %1355 = vmatprep.subr.mxu0 0.0
    %1356 = vmatpush2.xpose.msra.mxu0 0.0
    %1357 = vmatprep.subr.mxu0 0.0
    %1358 = vmatpush2.xpose.msra.mxu0 0.0
    %1359 = vmatprep.subr.mxu0 0.0
    %1360 = vmatpush2.xpose.msra.mxu0 0.0
    %1361 = vmatprep.subr.mxu0 0.0
    %1362 = vmatpush2.xpose.msra.mxu0 0.0
    %1363 = vmatprep.mubr.f32.mxu0 0.0
    %1364 = vmatmul.mubr.f32.gmra.mxu0 %v1295
    %v1365 = vpop.f32.mrf.mxu0
    %v1366 = vadd.f32 0.0, %v1365
    %v1367 = vpop.f32.mrf.mxu0
    %1368 = vdwg.mxu0
    %1369 = vrot.lane.b32.xlu0 %v147, 104
    %v1370 = vpop.permute.xlu0 %1369
    %1371 = vrot.lane.b32.xlu0 %v226, 104
    %v1372 = vpop.permute.xlu0 %1371
    %v1373 = vsel %vm308, %v1370, 0
    %v1375 = vsel %vm308, %v1372, 0
    %1377 = vmatprep.subr.mxu0 0.0
    %1378 = vmatpush1.xpose.msra.mxu0 0.0
    %1379 = vmatprep.subr.mxu0 0.0
    %1380 = vmatpush1.xpose.msra.mxu0 0.0
    %1381 = vmatprep.subr.mxu0 0.0
    %1382 = vmatpush1.xpose.msra.mxu0 0.0
    %1383 = vmatprep.subr.mxu0 0.0
    %1384 = vmatpush1.xpose.msra.mxu0 0.0
    %1385 = vmatprep.subr.mxu0 0.0
    %1386 = vmatpush1.xpose.msra.mxu0 0.0
    %1387 = vmatprep.subr.mxu0 0.0
    %1388 = vmatpush1.xpose.msra.mxu0 0.0
    %1389 = vmatprep.subr.mxu0 0.0
    %1390 = vmatpush1.xpose.msra.mxu0 0.0
    %1391 = vmatprep.subr.mxu0 0.0
    %1392 = vmatpush1.xpose.msra.mxu0 0.0
    %1393 = vmatprep.subr.mxu0 0.0
    %1394 = vmatpush1.xpose.msra.mxu0 0.0
    %1395 = vmatprep.subr.mxu0 0.0
    %1396 = vmatpush1.xpose.msra.mxu0 0.0
    %1397 = vmatprep.subr.mxu0 0.0
    %1398 = vmatpush1.xpose.msra.mxu0 0.0
    %1399 = vmatprep.subr.mxu0 0.0
    %1400 = vmatpush1.xpose.msra.mxu0 0.0
    %1401 = vmatprep.subr.mxu0 0.0
    %1402 = vmatpush1.xpose.msra.mxu0 0.0
    %1403 = vmatprep.subr.mxu0 0.0
    %1404 = vmatpush1.xpose.msra.mxu0 0.0
    %1405 = vmatprep.subr.mxu0 0.0
    %1406 = vmatpush1.xpose.msra.mxu0 0.0
    %1407 = vmatprep.subr.mxu0 0.0
    %1408 = vmatpush1.xpose.msra.mxu0 %v1375
    %1409 = vmatprep.subr.mxu0 0.0
    %1410 = vmatpush2.xpose.msra.mxu0 0.0
    %1411 = vmatprep.subr.mxu0 0.0
    %1412 = vmatpush2.xpose.msra.mxu0 0.0
    %1413 = vmatprep.subr.mxu0 0.0
    %1414 = vmatpush2.xpose.msra.mxu0 0.0
    %1415 = vmatprep.subr.mxu0 0.0
    %1416 = vmatpush2.xpose.msra.mxu0 0.0
    %1417 = vmatprep.subr.mxu0 0.0
    %1418 = vmatpush2.xpose.msra.mxu0 0.0
    %1419 = vmatprep.subr.mxu0 0.0
    %1420 = vmatpush2.xpose.msra.mxu0 0.0
    %1421 = vmatprep.subr.mxu0 0.0
    %1422 = vmatpush2.xpose.msra.mxu0 0.0
    %1423 = vmatprep.subr.mxu0 0.0
    %1424 = vmatpush2.xpose.msra.mxu0 0.0
    %1425 = vmatprep.subr.mxu0 0.0
    %1426 = vmatpush2.xpose.msra.mxu0 0.0
    %1427 = vmatprep.subr.mxu0 0.0
    %1428 = vmatpush2.xpose.msra.mxu0 0.0
    %1429 = vmatprep.subr.mxu0 0.0
    %1430 = vmatpush2.xpose.msra.mxu0 0.0
    %1431 = vmatprep.subr.mxu0 0.0
    %1432 = vmatpush2.xpose.msra.mxu0 0.0
    %1433 = vmatprep.subr.mxu0 0.0
    %1434 = vmatpush2.xpose.msra.mxu0 0.0
    %1435 = vmatprep.subr.mxu0 0.0
    %1436 = vmatpush2.xpose.msra.mxu0 0.0
    %1437 = vmatprep.subr.mxu0 0.0
    %1438 = vmatpush2.xpose.msra.mxu0 0.0
    %1439 = vmatprep.subr.mxu0 0.0
    %1440 = vmatpush2.xpose.msra.mxu0 0.0
    %1441 = vmatprep.mubr.f32.mxu0 0.0
    %1442 = vmatmul.mubr.f32.gmra.mxu0 %v1373
    %v1443 = vpop.f32.mrf.mxu0
    %v1444 = vadd.f32 0.0, %v1443
    %v1445 = vpop.f32.mrf.mxu0
    %1446 = vdwg.mxu0
    %v1447 = vsel %vm308, %v1366, -inf
    %1448 = vmax.xlane.f32.xlu0 %v1447
    %v1449 = vpop.xlane.xlu0 %1448
    %v1450 = vsel %vm308, %v1444, -inf
    %1451 = vmax.xlane.f32.xlu0 %v1450
    %v1452 = vpop.xlane.xlu0 %1451
    %v1453 = vsub.f32 %v1366, %v1449
    %v1454 = vsub.f32 %v1444, %v1452
    %v1455 = vmul.f32 %v1453, 1.442695
    %v1456 = vpow.pop %v1455
    %v1457 = vmul.f32 %v1454, 1.442695
    %v1458 = vpow.pop %v1457
    %v1459 = vsel %vm308, %v1456, 0.0
    %1460 = vadd.xlane.f32.xlu0 %v1459
    %v1461 = vpop.xlane.xlu0 %1460
    %v1462 = vsel %vm308, %v1458, 0.0
    %1463 = vadd.xlane.f32.xlu0 %v1462
    %v1464 = vpop.xlane.xlu0 %1463
    %v1465 = vrcp.pop %v1461
    %v1466 = vrcp.pop %v1464
    %v1467 = vmul.f32 %v1456, %v1465
    %v1468 = vmul.f32 %v1458, %v1466
    %1469 = vrot.lane.b32.xlu0 %v300, 104
    %v1470 = vpop.permute.xlu0 %1469
    %v1473 = vsel %vm308, %v1467, 0
    %1475 = vmatprep.subr.mxu0 0.0
    %1476 = vmatpush1.msra.mxu0 0.0
    %1477 = vmatprep.subr.mxu0 0.0
    %1478 = vmatpush1.msra.mxu0 0.0
    %1479 = vmatprep.subr.mxu0 0.0
    %1480 = vmatpush1.msra.mxu0 0.0
    %1481 = vmatprep.subr.mxu0 0.0
    %1482 = vmatpush1.msra.mxu0 0.0
    %1483 = vmatprep.subr.mxu0 0.0
    %1484 = vmatpush1.msra.mxu0 0.0
    %1485 = vmatprep.subr.mxu0 0.0
    %1486 = vmatpush1.msra.mxu0 0.0
    %1487 = vmatprep.subr.mxu0 0.0
    %1488 = vmatpush1.msra.mxu0 0.0
    %1489 = vmatprep.subr.mxu0 0.0
    %1490 = vmatpush1.msra.mxu0 0.0
    %1491 = vmatprep.subr.mxu0 0.0
    %1492 = vmatpush1.msra.mxu0 0.0
    %1493 = vmatprep.subr.mxu0 0.0
    %1494 = vmatpush1.msra.mxu0 0.0
    %1495 = vmatprep.subr.mxu0 0.0
    %1496 = vmatpush1.msra.mxu0 0.0
    %1497 = vmatprep.subr.mxu0 0.0
    %1498 = vmatpush1.msra.mxu0 0.0
    %1499 = vmatprep.subr.mxu0 0.0
    %1500 = vmatpush1.msra.mxu0 0.0
    %1501 = vmatprep.subr.mxu0 0.0
    %1502 = vmatpush1.msra.mxu0 0.0
    %1503 = vmatprep.subr.mxu0 0.0
    %1504 = vmatpush1.msra.mxu0 0.0
    %1505 = vmatprep.subr.mxu0 0.0
    %1506 = vmatpush1.msra.mxu0 %v1470
    %1507 = vmatprep.subr.mxu0 0.0
    %1508 = vmatpush2.msra.mxu0 0.0
    %1509 = vmatprep.subr.mxu0 0.0
    %1510 = vmatpush2.msra.mxu0 0.0
    %1511 = vmatprep.subr.mxu0 0.0
    %1512 = vmatpush2.msra.mxu0 0.0
    %1513 = vmatprep.subr.mxu0 0.0
    %1514 = vmatpush2.msra.mxu0 0.0
    %1515 = vmatprep.subr.mxu0 0.0
    %1516 = vmatpush2.msra.mxu0 0.0
    %1517 = vmatprep.subr.mxu0 0.0
    %1518 = vmatpush2.msra.mxu0 0.0
    %1519 = vmatprep.subr.mxu0 0.0
    %1520 = vmatpush2.msra.mxu0 0.0
    %1521 = vmatprep.subr.mxu0 0.0
    %1522 = vmatpush2.msra.mxu0 0.0
    %1523 = vmatprep.subr.mxu0 0.0
    %1524 = vmatpush2.msra.mxu0 0.0
    %1525 = vmatprep.subr.mxu0 0.0
    %1526 = vmatpush2.msra.mxu0 0.0
    %1527 = vmatprep.subr.mxu0 0.0
    %1528 = vmatpush2.msra.mxu0 0.0
    %1529 = vmatprep.subr.mxu0 0.0
    %1530 = vmatpush2.msra.mxu0 0.0
    %1531 = vmatprep.subr.mxu0 0.0
    %1532 = vmatpush2.msra.mxu0 0.0
    %1533 = vmatprep.subr.mxu0 0.0
    %1534 = vmatpush2.msra.mxu0 0.0
    %1535 = vmatprep.subr.mxu0 0.0
    %1536 = vmatpush2.msra.mxu0 0.0
    %1537 = vmatprep.subr.mxu0 0.0
    %1538 = vmatpush2.msra.mxu0 0.0
    %1539 = vmatprep.mubr.f32.mxu0 0.0
    %1540 = vmatmul.mubr.f32.gmra.mxu0 %v1473
    %v1541 = vpop.f32.mrf.mxu0
    %v1542 = vadd.f32 0.0, %v1541
    %v1543 = vpop.f32.mrf.mxu0
    %1544 = vdwg.mxu0
    %1545 = vrot.lane.b32.xlu0 %v305, 104
    %v1546 = vpop.permute.xlu0 %1545
    %v1549 = vsel %vm308, %v1468, 0
    %1551 = vmatprep.subr.mxu0 0.0
    %1552 = vmatpush1.msra.mxu0 0.0
    %1553 = vmatprep.subr.mxu0 0.0
    %1554 = vmatpush1.msra.mxu0 0.0
    %1555 = vmatprep.subr.mxu0 0.0
    %1556 = vmatpush1.msra.mxu0 0.0
    %1557 = vmatprep.subr.mxu0 0.0
    %1558 = vmatpush1.msra.mxu0 0.0
    %1559 = vmatprep.subr.mxu0 0.0
    %1560 = vmatpush1.msra.mxu0 0.0
    %1561 = vmatprep.subr.mxu0 0.0
    %1562 = vmatpush1.msra.mxu0 0.0
    %1563 = vmatprep.subr.mxu0 0.0
    %1564 = vmatpush1.msra.mxu0 0.0
    %1565 = vmatprep.subr.mxu0 0.0
    %1566 = vmatpush1.msra.mxu0 0.0
    %1567 = vmatprep.subr.mxu0 0.0
    %1568 = vmatpush1.msra.mxu0 0.0
    %1569 = vmatprep.subr.mxu0 0.0
    %1570 = vmatpush1.msra.mxu0 0.0
    %1571 = vmatprep.subr.mxu0 0.0
    %1572 = vmatpush1.msra.mxu0 0.0
    %1573 = vmatprep.subr.mxu0 0.0
    %1574 = vmatpush1.msra.mxu0 0.0
    %1575 = vmatprep.subr.mxu0 0.0
    %1576 = vmatpush1.msra.mxu0 0.0
    %1577 = vmatprep.subr.mxu0 0.0
    %1578 = vmatpush1.msra.mxu0 0.0
    %1579 = vmatprep.subr.mxu0 0.0
    %1580 = vmatpush1.msra.mxu0 0.0
    %1581 = vmatprep.subr.mxu0 0.0
    %1582 = vmatpush1.msra.mxu0 %v1546
    %1583 = vmatprep.subr.mxu0 0.0
    %1584 = vmatpush2.msra.mxu0 0.0
    %1585 = vmatprep.subr.mxu0 0.0
    %1586 = vmatpush2.msra.mxu0 0.0
    %1587 = vmatprep.subr.mxu0 0.0
    %1588 = vmatpush2.msra.mxu0 0.0
    %1589 = vmatprep.subr.mxu0 0.0
    %1590 = vmatpush2.msra.mxu0 0.0
    %1591 = vmatprep.subr.mxu0 0.0
    %1592 = vmatpush2.msra.mxu0 0.0
    %1593 = vmatprep.subr.mxu0 0.0
    %1594 = vmatpush2.msra.mxu0 0.0
    %1595 = vmatprep.subr.mxu0 0.0
    %1596 = vmatpush2.msra.mxu0 0.0
    %1597 = vmatprep.subr.mxu0 0.0
    %1598 = vmatpush2.msra.mxu0 0.0
    %1599 = vmatprep.subr.mxu0 0.0
    %1600 = vmatpush2.msra.mxu0 0.0
    %1601 = vmatprep.subr.mxu0 0.0
    %1602 = vmatpush2.msra.mxu0 0.0
    %1603 = vmatprep.subr.mxu0 0.0
    %1604 = vmatpush2.msra.mxu0 0.0
    %1605 = vmatprep.subr.mxu0 0.0
    %1606 = vmatpush2.msra.mxu0 0.0
    %1607 = vmatprep.subr.mxu0 0.0
    %1608 = vmatpush2.msra.mxu0 0.0
    %1609 = vmatprep.subr.mxu0 0.0
    %1610 = vmatpush2.msra.mxu0 0.0
    %1611 = vmatprep.subr.mxu0 0.0
    %1612 = vmatpush2.msra.mxu0 0.0
    %1613 = vmatprep.subr.mxu0 0.0
    %1614 = vmatpush2.msra.mxu0 0.0
    %1615 = vmatprep.mubr.f32.mxu0 0.0
    %1616 = vmatmul.mubr.f32.gmra.mxu0 %v1549
    %v1617 = vpop.f32.mrf.mxu0
    %v1618 = vadd.f32 0.0, %v1617
    %v1619 = vpop.f32.mrf.mxu0
    %1620 = vdwg.mxu0
    %1623 = vrot.lane.b32.xlu0 %v881, 8
    %v1624 = vpop.permute.xlu0 %1623
    %1625 = vrot.lane.b32.xlu0 %v958, 8
    %v1626 = vpop.permute.xlu0 %1625
    %1631 = vrot.lane.b32.xlu0 %v1212, 16
    %v1632 = vpop.permute.xlu0 %1631
    %1633 = vrot.lane.b32.xlu0 %v1288, 16
    %v1634 = vpop.permute.xlu0 %1633
    %1639 = vrot.lane.b32.xlu0 %v1542, 24
    %v1640 = vpop.permute.xlu0 %1639
    %1641 = vrot.lane.b32.xlu0 %v1618, 24
    %v1642 = vpop.permute.xlu0 %1641
    %v1645 = vsel %vm308, %v553, %v1624
    %v1646 = vsel %vm308, %v626, %v1626
    %vm1647 = vcmask 130048
    %v1648 = vsel %vm1647, %v1645, %v1632
    %v1649 = vsel %vm1647, %v1646, %v1634
    %vm1650 = vcmask 195584
    %v1651 = vsel %vm1650, %v1648, %v1640
    %v1652 = vsel %vm1650, %v1649, %v1642
    %v1653 = vld [vmem:[%s4] sm:$0xff]
    %v1654 = vld [vmem:[%s4 + $0x8] sm:$0xff]
    %v1655 = vld [vmem:[%s4 + $0x10] sm:$0xff]
    %v1656 = vld [vmem:[%s4 + $0x18] sm:$0xff]
    %v1657 = vld [vmem:[%s5] sm:$0x1]
    %v1659 = vlaneseq
    %v1660 = vshrl.u32 %v1659, 7
    %v1661 = vsub.s32 0, %v1660
    %v1662 = vrot.slane %v1657, %v1661
    %v1665 = vsel %vm68, %v1651, 0
    %v1668 = vsel %vm68, %v1652, 0
    %1670 = vmatprep.subr.mxu0 0.0
    %1671 = vmatpush1.msra.mxu0 0.0
    %1672 = vmatprep.subr.mxu0 0.0
    %1673 = vmatpush1.msra.mxu0 0.0
    %1674 = vmatprep.subr.mxu0 0.0
    %1675 = vmatpush1.msra.mxu0 0.0
    %1676 = vmatprep.subr.mxu0 0.0
    %1677 = vmatpush1.msra.mxu0 0.0
    %1678 = vmatprep.subr.mxu0 0.0
    %1679 = vmatpush1.msra.mxu0 0.0
    %1680 = vmatprep.subr.mxu0 0.0
    %1681 = vmatpush1.msra.mxu0 0.0
    %1682 = vmatprep.subr.mxu0 0.0
    %1683 = vmatpush1.msra.mxu0 0.0
    %1684 = vmatprep.subr.mxu0 0.0
    %1685 = vmatpush1.msra.mxu0 0.0
    %1686 = vmatprep.subr.mxu0 0.0
    %1687 = vmatpush1.msra.mxu0 0.0
    %1688 = vmatprep.subr.mxu0 0.0
    %1689 = vmatpush1.msra.mxu0 0.0
    %1690 = vmatprep.subr.mxu0 0.0
    %1691 = vmatpush1.msra.mxu0 0.0
    %1692 = vmatprep.subr.mxu0 0.0
    %1693 = vmatpush1.msra.mxu0 0.0
    %1694 = vmatprep.subr.mxu0 0.0
    %1695 = vmatpush1.msra.mxu0 %v1656
    %1696 = vmatprep.subr.mxu0 0.0
    %1697 = vmatpush1.msra.mxu0 %v1655
    %1698 = vmatprep.subr.mxu0 0.0
    %1699 = vmatpush1.msra.mxu0 %v1654
    %1700 = vmatprep.subr.mxu0 0.0
    %1701 = vmatpush1.msra.mxu0 %v1653
    %1702 = vmatprep.subr.mxu0 0.0
    %1703 = vmatpush2.msra.mxu0 0.0
    %1704 = vmatprep.subr.mxu0 0.0
    %1705 = vmatpush2.msra.mxu0 0.0
    %1706 = vmatprep.subr.mxu0 0.0
    %1707 = vmatpush2.msra.mxu0 0.0
    %1708 = vmatprep.subr.mxu0 0.0
    %1709 = vmatpush2.msra.mxu0 0.0
    %1710 = vmatprep.subr.mxu0 0.0
    %1711 = vmatpush2.msra.mxu0 0.0
    %1712 = vmatprep.subr.mxu0 0.0
    %1713 = vmatpush2.msra.mxu0 0.0
    %1714 = vmatprep.subr.mxu0 0.0
    %1715 = vmatpush2.msra.mxu0 0.0
    %1716 = vmatprep.subr.mxu0 0.0
    %1717 = vmatpush2.msra.mxu0 0.0
    %1718 = vmatprep.subr.mxu0 0.0
    %1719 = vmatpush2.msra.mxu0 0.0
    %1720 = vmatprep.subr.mxu0 0.0
    %1721 = vmatpush2.msra.mxu0 0.0
    %1722 = vmatprep.subr.mxu0 0.0
    %1723 = vmatpush2.msra.mxu0 0.0
    %1724 = vmatprep.subr.mxu0 0.0
    %1725 = vmatpush2.msra.mxu0 0.0
    %1726 = vmatprep.subr.mxu0 0.0
    %1727 = vmatpush2.msra.mxu0 0.0
    %1728 = vmatprep.subr.mxu0 0.0
    %1729 = vmatpush2.msra.mxu0 0.0
    %1730 = vmatprep.subr.mxu0 0.0
    %1731 = vmatpush2.msra.mxu0 0.0
    %1732 = vmatprep.subr.mxu0 0.0
    %1733 = vmatpush2.msra.mxu0 0.0
    %1734 = vmatprep.mubr.f32.mxu0 0.0
    %1735 = vmatmul.mubr.f32.gmra.mxu0 %v1665
    %v1736 = vpop.f32.mrf.mxu0
    %v1737 = vadd.f32 %v1662, %v1736
    %v1738 = vpop.f32.mrf.mxu0
    %1739 = vmatprep.mubr.f32.mxu0 0.0
    %1740 = vmatmul.mubr.f32.gmra.mxu0 %v1668
    %v1741 = vpop.f32.mrf.mxu0
    %v1742 = vadd.f32 %v1662, %v1741
    %v1743 = vpop.f32.mrf.mxu0
    %1744 = vdwg.mxu0
    %v1745 = vadd.f32 %v62, %v1737
    %v1746 = vadd.f32 %v63, %v1742
    %v1747 = vld [vmem:[%s6] sm:$0x1]
    %v1748 = vld [vmem:[%s7] sm:$0x1]
    %v1749 = vsel %vm68, %v1745, 0.0
    %1750 = vadd.xlane.f32.xlu0 %v1749
    %v1751 = vpop.xlane.xlu0 %1750
    %v1752 = vsel %vm68, %v1746, 0.0
    %1753 = vadd.xlane.f32.xlu0 %v1752
    %v1754 = vpop.xlane.xlu0 %1753
    %v1755 = vrcp.pop 32.0
    %v1756 = vmul.f32 %v1751, %v1755
    %v1757 = vmul.f32 %v1754, %v1755
    %v1758 = vsub.f32 %v1745, %v1756
    %v1759 = vsub.f32 %v1746, %v1757
    %v1760 = vmul.f32 %v1758, %v1758
    %v1761 = vmul.f32 %v1759, %v1759
    %v1762 = vsel %vm68, %v1760, 0.0
    %1763 = vadd.xlane.f32.xlu0 %v1762
    %v1764 = vpop.xlane.xlu0 %1763
    %v1765 = vsel %vm68, %v1761, 0.0
    %1766 = vadd.xlane.f32.xlu0 %v1765
    %v1767 = vpop.xlane.xlu0 %1766
    %v1768 = vmul.f32 %v1764, %v1755
    %v1769 = vmul.f32 %v1767, %v1755
    %v1770 = vadd.f32 %v1768, 1e-05
    %v1771 = vadd.f32 %v1769, 1e-05
    %v1772 = vrsqrt.pop %v1770
    %v1773 = vrsqrt.pop %v1771
    %v1774 = vmul.f32 %v1758, %v1772
    %v1775 = vmul.f32 %v1759, %v1773
    %v1777 = vlaneseq
    %v1778 = vshrl.u32 %v1777, 7
    %v1779 = vsub.s32 0, %v1778
    %v1780 = vrot.slane %v1747, %v1779
    %v1782 = vmul.f32 %v1774, %v1780
    %v1783 = vmul.f32 %v1775, %v1780
    %v1785 = vlaneseq
    %v1786 = vshrl.u32 %v1785, 7
    %v1787 = vsub.s32 0, %v1786
    %v1788 = vrot.slane %v1748, %v1787
    %v1790 = vadd.f32 %v1782, %v1788
    %v1791 = vadd.f32 %v1783, %v1788
    %v1792 = vld [vmem:[%s8] sm:$0xff]
    %v1793 = vld [vmem:[%s8 + $0x8] sm:$0xff]
    %v1794 = vld [vmem:[%s8 + $0x10] sm:$0xff]
    %v1795 = vld [vmem:[%s8 + $0x18] sm:$0xff]
    %v1796 = vld [vmem:[%s9] sm:$0x1]
    %v1798 = vlaneseq
    %v1799 = vshrl.u32 %v1798, 7
    %v1800 = vsub.s32 0, %v1799
    %v1801 = vrot.slane %v1796, %v1800
    %v1804 = vsel %vm68, %v1790, 0
    %v1807 = vsel %vm68, %v1791, 0
    %1809 = vmatprep.subr.mxu0 0.0
    %1810 = vmatpush1.msra.mxu0 0.0
    %1811 = vmatprep.subr.mxu0 0.0
    %1812 = vmatpush1.msra.mxu0 0.0
    %1813 = vmatprep.subr.mxu0 0.0
    %1814 = vmatpush1.msra.mxu0 0.0
    %1815 = vmatprep.subr.mxu0 0.0
    %1816 = vmatpush1.msra.mxu0 0.0
    %1817 = vmatprep.subr.mxu0 0.0
    %1818 = vmatpush1.msra.mxu0 0.0
    %1819 = vmatprep.subr.mxu0 0.0
    %1820 = vmatpush1.msra.mxu0 0.0
    %1821 = vmatprep.subr.mxu0 0.0
    %1822 = vmatpush1.msra.mxu0 0.0
    %1823 = vmatprep.subr.mxu0 0.0
    %1824 = vmatpush1.msra.mxu0 0.0
    %1825 = vmatprep.subr.mxu0 0.0
    %1826 = vmatpush1.msra.mxu0 0.0
    %1827 = vmatprep.subr.mxu0 0.0
    %1828 = vmatpush1.msra.mxu0 0.0
    %1829 = vmatprep.subr.mxu0 0.0
    %1830 = vmatpush1.msra.mxu0 0.0
    %1831 = vmatprep.subr.mxu0 0.0
    %1832 = vmatpush1.msra.mxu0 0.0
    %1833 = vmatprep.subr.mxu0 0.0
    %1834 = vmatpush1.msra.mxu0 %v1795
    %1835 = vmatprep.subr.mxu0 0.0
    %1836 = vmatpush1.msra.mxu0 %v1794
    %1837 = vmatprep.subr.mxu0 0.0
    %1838 = vmatpush1.msra.mxu0 %v1793
    %1839 = vmatprep.subr.mxu0 0.0
    %1840 = vmatpush1.msra.mxu0 %v1792
    %1841 = vmatprep.subr.mxu0 0.0
    %1842 = vmatpush2.msra.mxu0 0.0
    %1843 = vmatprep.subr.mxu0 0.0
    %1844 = vmatpush2.msra.mxu0 0.0
    %1845 = vmatprep.subr.mxu0 0.0
    %1846 = vmatpush2.msra.mxu0 0.0
    %1847 = vmatprep.subr.mxu0 0.0
    %1848 = vmatpush2.msra.mxu0 0.0
    %1849 = vmatprep.subr.mxu0 0.0
    %1850 = vmatpush2.msra.mxu0 0.0
    %1851 = vmatprep.subr.mxu0 0.0
    %1852 = vmatpush2.msra.mxu0 0.0
    %1853 = vmatprep.subr.mxu0 0.0
    %1854 = vmatpush2.msra.mxu0 0.0
    %1855 = vmatprep.subr.mxu0 0.0
    %1856 = vmatpush2.msra.mxu0 0.0
    %1857 = vmatprep.subr.mxu0 0.0
    %1858 = vmatpush2.msra.mxu0 0.0
    %1859 = vmatprep.subr.mxu0 0.0
    %1860 = vmatpush2.msra.mxu0 0.0
    %1861 = vmatprep.subr.mxu0 0.0
    %1862 = vmatpush2.msra.mxu0 0.0
    %1863 = vmatprep.subr.mxu0 0.0
    %1864 = vmatpush2.msra.mxu0 0.0
    %1865 = vmatprep.subr.mxu0 0.0
    %1866 = vmatpush2.msra.mxu0 0.0
    %1867 = vmatprep.subr.mxu0 0.0
    %1868 = vmatpush2.msra.mxu0 0.0
    %1869 = vmatprep.subr.mxu0 0.0
    %1870 = vmatpush2.msra.mxu0 0.0
    %1871 = vmatprep.subr.mxu0 0.0
    %1872 = vmatpush2.msra.mxu0 0.0
    %1873 = vmatprep.mubr.f32.mxu0 0.0
    %1874 = vmatmul.mubr.f32.gmra.mxu0 %v1804
    %v1875 = vpop.f32.mrf.mxu0
    %v1876 = vadd.f32 %v1801, %v1875
    %v1877 = vpop.f32.mrf.mxu0
    %1878 = vmatprep.mubr.f32.mxu0 0.0
    %1879 = vmatmul.mubr.f32.gmra.mxu0 %v1807
    %v1880 = vpop.f32.mrf.mxu0
    %v1881 = vadd.f32 %v1801, %v1880
    %v1882 = vpop.f32.mrf.mxu0
    %1883 = vdwg.mxu0
    %v1884 = vmax.f32 %v1876, 0.0
    %v1885 = vmax.f32 %v1881, 0.0
    %v1886 = vld [vmem:[%s10] sm:$0xff]
    %v1887 = vld [vmem:[%s10 + $0x8] sm:$0xff]
    %v1888 = vld [vmem:[%s10 + $0x10] sm:$0xff]
    %v1889 = vld [vmem:[%s10 + $0x18] sm:$0xff]
    %v1890 = vld [vmem:[%s10 + $0x20] sm:$0xff]
    %v1891 = vld [vmem:[%s10 + $0x28] sm:$0xff]
    %v1892 = vld [vmem:[%s10 + $0x30] sm:$0xff]
    %v1893 = vld [vmem:[%s10 + $0x38] sm:$0xff]
    %v1894 = vld [vmem:[%s10 + $0x40] sm:$0xff]
    %v1895 = vld [vmem:[%s10 + $0x48] sm:$0xff]
    %v1896 = vld [vmem:[%s10 + $0x50] sm:$0xff]
    %v1897 = vld [vmem:[%s10 + $0x58] sm:$0xff]
    %v1898 = vld [vmem:[%s10 + $0x60] sm:$0xff]
    %v1899 = vld [vmem:[%s10 + $0x68] sm:$0xff]
    %v1900 = vld [vmem:[%s10 + $0x70] sm:$0xff]
    %v1901 = vld [vmem:[%s10 + $0x78] sm:$0xff]
    %v1902 = vld [vmem:[%s11] sm:$0x1]
    %v1904 = vlaneseq
    %v1905 = vshrl.u32 %v1904, 7
    %v1906 = vsub.s32 0, %v1905
    %v1907 = vrot.slane %v1902, %v1906
    %1909 = vmatprep.subr.mxu0 0.0
    %1910 = vmatpush1.msra.mxu0 %v1901
    %1911 = vmatprep.subr.mxu0 0.0
    %1912 = vmatpush1.msra.mxu0 %v1900
    %1913 = vmatprep.subr.mxu0 0.0
    %1914 = vmatpush1.msra.mxu0 %v1899
    %1915 = vmatprep.subr.mxu0 0.0
    %1916 = vmatpush1.msra.mxu0 %v1898
    %1917 = vmatprep.subr.mxu0 0.0
    %1918 = vmatpush1.msra.mxu0 %v1897
    %1919 = vmatprep.subr.mxu0 0.0
    %1920 = vmatpush1.msra.mxu0 %v1896
    %1921 = vmatprep.subr.mxu0 0.0
    %1922 = vmatpush1.msra.mxu0 %v1895
    %1923 = vmatprep.subr.mxu0 0.0
    %1924 = vmatpush1.msra.mxu0 %v1894
    %1925 = vmatprep.subr.mxu0 0.0
    %1926 = vmatpush1.msra.mxu0 %v1893
    %1927 = vmatprep.subr.mxu0 0.0
    %1928 = vmatpush1.msra.mxu0 %v1892
    %1929 = vmatprep.subr.mxu0 0.0
    %1930 = vmatpush1.msra.mxu0 %v1891
    %1931 = vmatprep.subr.mxu0 0.0
    %1932 = vmatpush1.msra.mxu0 %v1890
    %1933 = vmatprep.subr.mxu0 0.0
    %1934 = vmatpush1.msra.mxu0 %v1889
    %1935 = vmatprep.subr.mxu0 0.0
    %1936 = vmatpush1.msra.mxu0 %v1888
    %1937 = vmatprep.subr.mxu0 0.0
    %1938 = vmatpush1.msra.mxu0 %v1887
    %1939 = vmatprep.subr.mxu0 0.0
    %1940 = vmatpush1.msra.mxu0 %v1886
    %1941 = vmatprep.subr.mxu0 0.0
    %1942 = vmatpush2.msra.mxu0 0.0
    %1943 = vmatprep.subr.mxu0 0.0
    %1944 = vmatpush2.msra.mxu0 0.0
    %1945 = vmatprep.subr.mxu0 0.0
    %1946 = vmatpush2.msra.mxu0 0.0
    %1947 = vmatprep.subr.mxu0 0.0
    %1948 = vmatpush2.msra.mxu0 0.0
    %1949 = vmatprep.subr.mxu0 0.0
    %1950 = vmatpush2.msra.mxu0 0.0
    %1951 = vmatprep.subr.mxu0 0.0
    %1952 = vmatpush2.msra.mxu0 0.0
    %1953 = vmatprep.subr.mxu0 0.0
    %1954 = vmatpush2.msra.mxu0 0.0
    %1955 = vmatprep.subr.mxu0 0.0
    %1956 = vmatpush2.msra.mxu0 0.0
    %1957 = vmatprep.subr.mxu0 0.0
    %1958 = vmatpush2.msra.mxu0 0.0
    %1959 = vmatprep.subr.mxu0 0.0
    %1960 = vmatpush2.msra.mxu0 0.0
    %1961 = vmatprep.subr.mxu0 0.0
    %1962 = vmatpush2.msra.mxu0 0.0
    %1963 = vmatprep.subr.mxu0 0.0
    %1964 = vmatpush2.msra.mxu0 0.0
    %1965 = vmatprep.subr.mxu0 0.0
    %1966 = vmatpush2.msra.mxu0 0.0
    %1967 = vmatprep.subr.mxu0 0.0
    %1968 = vmatpush2.msra.mxu0 0.0
    %1969 = vmatprep.subr.mxu0 0.0
    %1970 = vmatpush2.msra.mxu0 0.0
    %1971 = vmatprep.subr.mxu0 0.0
    %1972 = vmatpush2.msra.mxu0 0.0
    %1973 = vmatprep.mubr.f32.mxu0 0.0
    %1974 = vmatmul.mubr.f32.gmra.mxu0 %v1884
    %v1975 = vpop.f32.mrf.mxu0
    %v1976 = vadd.f32 %v1907, %v1975
    %v1977 = vpop.f32.mrf.mxu0
    %1978 = vmatprep.mubr.f32.mxu0 0.0
    %1979 = vmatmul.mubr.f32.gmra.mxu0 %v1885
    %v1980 = vpop.f32.mrf.mxu0
    %v1981 = vadd.f32 %v1907, %v1980
    %v1982 = vpop.f32.mrf.mxu0
    %1983 = vdwg.mxu0
    %v1984 = vadd.f32 %v1790, %v1976
    %v1985 = vadd.f32 %v1791, %v1981
    %v1986 = vld [vmem:[%s12] sm:$0x1]
    %v1987 = vld [vmem:[%s13] sm:$0x1]
    %v1988 = vsel %vm68, %v1984, 0.0
    %1989 = vadd.xlane.f32.xlu0 %v1988
    %v1990 = vpop.xlane.xlu0 %1989
    %v1991 = vsel %vm68, %v1985, 0.0
    %1992 = vadd.xlane.f32.xlu0 %v1991
    %v1993 = vpop.xlane.xlu0 %1992
    %v1994 = vmul.f32 %v1990, %v1755
    %v1995 = vmul.f32 %v1993, %v1755
    %v1996 = vsub.f32 %v1984, %v1994
    %v1997 = vsub.f32 %v1985, %v1995
    %v1998 = vmul.f32 %v1996, %v1996
    %v1999 = vmul.f32 %v1997, %v1997
    %v2000 = vsel %vm68, %v1998, 0.0
    %2001 = vadd.xlane.f32.xlu0 %v2000
    %v2002 = vpop.xlane.xlu0 %2001
    %v2003 = vsel %vm68, %v1999, 0.0
    %2004 = vadd.xlane.f32.xlu0 %v2003
    %v2005 = vpop.xlane.xlu0 %2004
    %v2006 = vmul.f32 %v2002, %v1755
    %v2007 = vmul.f32 %v2005, %v1755
    %v2008 = vadd.f32 %v2006, 1e-05
    %v2009 = vadd.f32 %v2007, 1e-05
    %v2010 = vrsqrt.pop %v2008
    %v2011 = vrsqrt.pop %v2009
    %v2012 = vmul.f32 %v1996, %v2010
    %v2013 = vmul.f32 %v1997, %v2011
    %v2015 = vlaneseq
    %v2016 = vshrl.u32 %v2015, 7
    %v2017 = vsub.s32 0, %v2016
    %v2018 = vrot.slane %v1986, %v2017
    %v2020 = vmul.f32 %v2012, %v2018
    %v2021 = vmul.f32 %v2013, %v2018
    %v2023 = vlaneseq
    %v2024 = vshrl.u32 %v2023, 7
    %v2025 = vsub.s32 0, %v2024
    %v2026 = vrot.slane %v1987, %v2025
    %v2028 = vadd.f32 %v2020, %v2026
    %v2029 = vadd.f32 %v2021, %v2026
    %s2030 = scalar_lea.vmem %s1, 32
    %v2031 = vld [vmem:[%s2030] sm:$0xff]
    %v2032 = vld [vmem:[%s2030 + $0x8] sm:$0xff]
    %v2033 = vld [vmem:[%s2030 + $0x10] sm:$0xff]
    %v2034 = vld [vmem:[%s2030 + $0x18] sm:$0xff]
    %v2036 = vsel %vm68, %v2028, 0
    %v2039 = vsel %vm68, %v2029, 0
    %2041 = vmatprep.subr.mxu0 0.0
    %2042 = vmatpush1.msra.mxu0 0.0
    %2043 = vmatprep.subr.mxu0 0.0
    %2044 = vmatpush1.msra.mxu0 0.0
    %2045 = vmatprep.subr.mxu0 0.0
    %2046 = vmatpush1.msra.mxu0 0.0
    %2047 = vmatprep.subr.mxu0 0.0
    %2048 = vmatpush1.msra.mxu0 0.0
    %2049 = vmatprep.subr.mxu0 0.0
    %2050 = vmatpush1.msra.mxu0 0.0
    %2051 = vmatprep.subr.mxu0 0.0
    %2052 = vmatpush1.msra.mxu0 0.0
    %2053 = vmatprep.subr.mxu0 0.0
    %2054 = vmatpush1.msra.mxu0 0.0
    %2055 = vmatprep.subr.mxu0 0.0
    %2056 = vmatpush1.msra.mxu0 0.0
    %2057 = vmatprep.subr.mxu0 0.0
    %2058 = vmatpush1.msra.mxu0 0.0
    %2059 = vmatprep.subr.mxu0 0.0
    %2060 = vmatpush1.msra.mxu0 0.0
    %2061 = vmatprep.subr.mxu0 0.0
    %2062 = vmatpush1.msra.mxu0 0.0
    %2063 = vmatprep.subr.mxu0 0.0
    %2064 = vmatpush1.msra.mxu0 0.0
    %2065 = vmatprep.subr.mxu0 0.0
    %2066 = vmatpush1.msra.mxu0 %v2034
    %2067 = vmatprep.subr.mxu0 0.0
    %2068 = vmatpush1.msra.mxu0 %v2033
    %2069 = vmatprep.subr.mxu0 0.0
    %2070 = vmatpush1.msra.mxu0 %v2032
    %2071 = vmatprep.subr.mxu0 0.0
    %2072 = vmatpush1.msra.mxu0 %v2031
    %2073 = vmatprep.subr.mxu0 0.0
    %2074 = vmatpush2.msra.mxu0 0.0
    %2075 = vmatprep.subr.mxu0 0.0
    %2076 = vmatpush2.msra.mxu0 0.0
    %2077 = vmatprep.subr.mxu0 0.0
    %2078 = vmatpush2.msra.mxu0 0.0
    %2079 = vmatprep.subr.mxu0 0.0
    %2080 = vmatpush2.msra.mxu0 0.0
    %2081 = vmatprep.subr.mxu0 0.0
    %2082 = vmatpush2.msra.mxu0 0.0
    %2083 = vmatprep.subr.mxu0 0.0
    %2084 = vmatpush2.msra.mxu0 0.0
    %2085 = vmatprep.subr.mxu0 0.0
    %2086 = vmatpush2.msra.mxu0 0.0
    %2087 = vmatprep.subr.mxu0 0.0
    %2088 = vmatpush2.msra.mxu0 0.0
    %2089 = vmatprep.subr.mxu0 0.0
    %2090 = vmatpush2.msra.mxu0 0.0
    %2091 = vmatprep.subr.mxu0 0.0
    %2092 = vmatpush2.msra.mxu0 0.0
    %2093 = vmatprep.subr.mxu0 0.0
    %2094 = vmatpush2.msra.mxu0 0.0
    %2095 = vmatprep.subr.mxu0 0.0
    %2096 = vmatpush2.msra.mxu0 0.0
    %2097 = vmatprep.subr.mxu0 0.0
    %2098 = vmatpush2.msra.mxu0 0.0
    %2099 = vmatprep.subr.mxu0 0.0
    %2100 = vmatpush2.msra.mxu0 0.0
    %2101 = vmatprep.subr.mxu0 0.0
    %2102 = vmatpush2.msra.mxu0 0.0
    %2103 = vmatprep.subr.mxu0 0.0
    %2104 = vmatpush2.msra.mxu0 0.0
    %2105 = vmatprep.mubr.f32.mxu0 0.0
    %2106 = vmatmul.mubr.f32.gmra.mxu0 %v2036
    %v2107 = vpop.f32.mrf.mxu0
    %v2108 = vadd.f32 0.0, %v2107
    %v2109 = vpop.f32.mrf.mxu0
    %2110 = vmatprep.mubr.f32.mxu0 0.0
    %2111 = vmatmul.mubr.f32.gmra.mxu0 %v2039
    %v2112 = vpop.f32.mrf.mxu0
    %v2113 = vadd.f32 0.0, %v2112
    %v2114 = vpop.f32.mrf.mxu0
    %2115 = vdwg.mxu0
    %s2116 = scalar_lea.vmem %s2, 32
    %v2117 = vld [vmem:[%s2116] sm:$0xff]
    %v2118 = vld [vmem:[%s2116 + $0x8] sm:$0xff]
    %v2119 = vld [vmem:[%s2116 + $0x10] sm:$0xff]
    %v2120 = vld [vmem:[%s2116 + $0x18] sm:$0xff]
    %2121 = vmatprep.subr.mxu0 0.0
    %2122 = vmatpush1.msra.mxu0 0.0
    %2123 = vmatprep.subr.mxu0 0.0
    %2124 = vmatpush1.msra.mxu0 0.0
    %2125 = vmatprep.subr.mxu0 0.0
    %2126 = vmatpush1.msra.mxu0 0.0
    %2127 = vmatprep.subr.mxu0 0.0
    %2128 = vmatpush1.msra.mxu0 0.0
    %2129 = vmatprep.subr.mxu0 0.0
    %2130 = vmatpush1.msra.mxu0 0.0
    %2131 = vmatprep.subr.mxu0 0.0
    %2132 = vmatpush1.msra.mxu0 0.0
    %2133 = vmatprep.subr.mxu0 0.0
    %2134 = vmatpush1.msra.mxu0 0.0
    %2135 = vmatprep.subr.mxu0 0.0
    %2136 = vmatpush1.msra.mxu0 0.0
    %2137 = vmatprep.subr.mxu0 0.0
    %2138 = vmatpush1.msra.mxu0 0.0
    %2139 = vmatprep.subr.mxu0 0.0
    %2140 = vmatpush1.msra.mxu0 0.0
    %2141 = vmatprep.subr.mxu0 0.0
    %2142 = vmatpush1.msra.mxu0 0.0
    %2143 = vmatprep.subr.mxu0 0.0
    %2144 = vmatpush1.msra.mxu0 0.0
    %2145 = vmatprep.subr.mxu0 0.0
    %2146 = vmatpush1.msra.mxu0 %v2120
    %2147 = vmatprep.subr.mxu0 0.0
    %2148 = vmatpush1.msra.mxu0 %v2119
    %2149 = vmatprep.subr.mxu0 0.0
    %2150 = vmatpush1.msra.mxu0 %v2118
    %2151 = vmatprep.subr.mxu0 0.0
    %2152 = vmatpush1.msra.mxu0 %v2117
    %2153 = vmatprep.subr.mxu0 0.0
    %2154 = vmatpush2.msra.mxu0 0.0
    %2155 = vmatprep.subr.mxu0 0.0
    %2156 = vmatpush2.msra.mxu0 0.0
    %2157 = vmatprep.subr.mxu0 0.0
    %2158 = vmatpush2.msra.mxu0 0.0
    %2159 = vmatprep.subr.mxu0 0.0
    %2160 = vmatpush2.msra.mxu0 0.0
    %2161 = vmatprep.subr.mxu0 0.0
    %2162 = vmatpush2.msra.mxu0 0.0
    %2163 = vmatprep.subr.mxu0 0.0
    %2164 = vmatpush2.msra.mxu0 0.0
    %2165 = vmatprep.subr.mxu0 0.0
    %2166 = vmatpush2.msra.mxu0 0.0
    %2167 = vmatprep.subr.mxu0 0.0
    %2168 = vmatpush2.msra.mxu0 0.0
    %2169 = vmatprep.subr.mxu0 0.0
    %2170 = vmatpush2.msra.mxu0 0.0
    %2171 = vmatprep.subr.mxu0 0.0
    %2172 = vmatpush2.msra.mxu0 0.0
    %2173 = vmatprep.subr.mxu0 0.0
    %2174 = vmatpush2.msra.mxu0 0.0
    %2175 = vmatprep.subr.mxu0 0.0
    %2176 = vmatpush2.msra.mxu0 0.0
    %2177 = vmatprep.subr.mxu0 0.0
    %2178 = vmatpush2.msra.mxu0 0.0
    %2179 = vmatprep.subr.mxu0 0.0
    %2180 = vmatpush2.msra.mxu0 0.0
    %2181 = vmatprep.subr.mxu0 0.0
    %2182 = vmatpush2.msra.mxu0 0.0
    %2183 = vmatprep.subr.mxu0 0.0
    %2184 = vmatpush2.msra.mxu0 0.0
    %2185 = vmatprep.mubr.f32.mxu0 0.0
    %2186 = vmatmul.mubr.f32.gmra.mxu0 %v2036
    %v2187 = vpop.f32.mrf.mxu0
    %v2188 = vadd.f32 0.0, %v2187
    %v2189 = vpop.f32.mrf.mxu0
    %2190 = vmatprep.mubr.f32.mxu0 0.0
    %2191 = vmatmul.mubr.f32.gmra.mxu0 %v2039
    %v2192 = vpop.f32.mrf.mxu0
    %v2193 = vadd.f32 0.0, %v2192
    %v2194 = vpop.f32.mrf.mxu0
    %2195 = vdwg.mxu0
    %s2196 = scalar_lea.vmem %s3, 32
    %v2197 = vld [vmem:[%s2196] sm:$0xff]
    %v2198 = vld [vmem:[%s2196 + $0x8] sm:$0xff]
    %v2199 = vld [vmem:[%s2196 + $0x10] sm:$0xff]
    %v2200 = vld [vmem:[%s2196 + $0x18] sm:$0xff]
    %2201 = vmatprep.subr.mxu0 0.0
    %2202 = vmatpush1.msra.mxu0 0.0
    %2203 = vmatprep.subr.mxu0 0.0
    %2204 = vmatpush1.msra.mxu0 0.0
    %2205 = vmatprep.subr.mxu0 0.0
    %2206 = vmatpush1.msra.mxu0 0.0
    %2207 = vmatprep.subr.mxu0 0.0
    %2208 = vmatpush1.msra.mxu0 0.0
    %2209 = vmatprep.subr.mxu0 0.0
    %2210 = vmatpush1.msra.mxu0 0.0
    %2211 = vmatprep.subr.mxu0 0.0
    %2212 = vmatpush1.msra.mxu0 0.0
    %2213 = vmatprep.subr.mxu0 0.0
    %2214 = vmatpush1.msra.mxu0 0.0
    %2215 = vmatprep.subr.mxu0 0.0
    %2216 = vmatpush1.msra.mxu0 0.0
    %2217 = vmatprep.subr.mxu0 0.0
    %2218 = vmatpush1.msra.mxu0 0.0
    %2219 = vmatprep.subr.mxu0 0.0
    %2220 = vmatpush1.msra.mxu0 0.0
    %2221 = vmatprep.subr.mxu0 0.0
    %2222 = vmatpush1.msra.mxu0 0.0
    %2223 = vmatprep.subr.mxu0 0.0
    %2224 = vmatpush1.msra.mxu0 0.0
    %2225 = vmatprep.subr.mxu0 0.0
    %2226 = vmatpush1.msra.mxu0 %v2200
    %2227 = vmatprep.subr.mxu0 0.0
    %2228 = vmatpush1.msra.mxu0 %v2199
    %2229 = vmatprep.subr.mxu0 0.0
    %2230 = vmatpush1.msra.mxu0 %v2198
    %2231 = vmatprep.subr.mxu0 0.0
    %2232 = vmatpush1.msra.mxu0 %v2197
    %2233 = vmatprep.subr.mxu0 0.0
    %2234 = vmatpush2.msra.mxu0 0.0
    %2235 = vmatprep.subr.mxu0 0.0
    %2236 = vmatpush2.msra.mxu0 0.0
    %2237 = vmatprep.subr.mxu0 0.0
    %2238 = vmatpush2.msra.mxu0 0.0
    %2239 = vmatprep.subr.mxu0 0.0
    %2240 = vmatpush2.msra.mxu0 0.0
    %2241 = vmatprep.subr.mxu0 0.0
    %2242 = vmatpush2.msra.mxu0 0.0
    %2243 = vmatprep.subr.mxu0 0.0
    %2244 = vmatpush2.msra.mxu0 0.0
    %2245 = vmatprep.subr.mxu0 0.0
    %2246 = vmatpush2.msra.mxu0 0.0
    %2247 = vmatprep.subr.mxu0 0.0
    %2248 = vmatpush2.msra.mxu0 0.0
    %2249 = vmatprep.subr.mxu0 0.0
    %2250 = vmatpush2.msra.mxu0 0.0
    %2251 = vmatprep.subr.mxu0 0.0
    %2252 = vmatpush2.msra.mxu0 0.0
    %2253 = vmatprep.subr.mxu0 0.0
    %2254 = vmatpush2.msra.mxu0 0.0
    %2255 = vmatprep.subr.mxu0 0.0
    %2256 = vmatpush2.msra.mxu0 0.0
    %2257 = vmatprep.subr.mxu0 0.0
    %2258 = vmatpush2.msra.mxu0 0.0
    %2259 = vmatprep.subr.mxu0 0.0
    %2260 = vmatpush2.msra.mxu0 0.0
    %2261 = vmatprep.subr.mxu0 0.0
    %2262 = vmatpush2.msra.mxu0 0.0
    %2263 = vmatprep.subr.mxu0 0.0
    %2264 = vmatpush2.msra.mxu0 0.0
    %2265 = vmatprep.mubr.f32.mxu0 0.0
    %2266 = vmatmul.mubr.f32.gmra.mxu0 %v2036
    %v2267 = vpop.f32.mrf.mxu0
    %v2268 = vadd.f32 0.0, %v2267
    %v2269 = vpop.f32.mrf.mxu0
    %2270 = vmatprep.mubr.f32.mxu0 0.0
    %2271 = vmatmul.mubr.f32.gmra.mxu0 %v2039
    %v2272 = vpop.f32.mrf.mxu0
    %v2273 = vadd.f32 0.0, %v2272
    %v2274 = vpop.f32.mrf.mxu0
    %2275 = vdwg.mxu0
    %v2277 = vsel %vm308, %v2108, 0
    %v2280 = vsel %vm308, %v2188, 0
    %2282 = vmatprep.subr.mxu0 0.0
    %2283 = vmatpush1.xpose.msra.mxu0 0.0
    %2284 = vmatprep.subr.mxu0 0.0
    %2285 = vmatpush1.xpose.msra.mxu0 0.0
    %2286 = vmatprep.subr.mxu0 0.0
    %2287 = vmatpush1.xpose.msra.mxu0 0.0
    %2288 = vmatprep.subr.mxu0 0.0
    %2289 = vmatpush1.xpose.msra.mxu0 0.0
    %2290 = vmatprep.subr.mxu0 0.0
    %2291 = vmatpush1.xpose.msra.mxu0 0.0
    %2292 = vmatprep.subr.mxu0 0.0
    %2293 = vmatpush1.xpose.msra.mxu0 0.0
    %2294 = vmatprep.subr.mxu0 0.0
    %2295 = vmatpush1.xpose.msra.mxu0 0.0
    %2296 = vmatprep.subr.mxu0 0.0
    %2297 = vmatpush1.xpose.msra.mxu0 0.0
    %2298 = vmatprep.subr.mxu0 0.0
    %2299 = vmatpush1.xpose.msra.mxu0 0.0
    %2300 = vmatprep.subr.mxu0 0.0
    %2301 = vmatpush1.xpose.msra.mxu0 0.0
    %2302 = vmatprep.subr.mxu0 0.0
    %2303 = vmatpush1.xpose.msra.mxu0 0.0
    %2304 = vmatprep.subr.mxu0 0.0
    %2305 = vmatpush1.xpose.msra.mxu0 0.0
    %2306 = vmatprep.subr.mxu0 0.0
    %2307 = vmatpush1.xpose.msra.mxu0 0.0
    %2308 = vmatprep.subr.mxu0 0.0
    %2309 = vmatpush1.xpose.msra.mxu0 0.0
    %2310 = vmatprep.subr.mxu0 0.0
    %2311 = vmatpush1.xpose.msra.mxu0 0.0
    %2312 = vmatprep.subr.mxu0 0.0
    %2313 = vmatpush1.xpose.msra.mxu0 %v2280
    %2314 = vmatprep.subr.mxu0 0.0
    %2315 = vmatpush2.xpose.msra.mxu0 0.0
    %2316 = vmatprep.subr.mxu0 0.0
    %2317 = vmatpush2.xpose.msra.mxu0 0.0
    %2318 = vmatprep.subr.mxu0 0.0
    %2319 = vmatpush2.xpose.msra.mxu0 0.0
    %2320 = vmatprep.subr.mxu0 0.0
    %2321 = vmatpush2.xpose.msra.mxu0 0.0
    %2322 = vmatprep.subr.mxu0 0.0
    %2323 = vmatpush2.xpose.msra.mxu0 0.0
    %2324 = vmatprep.subr.mxu0 0.0
    %2325 = vmatpush2.xpose.msra.mxu0 0.0
    %2326 = vmatprep.subr.mxu0 0.0
    %2327 = vmatpush2.xpose.msra.mxu0 0.0
    %2328 = vmatprep.subr.mxu0 0.0
    %2329 = vmatpush2.xpose.msra.mxu0 0.0
    %2330 = vmatprep.subr.mxu0 0.0
    %2331 = vmatpush2.xpose.msra.mxu0 0.0
    %2332 = vmatprep.subr.mxu0 0.0
    %2333 = vmatpush2.xpose.msra.mxu0 0.0
    %2334 = vmatprep.subr.mxu0 0.0
    %2335 = vmatpush2.xpose.msra.mxu0 0.0
    %2336 = vmatprep.subr.mxu0 0.0
    %2337 = vmatpush2.xpose.msra.mxu0 0.0
    %2338 = vmatprep.subr.mxu0 0.0
    %2339 = vmatpush2.xpose.msra.mxu0 0.0
    %2340 = vmatprep.subr.mxu0 0.0
    %2341 = vmatpush2.xpose.msra.mxu0 0.0
    %2342 = vmatprep.subr.mxu0 0.0
    %2343 = vmatpush2.xpose.msra.mxu0 0.0
    %2344 = vmatprep.subr.mxu0 0.0
    %2345 = vmatpush2.xpose.msra.mxu0 0.0
    %2346 = vmatprep.mubr.f32.mxu0 0.0
    %2347 = vmatmul.mubr.f32.gmra.mxu0 %v2277
    %v2348 = vpop.f32.mrf.mxu0
    %v2349 = vadd.f32 0.0, %v2348
    %v2350 = vpop.f32.mrf.mxu0
    %2351 = vdwg.mxu0
    %v2353 = vsel %vm308, %v2113, 0
    %v2356 = vsel %vm308, %v2193, 0
    %2358 = vmatprep.subr.mxu0 0.0
    %2359 = vmatpush1.xpose.msra.mxu0 0.0
    %2360 = vmatprep.subr.mxu0 0.0
    %2361 = vmatpush1.xpose.msra.mxu0 0.0
    %2362 = vmatprep.subr.mxu0 0.0
    %2363 = vmatpush1.xpose.msra.mxu0 0.0
    %2364 = vmatprep.subr.mxu0 0.0
    %2365 = vmatpush1.xpose.msra.mxu0 0.0
    %2366 = vmatprep.subr.mxu0 0.0
    %2367 = vmatpush1.xpose.msra.mxu0 0.0
    %2368 = vmatprep.subr.mxu0 0.0
    %2369 = vmatpush1.xpose.msra.mxu0 0.0
    %2370 = vmatprep.subr.mxu0 0.0
    %2371 = vmatpush1.xpose.msra.mxu0 0.0
    %2372 = vmatprep.subr.mxu0 0.0
    %2373 = vmatpush1.xpose.msra.mxu0 0.0
    %2374 = vmatprep.subr.mxu0 0.0
    %2375 = vmatpush1.xpose.msra.mxu0 0.0
    %2376 = vmatprep.subr.mxu0 0.0
    %2377 = vmatpush1.xpose.msra.mxu0 0.0
    %2378 = vmatprep.subr.mxu0 0.0
    %2379 = vmatpush1.xpose.msra.mxu0 0.0
    %2380 = vmatprep.subr.mxu0 0.0
    %2381 = vmatpush1.xpose.msra.mxu0 0.0
    %2382 = vmatprep.subr.mxu0 0.0
    %2383 = vmatpush1.xpose.msra.mxu0 0.0
    %2384 = vmatprep.subr.mxu0 0.0
    %2385 = vmatpush1.xpose.msra.mxu0 0.0
    %2386 = vmatprep.subr.mxu0 0.0
    %2387 = vmatpush1.xpose.msra.mxu0 0.0
    %2388 = vmatprep.subr.mxu0 0.0
    %2389 = vmatpush1.xpose.msra.mxu0 %v2356
    %2390 = vmatprep.subr.mxu0 0.0
    %2391 = vmatpush2.xpose.msra.mxu0 0.0
    %2392 = vmatprep.subr.mxu0 0.0
    %2393 = vmatpush2.xpose.msra.mxu0 0.0
    %2394 = vmatprep.subr.mxu0 0.0
    %2395 = vmatpush2.xpose.msra.mxu0 0.0
    %2396 = vmatprep.subr.mxu0 0.0
    %2397 = vmatpush2.xpose.msra.mxu0 0.0
    %2398 = vmatprep.subr.mxu0 0.0
    %2399 = vmatpush2.xpose.msra.mxu0 0.0
    %2400 = vmatprep.subr.mxu0 0.0
    %2401 = vmatpush2.xpose.msra.mxu0 0.0
    %2402 = vmatprep.subr.mxu0 0.0
    %2403 = vmatpush2.xpose.msra.mxu0 0.0
    %2404 = vmatprep.subr.mxu0 0.0
    %2405 = vmatpush2.xpose.msra.mxu0 0.0
    %2406 = vmatprep.subr.mxu0 0.0
    %2407 = vmatpush2.xpose.msra.mxu0 0.0
    %2408 = vmatprep.subr.mxu0 0.0
    %2409 = vmatpush2.xpose.msra.mxu0 0.0
    %2410 = vmatprep.subr.mxu0 0.0
    %2411 = vmatpush2.xpose.msra.mxu0 0.0
    %2412 = vmatprep.subr.mxu0 0.0
    %2413 = vmatpush2.xpose.msra.mxu0 0.0
    %2414 = vmatprep.subr.mxu0 0.0
    %2415 = vmatpush2.xpose.msra.mxu0 0.0
    %2416 = vmatprep.subr.mxu0 0.0
    %2417 = vmatpush2.xpose.msra.mxu0 0.0
    %2418 = vmatprep.subr.mxu0 0.0
    %2419 = vmatpush2.xpose.msra.mxu0 0.0
    %2420 = vmatprep.subr.mxu0 0.0
    %2421 = vmatpush2.xpose.msra.mxu0 0.0
    %2422 = vmatprep.mubr.f32.mxu0 0.0
    %2423 = vmatmul.mubr.f32.gmra.mxu0 %v2353
    %v2424 = vpop.f32.mrf.mxu0
    %v2425 = vadd.f32 0.0, %v2424
    %v2426 = vpop.f32.mrf.mxu0
    %2427 = vdwg.mxu0
    %v2428 = vsel %vm308, %v2349, -inf
    %2429 = vmax.xlane.f32.xlu0 %v2428
    %v2430 = vpop.xlane.xlu0 %2429
    %v2431 = vsel %vm308, %v2425, -inf
    %2432 = vmax.xlane.f32.xlu0 %v2431
    %v2433 = vpop.xlane.xlu0 %2432
    %v2434 = vsub.f32 %v2349, %v2430
    %v2435 = vsub.f32 %v2425, %v2433
    %v2436 = vmul.f32 %v2434, 1.442695
    %v2437 = vpow.pop %v2436
    %v2438 = vmul.f32 %v2435, 1.442695
    %v2439 = vpow.pop %v2438
    %v2440 = vsel %vm308, %v2437, 0.0
    %2441 = vadd.xlane.f32.xlu0 %v2440
    %v2442 = vpop.xlane.xlu0 %2441
    %v2443 = vsel %vm308, %v2439, 0.0
    %2444 = vadd.xlane.f32.xlu0 %v2443
    %v2445 = vpop.xlane.xlu0 %2444
    %v2446 = vrcp.pop %v2442
    %v2447 = vrcp.pop %v2445
    %v2448 = vmul.f32 %v2437, %v2446
    %v2449 = vmul.f32 %v2439, %v2447
    %v2451 = vsel %vm308, %v2448, 0
    %2453 = vmatprep.subr.mxu0 0.0
    %2454 = vmatpush1.msra.mxu0 0.0
    %2455 = vmatprep.subr.mxu0 0.0
    %2456 = vmatpush1.msra.mxu0 0.0
    %2457 = vmatprep.subr.mxu0 0.0
    %2458 = vmatpush1.msra.mxu0 0.0
    %2459 = vmatprep.subr.mxu0 0.0
    %2460 = vmatpush1.msra.mxu0 0.0
    %2461 = vmatprep.subr.mxu0 0.0
    %2462 = vmatpush1.msra.mxu0 0.0
    %2463 = vmatprep.subr.mxu0 0.0
    %2464 = vmatpush1.msra.mxu0 0.0
    %2465 = vmatprep.subr.mxu0 0.0
    %2466 = vmatpush1.msra.mxu0 0.0
    %2467 = vmatprep.subr.mxu0 0.0
    %2468 = vmatpush1.msra.mxu0 0.0
    %2469 = vmatprep.subr.mxu0 0.0
    %2470 = vmatpush1.msra.mxu0 0.0
    %2471 = vmatprep.subr.mxu0 0.0
    %2472 = vmatpush1.msra.mxu0 0.0
    %2473 = vmatprep.subr.mxu0 0.0
    %2474 = vmatpush1.msra.mxu0 0.0
    %2475 = vmatprep.subr.mxu0 0.0
    %2476 = vmatpush1.msra.mxu0 0.0
    %2477 = vmatprep.subr.mxu0 0.0
    %2478 = vmatpush1.msra.mxu0 0.0
    %2479 = vmatprep.subr.mxu0 0.0
    %2480 = vmatpush1.msra.mxu0 0.0
    %2481 = vmatprep.subr.mxu0 0.0
    %2482 = vmatpush1.msra.mxu0 0.0
    %2483 = vmatprep.subr.mxu0 0.0
    %2484 = vmatpush1.msra.mxu0 %v2268
    %2485 = vmatprep.subr.mxu0 0.0
    %2486 = vmatpush2.msra.mxu0 0.0
    %2487 = vmatprep.subr.mxu0 0.0
    %2488 = vmatpush2.msra.mxu0 0.0
    %2489 = vmatprep.subr.mxu0 0.0
    %2490 = vmatpush2.msra.mxu0 0.0
    %2491 = vmatprep.subr.mxu0 0.0
    %2492 = vmatpush2.msra.mxu0 0.0
    %2493 = vmatprep.subr.mxu0 0.0
    %2494 = vmatpush2.msra.mxu0 0.0
    %2495 = vmatprep.subr.mxu0 0.0
    %2496 = vmatpush2.msra.mxu0 0.0
    %2497 = vmatprep.subr.mxu0 0.0
    %2498 = vmatpush2.msra.mxu0 0.0
    %2499 = vmatprep.subr.mxu0 0.0
    %2500 = vmatpush2.msra.mxu0 0.0
    %2501 = vmatprep.subr.mxu0 0.0
    %2502 = vmatpush2.msra.mxu0 0.0
    %2503 = vmatprep.subr.mxu0 0.0
    %2504 = vmatpush2.msra.mxu0 0.0
    %2505 = vmatprep.subr.mxu0 0.0
    %2506 = vmatpush2.msra.mxu0 0.0
    %2507 = vmatprep.subr.mxu0 0.0
    %2508 = vmatpush2.msra.mxu0 0.0
    %2509 = vmatprep.subr.mxu0 0.0
    %2510 = vmatpush2.msra.mxu0 0.0
    %2511 = vmatprep.subr.mxu0 0.0
    %2512 = vmatpush2.msra.mxu0 0.0
    %2513 = vmatprep.subr.mxu0 0.0
    %2514 = vmatpush2.msra.mxu0 0.0
    %2515 = vmatprep.subr.mxu0 0.0
    %2516 = vmatpush2.msra.mxu0 0.0
    %2517 = vmatprep.mubr.f32.mxu0 0.0
    %2518 = vmatmul.mubr.f32.gmra.mxu0 %v2451
    %v2519 = vpop.f32.mrf.mxu0
    %v2520 = vadd.f32 0.0, %v2519
    %v2521 = vpop.f32.mrf.mxu0
    %2522 = vdwg.mxu0
    %v2524 = vsel %vm308, %v2449, 0
    %2526 = vmatprep.subr.mxu0 0.0
    %2527 = vmatpush1.msra.mxu0 0.0
    %2528 = vmatprep.subr.mxu0 0.0
    %2529 = vmatpush1.msra.mxu0 0.0
    %2530 = vmatprep.subr.mxu0 0.0
    %2531 = vmatpush1.msra.mxu0 0.0
    %2532 = vmatprep.subr.mxu0 0.0
    %2533 = vmatpush1.msra.mxu0 0.0
    %2534 = vmatprep.subr.mxu0 0.0
    %2535 = vmatpush1.msra.mxu0 0.0
    %2536 = vmatprep.subr.mxu0 0.0
    %2537 = vmatpush1.msra.mxu0 0.0
    %2538 = vmatprep.subr.mxu0 0.0
    %2539 = vmatpush1.msra.mxu0 0.0
    %2540 = vmatprep.subr.mxu0 0.0
    %2541 = vmatpush1.msra.mxu0 0.0
    %2542 = vmatprep.subr.mxu0 0.0
    %2543 = vmatpush1.msra.mxu0 0.0
    %2544 = vmatprep.subr.mxu0 0.0
    %2545 = vmatpush1.msra.mxu0 0.0
    %2546 = vmatprep.subr.mxu0 0.0
    %2547 = vmatpush1.msra.mxu0 0.0
    %2548 = vmatprep.subr.mxu0 0.0
    %2549 = vmatpush1.msra.mxu0 0.0
    %2550 = vmatprep.subr.mxu0 0.0
    %2551 = vmatpush1.msra.mxu0 0.0
    %2552 = vmatprep.subr.mxu0 0.0
    %2553 = vmatpush1.msra.mxu0 0.0
    %2554 = vmatprep.subr.mxu0 0.0
    %2555 = vmatpush1.msra.mxu0 0.0
    %2556 = vmatprep.subr.mxu0 0.0
    %2557 = vmatpush1.msra.mxu0 %v2273
    %2558 = vmatprep.subr.mxu0 0.0
    %2559 = vmatpush2.msra.mxu0 0.0
    %2560 = vmatprep.subr.mxu0 0.0
    %2561 = vmatpush2.msra.mxu0 0.0
    %2562 = vmatprep.subr.mxu0 0.0
    %2563 = vmatpush2.msra.mxu0 0.0
    %2564 = vmatprep.subr.mxu0 0.0
    %2565 = vmatpush2.msra.mxu0 0.0
    %2566 = vmatprep.subr.mxu0 0.0
    %2567 = vmatpush2.msra.mxu0 0.0
    %2568 = vmatprep.subr.mxu0 0.0
    %2569 = vmatpush2.msra.mxu0 0.0
    %2570 = vmatprep.subr.mxu0 0.0
    %2571 = vmatpush2.msra.mxu0 0.0
    %2572 = vmatprep.subr.mxu0 0.0
    %2573 = vmatpush2.msra.mxu0 0.0
    %2574 = vmatprep.subr.mxu0 0.0
    %2575 = vmatpush2.msra.mxu0 0.0
    %2576 = vmatprep.subr.mxu0 0.0
    %2577 = vmatpush2.msra.mxu0 0.0
    %2578 = vmatprep.subr.mxu0 0.0
    %2579 = vmatpush2.msra.mxu0 0.0
    %2580 = vmatprep.subr.mxu0 0.0
    %2581 = vmatpush2.msra.mxu0 0.0
    %2582 = vmatprep.subr.mxu0 0.0
    %2583 = vmatpush2.msra.mxu0 0.0
    %2584 = vmatprep.subr.mxu0 0.0
    %2585 = vmatpush2.msra.mxu0 0.0
    %2586 = vmatprep.subr.mxu0 0.0
    %2587 = vmatpush2.msra.mxu0 0.0
    %2588 = vmatprep.subr.mxu0 0.0
    %2589 = vmatpush2.msra.mxu0 0.0
    %2590 = vmatprep.mubr.f32.mxu0 0.0
    %2591 = vmatmul.mubr.f32.gmra.mxu0 %v2524
    %v2592 = vpop.f32.mrf.mxu0
    %v2593 = vadd.f32 0.0, %v2592
    %v2594 = vpop.f32.mrf.mxu0
    %2595 = vdwg.mxu0
    %2596 = vrot.lane.b32.xlu0 %v2108, 120
    %v2597 = vpop.permute.xlu0 %2596
    %2598 = vrot.lane.b32.xlu0 %v2188, 120
    %v2599 = vpop.permute.xlu0 %2598
    %v2600 = vsel %vm308, %v2597, 0
    %v2602 = vsel %vm308, %v2599, 0
    %2604 = vmatprep.subr.mxu0 0.0
    %2605 = vmatpush1.xpose.msra.mxu0 0.0
    %2606 = vmatprep.subr.mxu0 0.0
    %2607 = vmatpush1.xpose.msra.mxu0 0.0
    %2608 = vmatprep.subr.mxu0 0.0
    %2609 = vmatpush1.xpose.msra.mxu0 0.0
    %2610 = vmatprep.subr.mxu0 0.0
    %2611 = vmatpush1.xpose.msra.mxu0 0.0
    %2612 = vmatprep.subr.mxu0 0.0
    %2613 = vmatpush1.xpose.msra.mxu0 0.0
    %2614 = vmatprep.subr.mxu0 0.0
    %2615 = vmatpush1.xpose.msra.mxu0 0.0
    %2616 = vmatprep.subr.mxu0 0.0
    %2617 = vmatpush1.xpose.msra.mxu0 0.0
    %2618 = vmatprep.subr.mxu0 0.0
    %2619 = vmatpush1.xpose.msra.mxu0 0.0
    %2620 = vmatprep.subr.mxu0 0.0
    %2621 = vmatpush1.xpose.msra.mxu0 0.0
    %2622 = vmatprep.subr.mxu0 0.0
    %2623 = vmatpush1.xpose.msra.mxu0 0.0
    %2624 = vmatprep.subr.mxu0 0.0
    %2625 = vmatpush1.xpose.msra.mxu0 0.0
    %2626 = vmatprep.subr.mxu0 0.0
    %2627 = vmatpush1.xpose.msra.mxu0 0.0
    %2628 = vmatprep.subr.mxu0 0.0
    %2629 = vmatpush1.xpose.msra.mxu0 0.0
    %2630 = vmatprep.subr.mxu0 0.0
    %2631 = vmatpush1.xpose.msra.mxu0 0.0
    %2632 = vmatprep.subr.mxu0 0.0
    %2633 = vmatpush1.xpose.msra.mxu0 0.0
    %2634 = vmatprep.subr.mxu0 0.0
    %2635 = vmatpush1.xpose.msra.mxu0 %v2602
    %2636 = vmatprep.subr.mxu0 0.0
    %2637 = vmatpush2.xpose.msra.mxu0 0.0
    %2638 = vmatprep.subr.mxu0 0.0
    %2639 = vmatpush2.xpose.msra.mxu0 0.0
    %2640 = vmatprep.subr.mxu0 0.0
    %2641 = vmatpush2.xpose.msra.mxu0 0.0
    %2642 = vmatprep.subr.mxu0 0.0
    %2643 = vmatpush2.xpose.msra.mxu0 0.0
    %2644 = vmatprep.subr.mxu0 0.0
    %2645 = vmatpush2.xpose.msra.mxu0 0.0
    %2646 = vmatprep.subr.mxu0 0.0
    %2647 = vmatpush2.xpose.msra.mxu0 0.0
    %2648 = vmatprep.subr.mxu0 0.0
    %2649 = vmatpush2.xpose.msra.mxu0 0.0
    %2650 = vmatprep.subr.mxu0 0.0
    %2651 = vmatpush2.xpose.msra.mxu0 0.0
    %2652 = vmatprep.subr.mxu0 0.0
    %2653 = vmatpush2.xpose.msra.mxu0 0.0
    %2654 = vmatprep.subr.mxu0 0.0
    %2655 = vmatpush2.xpose.msra.mxu0 0.0
    %2656 = vmatprep.subr.mxu0 0.0
    %2657 = vmatpush2.xpose.msra.mxu0 0.0
    %2658 = vmatprep.subr.mxu0 0.0
    %2659 = vmatpush2.xpose.msra.mxu0 0.0
    %2660 = vmatprep.subr.mxu0 0.0
    %2661 = vmatpush2.xpose.msra.mxu0 0.0
    %2662 = vmatprep.subr.mxu0 0.0
    %2663 = vmatpush2.xpose.msra.mxu0 0.0
    %2664 = vmatprep.subr.mxu0 0.0
    %2665 = vmatpush2.xpose.msra.mxu0 0.0
    %2666 = vmatprep.subr.mxu0 0.0
    %2667 = vmatpush2.xpose.msra.mxu0 0.0
    %2668 = vmatprep.mubr.f32.mxu0 0.0
    %2669 = vmatmul.mubr.f32.gmra.mxu0 %v2600
    %v2670 = vpop.f32.mrf.mxu0
    %v2671 = vadd.f32 0.0, %v2670
    %v2672 = vpop.f32.mrf.mxu0
    %2673 = vdwg.mxu0
    %2674 = vrot.lane.b32.xlu0 %v2113, 120
    %v2675 = vpop.permute.xlu0 %2674
    %2676 = vrot.lane.b32.xlu0 %v2193, 120
    %v2677 = vpop.permute.xlu0 %2676
    %v2678 = vsel %vm308, %v2675, 0
    %v2680 = vsel %vm308, %v2677, 0
    %2682 = vmatprep.subr.mxu0 0.0
    %2683 = vmatpush1.xpose.msra.mxu0 0.0
    %2684 = vmatprep.subr.mxu0 0.0
    %2685 = vmatpush1.xpose.msra.mxu0 0.0
    %2686 = vmatprep.subr.mxu0 0.0
    %2687 = vmatpush1.xpose.msra.mxu0 0.0
    %2688 = vmatprep.subr.mxu0 0.0
    %2689 = vmatpush1.xpose.msra.mxu0 0.0
    %2690 = vmatprep.subr.mxu0 0.0
    %2691 = vmatpush1.xpose.msra.mxu0 0.0
    %2692 = vmatprep.subr.mxu0 0.0
    %2693 = vmatpush1.xpose.msra.mxu0 0.0
    %2694 = vmatprep.subr.mxu0 0.0
    %2695 = vmatpush1.xpose.msra.mxu0 0.0
    %2696 = vmatprep.subr.mxu0 0.0
    %2697 = vmatpush1.xpose.msra.mxu0 0.0
    %2698 = vmatprep.subr.mxu0 0.0
    %2699 = vmatpush1.xpose.msra.mxu0 0.0
    %2700 = vmatprep.subr.mxu0 0.0
    %2701 = vmatpush1.xpose.msra.mxu0 0.0
    %2702 = vmatprep.subr.mxu0 0.0
    %2703 = vmatpush1.xpose.msra.mxu0 0.0
    %2704 = vmatprep.subr.mxu0 0.0
    %2705 = vmatpush1.xpose.msra.mxu0 0.0
    %2706 = vmatprep.subr.mxu0 0.0
    %2707 = vmatpush1.xpose.msra.mxu0 0.0
    %2708 = vmatprep.subr.mxu0 0.0
    %2709 = vmatpush1.xpose.msra.mxu0 0.0
    %2710 = vmatprep.subr.mxu0 0.0
    %2711 = vmatpush1.xpose.msra.mxu0 0.0
    %2712 = vmatprep.subr.mxu0 0.0
    %2713 = vmatpush1.xpose.msra.mxu0 %v2680
    %2714 = vmatprep.subr.mxu0 0.0
    %2715 = vmatpush2.xpose.msra.mxu0 0.0
    %2716 = vmatprep.subr.mxu0 0.0
    %2717 = vmatpush2.xpose.msra.mxu0 0.0
    %2718 = vmatprep.subr.mxu0 0.0
    %2719 = vmatpush2.xpose.msra.mxu0 0.0
    %2720 = vmatprep.subr.mxu0 0.0
    %2721 = vmatpush2.xpose.msra.mxu0 0.0
    %2722 = vmatprep.subr.mxu0 0.0
    %2723 = vmatpush2.xpose.msra.mxu0 0.0
    %2724 = vmatprep.subr.mxu0 0.0
    %2725 = vmatpush2.xpose.msra.mxu0 0.0
    %2726 = vmatprep.subr.mxu0 0.0
    %2727 = vmatpush2.xpose.msra.mxu0 0.0
    %2728 = vmatprep.subr.mxu0 0.0
    %2729 = vmatpush2.xpose.msra.mxu0 0.0
    %2730 = vmatprep.subr.mxu0 0.0
    %2731 = vmatpush2.xpose.msra.mxu0 0.0
    %2732 = vmatprep.subr.mxu0 0.0
    %2733 = vmatpush2.xpose.msra.mxu0 0.0
    %2734 = vmatprep.subr.mxu0 0.0
    %2735 = vmatpush2.xpose.msra.mxu0 0.0
    %2736 = vmatprep.subr.mxu0 0.0
    %2737 = vmatpush2.xpose.msra.mxu0 0.0
    %2738 = vmatprep.subr.mxu0 0.0
    %2739 = vmatpush2.xpose.msra.mxu0 0.0
    %2740 = vmatprep.subr.mxu0 0.0
    %2741 = vmatpush2.xpose.msra.mxu0 0.0
    %2742 = vmatprep.subr.mxu0 0.0
    %2743 = vmatpush2.xpose.msra.mxu0 0.0
    %2744 = vmatprep.subr.mxu0 0.0
    %2745 = vmatpush2.xpose.msra.mxu0 0.0
    %2746 = vmatprep.mubr.f32.mxu0 0.0
    %2747 = vmatmul.mubr.f32.gmra.mxu0 %v2678
    %v2748 = vpop.f32.mrf.mxu0
    %v2749 = vadd.f32 0.0, %v2748
    %v2750 = vpop.f32.mrf.mxu0
    %2751 = vdwg.mxu0
    %v2752 = vsel %vm308, %v2671, -inf
    %2753 = vmax.xlane.f32.xlu0 %v2752
    %v2754 = vpop.xlane.xlu0 %2753
    %v2755 = vsel %vm308, %v2749, -inf
    %2756 = vmax.xlane.f32.xlu0 %v2755
    %v2757 = vpop.xlane.xlu0 %2756
    %v2758 = vsub.f32 %v2671, %v2754
    %v2759 = vsub.f32 %v2749, %v2757
    %v2760 = vmul.f32 %v2758, 1.442695
    %v2761 = vpow.pop %v2760
    %v2762 = vmul.f32 %v2759, 1.442695
    %v2763 = vpow.pop %v2762
    %v2764 = vsel %vm308, %v2761, 0.0
    %2765 = vadd.xlane.f32.xlu0 %v2764
    %v2766 = vpop.xlane.xlu0 %2765
    %v2767 = vsel %vm308, %v2763, 0.0
    %2768 = vadd.xlane.f32.xlu0 %v2767
    %v2769 = vpop.xlane.xlu0 %2768
    %v2770 = vrcp.pop %v2766
    %v2771 = vrcp.pop %v2769
    %v2772 = vmul.f32 %v2761, %v2770
    %v2773 = vmul.f32 %v2763, %v2771
    %2775 = vrot.lane.b32.xlu0 %v2268, 120
    %v2776 = vpop.permute.xlu0 %2775
    %v2779 = vsel %vm308, %v2772, 0
    %2781 = vmatprep.subr.mxu0 0.0
    %2782 = vmatpush1.msra.mxu0 0.0
    %2783 = vmatprep.subr.mxu0 0.0
    %2784 = vmatpush1.msra.mxu0 0.0
    %2785 = vmatprep.subr.mxu0 0.0
    %2786 = vmatpush1.msra.mxu0 0.0
    %2787 = vmatprep.subr.mxu0 0.0
    %2788 = vmatpush1.msra.mxu0 0.0
    %2789 = vmatprep.subr.mxu0 0.0
    %2790 = vmatpush1.msra.mxu0 0.0
    %2791 = vmatprep.subr.mxu0 0.0
    %2792 = vmatpush1.msra.mxu0 0.0
    %2793 = vmatprep.subr.mxu0 0.0
    %2794 = vmatpush1.msra.mxu0 0.0
    %2795 = vmatprep.subr.mxu0 0.0
    %2796 = vmatpush1.msra.mxu0 0.0
    %2797 = vmatprep.subr.mxu0 0.0
    %2798 = vmatpush1.msra.mxu0 0.0
    %2799 = vmatprep.subr.mxu0 0.0
    %2800 = vmatpush1.msra.mxu0 0.0
    %2801 = vmatprep.subr.mxu0 0.0
    %2802 = vmatpush1.msra.mxu0 0.0
    %2803 = vmatprep.subr.mxu0 0.0
    %2804 = vmatpush1.msra.mxu0 0.0
    %2805 = vmatprep.subr.mxu0 0.0
    %2806 = vmatpush1.msra.mxu0 0.0
    %2807 = vmatprep.subr.mxu0 0.0
    %2808 = vmatpush1.msra.mxu0 0.0
    %2809 = vmatprep.subr.mxu0 0.0
    %2810 = vmatpush1.msra.mxu0 0.0
    %2811 = vmatprep.subr.mxu0 0.0
    %2812 = vmatpush1.msra.mxu0 %v2776
    %2813 = vmatprep.subr.mxu0 0.0
    %2814 = vmatpush2.msra.mxu0 0.0
    %2815 = vmatprep.subr.mxu0 0.0
    %2816 = vmatpush2.msra.mxu0 0.0
    %2817 = vmatprep.subr.mxu0 0.0
    %2818 = vmatpush2.msra.mxu0 0.0
    %2819 = vmatprep.subr.mxu0 0.0
    %2820 = vmatpush2.msra.mxu0 0.0
    %2821 = vmatprep.subr.mxu0 0.0
    %2822 = vmatpush2.msra.mxu0 0.0
    %2823 = vmatprep.subr.mxu0 0.0
    %2824 = vmatpush2.msra.mxu0 0.0
    %2825 = vmatprep.subr.mxu0 0.0
    %2826 = vmatpush2.msra.mxu0 0.0
    %2827 = vmatprep.subr.mxu0 0.0
    %2828 = vmatpush2.msra.mxu0 0.0
    %2829 = vmatprep.subr.mxu0 0.0
    %2830 = vmatpush2.msra.mxu0 0.0
    %2831 = vmatprep.subr.mxu0 0.0
    %2832 = vmatpush2.msra.mxu0 0.0
    %2833 = vmatprep.subr.mxu0 0.0
    %2834 = vmatpush2.msra.mxu0 0.0
    %2835 = vmatprep.subr.mxu0 0.0
    %2836 = vmatpush2.msra.mxu0 0.0
    %2837 = vmatprep.subr.mxu0 0.0
    %2838 = vmatpush2.msra.mxu0 0.0
    %2839 = vmatprep.subr.mxu0 0.0
    %2840 = vmatpush2.msra.mxu0 0.0
    %2841 = vmatprep.subr.mxu0 0.0
    %2842 = vmatpush2.msra.mxu0 0.0
    %2843 = vmatprep.subr.mxu0 0.0
    %2844 = vmatpush2.msra.mxu0 0.0
    %2845 = vmatprep.mubr.f32.mxu0 0.0
    %2846 = vmatmul.mubr.f32.gmra.mxu0 %v2779
    %v2847 = vpop.f32.mrf.mxu0
    %v2848 = vadd.f32 0.0, %v2847
    %v2849 = vpop.f32.mrf.mxu0
    %2850 = vdwg.mxu0
    %2852 = vrot.lane.b32.xlu0 %v2273, 120
    %v2853 = vpop.permute.xlu0 %2852
    %v2856 = vsel %vm308, %v2773, 0
    %2858 = vmatprep.subr.mxu0 0.0
    %2859 = vmatpush1.msra.mxu0 0.0
    %2860 = vmatprep.subr.mxu0 0.0
    %2861 = vmatpush1.msra.mxu0 0.0
    %2862 = vmatprep.subr.mxu0 0.0
    %2863 = vmatpush1.msra.mxu0 0.0
    %2864 = vmatprep.subr.mxu0 0.0
    %2865 = vmatpush1.msra.mxu0 0.0
    %2866 = vmatprep.subr.mxu0 0.0
    %2867 = vmatpush1.msra.mxu0 0.0
    %2868 = vmatprep.subr.mxu0 0.0
    %2869 = vmatpush1.msra.mxu0 0.0
    %2870 = vmatprep.subr.mxu0 0.0
    %2871 = vmatpush1.msra.mxu0 0.0
    %2872 = vmatprep.subr.mxu0 0.0
    %2873 = vmatpush1.msra.mxu0 0.0
    %2874 = vmatprep.subr.mxu0 0.0
    %2875 = vmatpush1.msra.mxu0 0.0
    %2876 = vmatprep.subr.mxu0 0.0
    %2877 = vmatpush1.msra.mxu0 0.0
    %2878 = vmatprep.subr.mxu0 0.0
    %2879 = vmatpush1.msra.mxu0 0.0
    %2880 = vmatprep.subr.mxu0 0.0
    %2881 = vmatpush1.msra.mxu0 0.0
    %2882 = vmatprep.subr.mxu0 0.0
    %2883 = vmatpush1.msra.mxu0 0.0
    %2884 = vmatprep.subr.mxu0 0.0
    %2885 = vmatpush1.msra.mxu0 0.0
    %2886 = vmatprep.subr.mxu0 0.0
    %2887 = vmatpush1.msra.mxu0 0.0
    %2888 = vmatprep.subr.mxu0 0.0
    %2889 = vmatpush1.msra.mxu0 %v2853
    %2890 = vmatprep.subr.mxu0 0.0
    %2891 = vmatpush2.msra.mxu0 0.0
    %2892 = vmatprep.subr.mxu0 0.0
    %2893 = vmatpush2.msra.mxu0 0.0
    %2894 = vmatprep.subr.mxu0 0.0
    %2895 = vmatpush2.msra.mxu0 0.0
    %2896 = vmatprep.subr.mxu0 0.0
    %2897 = vmatpush2.msra.mxu0 0.0
    %2898 = vmatprep.subr.mxu0 0.0
    %2899 = vmatpush2.msra.mxu0 0.0
    %2900 = vmatprep.subr.mxu0 0.0
    %2901 = vmatpush2.msra.mxu0 0.0
    %2902 = vmatprep.subr.mxu0 0.0
    %2903 = vmatpush2.msra.mxu0 0.0
    %2904 = vmatprep.subr.mxu0 0.0
    %2905 = vmatpush2.msra.mxu0 0.0
    %2906 = vmatprep.subr.mxu0 0.0
    %2907 = vmatpush2.msra.mxu0 0.0
    %2908 = vmatprep.subr.mxu0 0.0
    %2909 = vmatpush2.msra.mxu0 0.0
    %2910 = vmatprep.subr.mxu0 0.0
    %2911 = vmatpush2.msra.mxu0 0.0
    %2912 = vmatprep.subr.mxu0 0.0
    %2913 = vmatpush2.msra.mxu0 0.0
    %2914 = vmatprep.subr.mxu0 0.0
    %2915 = vmatpush2.msra.mxu0 0.0
    %2916 = vmatprep.subr.mxu0 0.0
    %2917 = vmatpush2.msra.mxu0 0.0
    %2918 = vmatprep.subr.mxu0 0.0
    %2919 = vmatpush2.msra.mxu0 0.0
    %2920 = vmatprep.subr.mxu0 0.0
    %2921 = vmatpush2.msra.mxu0 0.0
    %2922 = vmatprep.mubr.f32.mxu0 0.0
    %2923 = vmatmul.mubr.f32.gmra.mxu0 %v2856
    %v2924 = vpop.f32.mrf.mxu0
    %v2925 = vadd.f32 0.0, %v2924
    %v2926 = vpop.f32.mrf.mxu0
    %2927 = vdwg.mxu0
    %2928 = vrot.lane.b32.xlu0 %v2108, 112
    %v2929 = vpop.permute.xlu0 %2928
    %2930 = vrot.lane.b32.xlu0 %v2188, 112
    %v2931 = vpop.permute.xlu0 %2930
    %v2932 = vsel %vm308, %v2929, 0
    %v2934 = vsel %vm308, %v2931, 0
    %2936 = vmatprep.subr.mxu0 0.0
    %2937 = vmatpush1.xpose.msra.mxu0 0.0
    %2938 = vmatprep.subr.mxu0 0.0
    %2939 = vmatpush1.xpose.msra.mxu0 0.0
    %2940 = vmatprep.subr.mxu0 0.0
    %2941 = vmatpush1.xpose.msra.mxu0 0.0
    %2942 = vmatprep.subr.mxu0 0.0
    %2943 = vmatpush1.xpose.msra.mxu0 0.0
    %2944 = vmatprep.subr.mxu0 0.0
    %2945 = vmatpush1.xpose.msra.mxu0 0.0
    %2946 = vmatprep.subr.mxu0 0.0
    %2947 = vmatpush1.xpose.msra.mxu0 0.0
    %2948 = vmatprep.subr.mxu0 0.0
    %2949 = vmatpush1.xpose.msra.mxu0 0.0
    %2950 = vmatprep.subr.mxu0 0.0
    %2951 = vmatpush1.xpose.msra.mxu0 0.0
    %2952 = vmatprep.subr.mxu0 0.0
    %2953 = vmatpush1.xpose.msra.mxu0 0.0
    %2954 = vmatprep.subr.mxu0 0.0
    %2955 = vmatpush1.xpose.msra.mxu0 0.0
    %2956 = vmatprep.subr.mxu0 0.0
    %2957 = vmatpush1.xpose.msra.mxu0 0.0
    %2958 = vmatprep.subr.mxu0 0.0
    %2959 = vmatpush1.xpose.msra.mxu0 0.0
    %2960 = vmatprep.subr.mxu0 0.0
    %2961 = vmatpush1.xpose.msra.mxu0 0.0
    %2962 = vmatprep.subr.mxu0 0.0
    %2963 = vmatpush1.xpose.msra.mxu0 0.0
    %2964 = vmatprep.subr.mxu0 0.0
    %2965 = vmatpush1.xpose.msra.mxu0 0.0
    %2966 = vmatprep.subr.mxu0 0.0
    %2967 = vmatpush1.xpose.msra.mxu0 %v2934
    %2968 = vmatprep.subr.mxu0 0.0
    %2969 = vmatpush2.xpose.msra.mxu0 0.0
    %2970 = vmatprep.subr.mxu0 0.0
    %2971 = vmatpush2.xpose.msra.mxu0 0.0
    %2972 = vmatprep.subr.mxu0 0.0
    %2973 = vmatpush2.xpose.msra.mxu0 0.0
    %2974 = vmatprep.subr.mxu0 0.0
    %2975 = vmatpush2.xpose.msra.mxu0 0.0
    %2976 = vmatprep.subr.mxu0 0.0
    %2977 = vmatpush2.xpose.msra.mxu0 0.0
    %2978 = vmatprep.subr.mxu0 0.0
    %2979 = vmatpush2.xpose.msra.mxu0 0.0
    %2980 = vmatprep.subr.mxu0 0.0
    %2981 = vmatpush2.xpose.msra.mxu0 0.0
    %2982 = vmatprep.subr.mxu0 0.0
    %2983 = vmatpush2.xpose.msra.mxu0 0.0
    %2984 = vmatprep.subr.mxu0 0.0
    %2985 = vmatpush2.xpose.msra.mxu0 0.0
    %2986 = vmatprep.subr.mxu0 0.0
    %2987 = vmatpush2.xpose.msra.mxu0 0.0
    %2988 = vmatprep.subr.mxu0 0.0
    %2989 = vmatpush2.xpose.msra.mxu0 0.0
    %2990 = vmatprep.subr.mxu0 0.0
    %2991 = vmatpush2.xpose.msra.mxu0 0.0
    %2992 = vmatprep.subr.mxu0 0.0
    %2993 = vmatpush2.xpose.msra.mxu0 0.0
    %2994 = vmatprep.subr.mxu0 0.0
    %2995 = vmatpush2.xpose.msra.mxu0 0.0
    %2996 = vmatprep.subr.mxu0 0.0
    %2997 = vmatpush2.xpose.msra.mxu0 0.0
    %2998 = vmatprep.subr.mxu0 0.0
    %2999 = vmatpush2.xpose.msra.mxu0 0.0
    %3000 = vmatprep.mubr.f32.mxu0 0.0
    %3001 = vmatmul.mubr.f32.gmra.mxu0 %v2932
    %v3002 = vpop.f32.mrf.mxu0
    %v3003 = vadd.f32 0.0, %v3002
    %v3004 = vpop.f32.mrf.mxu0
    %3005 = vdwg.mxu0
    %3006 = vrot.lane.b32.xlu0 %v2113, 112
    %v3007 = vpop.permute.xlu0 %3006
    %3008 = vrot.lane.b32.xlu0 %v2193, 112
    %v3009 = vpop.permute.xlu0 %3008
    %v3010 = vsel %vm308, %v3007, 0
    %v3012 = vsel %vm308, %v3009, 0
    %3014 = vmatprep.subr.mxu0 0.0
    %3015 = vmatpush1.xpose.msra.mxu0 0.0
    %3016 = vmatprep.subr.mxu0 0.0
    %3017 = vmatpush1.xpose.msra.mxu0 0.0
    %3018 = vmatprep.subr.mxu0 0.0
    %3019 = vmatpush1.xpose.msra.mxu0 0.0
    %3020 = vmatprep.subr.mxu0 0.0
    %3021 = vmatpush1.xpose.msra.mxu0 0.0
    %3022 = vmatprep.subr.mxu0 0.0
    %3023 = vmatpush1.xpose.msra.mxu0 0.0
    %3024 = vmatprep.subr.mxu0 0.0
    %3025 = vmatpush1.xpose.msra.mxu0 0.0
    %3026 = vmatprep.subr.mxu0 0.0
    %3027 = vmatpush1.xpose.msra.mxu0 0.0
    %3028 = vmatprep.subr.mxu0 0.0
    %3029 = vmatpush1.xpose.msra.mxu0 0.0
    %3030 = vmatprep.subr.mxu0 0.0
    %3031 = vmatpush1.xpose.msra.mxu0 0.0
    %3032 = vmatprep.subr.mxu0 0.0
    %3033 = vmatpush1.xpose.msra.mxu0 0.0
    %3034 = vmatprep.subr.mxu0 0.0
    %3035 = vmatpush1.xpose.msra.mxu0 0.0
    %3036 = vmatprep.subr.mxu0 0.0
    %3037 = vmatpush1.xpose.msra.mxu0 0.0
    %3038 = vmatprep.subr.mxu0 0.0
    %3039 = vmatpush1.xpose.msra.mxu0 0.0
    %3040 = vmatprep.subr.mxu0 0.0
    %3041 = vmatpush1.xpose.msra.mxu0 0.0
    %3042 = vmatprep.subr.mxu0 0.0
    %3043 = vmatpush1.xpose.msra.mxu0 0.0
    %3044 = vmatprep.subr.mxu0 0.0
    %3045 = vmatpush1.xpose.msra.mxu0 %v3012
    %3046 = vmatprep.subr.mxu0 0.0
    %3047 = vmatpush2.xpose.msra.mxu0 0.0
    %3048 = vmatprep.subr.mxu0 0.0
    %3049 = vmatpush2.xpose.msra.mxu0 0.0
    %3050 = vmatprep.subr.mxu0 0.0
    %3051 = vmatpush2.xpose.msra.mxu0 0.0
    %3052 = vmatprep.subr.mxu0 0.0
    %3053 = vmatpush2.xpose.msra.mxu0 0.0
    %3054 = vmatprep.subr.mxu0 0.0
    %3055 = vmatpush2.xpose.msra.mxu0 0.0
    %3056 = vmatprep.subr.mxu0 0.0
    %3057 = vmatpush2.xpose.msra.mxu0 0.0
    %3058 = vmatprep.subr.mxu0 0.0
    %3059 = vmatpush2.xpose.msra.mxu0 0.0
    %3060 = vmatprep.subr.mxu0 0.0
    %3061 = vmatpush2.xpose.msra.mxu0 0.0
    %3062 = vmatprep.subr.mxu0 0.0
    %3063 = vmatpush2.xpose.msra.mxu0 0.0
    %3064 = vmatprep.subr.mxu0 0.0
    %3065 = vmatpush2.xpose.msra.mxu0 0.0
    %3066 = vmatprep.subr.mxu0 0.0
    %3067 = vmatpush2.xpose.msra.mxu0 0.0
    %3068 = vmatprep.subr.mxu0 0.0
    %3069 = vmatpush2.xpose.msra.mxu0 0.0
    %3070 = vmatprep.subr.mxu0 0.0
    %3071 = vmatpush2.xpose.msra.mxu0 0.0
    %3072 = vmatprep.subr.mxu0 0.0
    %3073 = vmatpush2.xpose.msra.mxu0 0.0
    %3074 = vmatprep.subr.mxu0 0.0
    %3075 = vmatpush2.xpose.msra.mxu0 0.0
    %3076 = vmatprep.subr.mxu0 0.0
    %3077 = vmatpush2.xpose.msra.mxu0 0.0
    %3078 = vmatprep.mubr.f32.mxu0 0.0
    %3079 = vmatmul.mubr.f32.gmra.mxu0 %v3010
    %v3080 = vpop.f32.mrf.mxu0
    %v3081 = vadd.f32 0.0, %v3080
    %v3082 = vpop.f32.mrf.mxu0
    %3083 = vdwg.mxu0
    %v3084 = vsel %vm308, %v3003, -inf
    %3085 = vmax.xlane.f32.xlu0 %v3084
    %v3086 = vpop.xlane.xlu0 %3085
    %v3087 = vsel %vm308, %v3081, -inf
    %3088 = vmax.xlane.f32.xlu0 %v3087
    %v3089 = vpop.xlane.xlu0 %3088
    %v3090 = vsub.f32 %v3003, %v3086
    %v3091 = vsub.f32 %v3081, %v3089
    %v3092 = vmul.f32 %v3090, 1.442695
    %v3093 = vpow.pop %v3092
    %v3094 = vmul.f32 %v3091, 1.442695
    %v3095 = vpow.pop %v3094
    %v3096 = vsel %vm308, %v3093, 0.0
    %3097 = vadd.xlane.f32.xlu0 %v3096
    %v3098 = vpop.xlane.xlu0 %3097
    %v3099 = vsel %vm308, %v3095, 0.0
    %3100 = vadd.xlane.f32.xlu0 %v3099
    %v3101 = vpop.xlane.xlu0 %3100
    %v3102 = vrcp.pop %v3098
    %v3103 = vrcp.pop %v3101
    %v3104 = vmul.f32 %v3093, %v3102
    %v3105 = vmul.f32 %v3095, %v3103
    %3106 = vrot.lane.b32.xlu0 %v2268, 112
    %v3107 = vpop.permute.xlu0 %3106
    %v3110 = vsel %vm308, %v3104, 0
    %3112 = vmatprep.subr.mxu0 0.0
    %3113 = vmatpush1.msra.mxu0 0.0
    %3114 = vmatprep.subr.mxu0 0.0
    %3115 = vmatpush1.msra.mxu0 0.0
    %3116 = vmatprep.subr.mxu0 0.0
    %3117 = vmatpush1.msra.mxu0 0.0
    %3118 = vmatprep.subr.mxu0 0.0
    %3119 = vmatpush1.msra.mxu0 0.0
    %3120 = vmatprep.subr.mxu0 0.0
    %3121 = vmatpush1.msra.mxu0 0.0
    %3122 = vmatprep.subr.mxu0 0.0
    %3123 = vmatpush1.msra.mxu0 0.0
    %3124 = vmatprep.subr.mxu0 0.0
    %3125 = vmatpush1.msra.mxu0 0.0
    %3126 = vmatprep.subr.mxu0 0.0
    %3127 = vmatpush1.msra.mxu0 0.0
    %3128 = vmatprep.subr.mxu0 0.0
    %3129 = vmatpush1.msra.mxu0 0.0
    %3130 = vmatprep.subr.mxu0 0.0
    %3131 = vmatpush1.msra.mxu0 0.0
    %3132 = vmatprep.subr.mxu0 0.0
    %3133 = vmatpush1.msra.mxu0 0.0
    %3134 = vmatprep.subr.mxu0 0.0
    %3135 = vmatpush1.msra.mxu0 0.0
    %3136 = vmatprep.subr.mxu0 0.0
    %3137 = vmatpush1.msra.mxu0 0.0
    %3138 = vmatprep.subr.mxu0 0.0
    %3139 = vmatpush1.msra.mxu0 0.0
    %3140 = vmatprep.subr.mxu0 0.0
    %3141 = vmatpush1.msra.mxu0 0.0
    %3142 = vmatprep.subr.mxu0 0.0
    %3143 = vmatpush1.msra.mxu0 %v3107
    %3144 = vmatprep.subr.mxu0 0.0
    %3145 = vmatpush2.msra.mxu0 0.0
    %3146 = vmatprep.subr.mxu0 0.0
    %3147 = vmatpush2.msra.mxu0 0.0
    %3148 = vmatprep.subr.mxu0 0.0
    %3149 = vmatpush2.msra.mxu0 0.0
    %3150 = vmatprep.subr.mxu0 0.0
    %3151 = vmatpush2.msra.mxu0 0.0
    %3152 = vmatprep.subr.mxu0 0.0
    %3153 = vmatpush2.msra.mxu0 0.0
    %3154 = vmatprep.subr.mxu0 0.0
    %3155 = vmatpush2.msra.mxu0 0.0
    %3156 = vmatprep.subr.mxu0 0.0
    %3157 = vmatpush2.msra.mxu0 0.0
    %3158 = vmatprep.subr.mxu0 0.0
    %3159 = vmatpush2.msra.mxu0 0.0
    %3160 = vmatprep.subr.mxu0 0.0
    %3161 = vmatpush2.msra.mxu0 0.0
    %3162 = vmatprep.subr.mxu0 0.0
    %3163 = vmatpush2.msra.mxu0 0.0
    %3164 = vmatprep.subr.mxu0 0.0
    %3165 = vmatpush2.msra.mxu0 0.0
    %3166 = vmatprep.subr.mxu0 0.0
    %3167 = vmatpush2.msra.mxu0 0.0
    %3168 = vmatprep.subr.mxu0 0.0
    %3169 = vmatpush2.msra.mxu0 0.0
    %3170 = vmatprep.subr.mxu0 0.0
    %3171 = vmatpush2.msra.mxu0 0.0
    %3172 = vmatprep.subr.mxu0 0.0
    %3173 = vmatpush2.msra.mxu0 0.0
    %3174 = vmatprep.subr.mxu0 0.0
    %3175 = vmatpush2.msra.mxu0 0.0
    %3176 = vmatprep.mubr.f32.mxu0 0.0
    %3177 = vmatmul.mubr.f32.gmra.mxu0 %v3110
    %v3178 = vpop.f32.mrf.mxu0
    %v3179 = vadd.f32 0.0, %v3178
    %v3180 = vpop.f32.mrf.mxu0
    %3181 = vdwg.mxu0
    %3182 = vrot.lane.b32.xlu0 %v2273, 112
    %v3183 = vpop.permute.xlu0 %3182
    %v3186 = vsel %vm308, %v3105, 0
    %3188 = vmatprep.subr.mxu0 0.0
    %3189 = vmatpush1.msra.mxu0 0.0
    %3190 = vmatprep.subr.mxu0 0.0
    %3191 = vmatpush1.msra.mxu0 0.0
    %3192 = vmatprep.subr.mxu0 0.0
    %3193 = vmatpush1.msra.mxu0 0.0
    %3194 = vmatprep.subr.mxu0 0.0
    %3195 = vmatpush1.msra.mxu0 0.0
    %3196 = vmatprep.subr.mxu0 0.0
    %3197 = vmatpush1.msra.mxu0 0.0
    %3198 = vmatprep.subr.mxu0 0.0
    %3199 = vmatpush1.msra.mxu0 0.0
    %3200 = vmatprep.subr.mxu0 0.0
    %3201 = vmatpush1.msra.mxu0 0.0
    %3202 = vmatprep.subr.mxu0 0.0
    %3203 = vmatpush1.msra.mxu0 0.0
    %3204 = vmatprep.subr.mxu0 0.0
    %3205 = vmatpush1.msra.mxu0 0.0
    %3206 = vmatprep.subr.mxu0 0.0
    %3207 = vmatpush1.msra.mxu0 0.0
    %3208 = vmatprep.subr.mxu0 0.0
    %3209 = vmatpush1.msra.mxu0 0.0
    %3210 = vmatprep.subr.mxu0 0.0
    %3211 = vmatpush1.msra.mxu0 0.0
    %3212 = vmatprep.subr.mxu0 0.0
    %3213 = vmatpush1.msra.mxu0 0.0
    %3214 = vmatprep.subr.mxu0 0.0
    %3215 = vmatpush1.msra.mxu0 0.0
    %3216 = vmatprep.subr.mxu0 0.0
    %3217 = vmatpush1.msra.mxu0 0.0
    %3218 = vmatprep.subr.mxu0 0.0
    %3219 = vmatpush1.msra.mxu0 %v3183
    %3220 = vmatprep.subr.mxu0 0.0
    %3221 = vmatpush2.msra.mxu0 0.0
    %3222 = vmatprep.subr.mxu0 0.0
    %3223 = vmatpush2.msra.mxu0 0.0
    %3224 = vmatprep.subr.mxu0 0.0
    %3225 = vmatpush2.msra.mxu0 0.0
    %3226 = vmatprep.subr.mxu0 0.0
    %3227 = vmatpush2.msra.mxu0 0.0
    %3228 = vmatprep.subr.mxu0 0.0
    %3229 = vmatpush2.msra.mxu0 0.0
    %3230 = vmatprep.subr.mxu0 0.0
    %3231 = vmatpush2.msra.mxu0 0.0
    %3232 = vmatprep.subr.mxu0 0.0
    %3233 = vmatpush2.msra.mxu0 0.0
    %3234 = vmatprep.subr.mxu0 0.0
    %3235 = vmatpush2.msra.mxu0 0.0
    %3236 = vmatprep.subr.mxu0 0.0
    %3237 = vmatpush2.msra.mxu0 0.0
    %3238 = vmatprep.subr.mxu0 0.0
    %3239 = vmatpush2.msra.mxu0 0.0
    %3240 = vmatprep.subr.mxu0 0.0
    %3241 = vmatpush2.msra.mxu0 0.0
    %3242 = vmatprep.subr.mxu0 0.0
    %3243 = vmatpush2.msra.mxu0 0.0
    %3244 = vmatprep.subr.mxu0 0.0
    %3245 = vmatpush2.msra.mxu0 0.0
    %3246 = vmatprep.subr.mxu0 0.0
    %3247 = vmatpush2.msra.mxu0 0.0
    %3248 = vmatprep.subr.mxu0 0.0
    %3249 = vmatpush2.msra.mxu0 0.0
    %3250 = vmatprep.subr.mxu0 0.0
    %3251 = vmatpush2.msra.mxu0 0.0
    %3252 = vmatprep.mubr.f32.mxu0 0.0
    %3253 = vmatmul.mubr.f32.gmra.mxu0 %v3186
    %v3254 = vpop.f32.mrf.mxu0
    %v3255 = vadd.f32 0.0, %v3254
    %v3256 = vpop.f32.mrf.mxu0
    %3257 = vdwg.mxu0
    %3258 = vrot.lane.b32.xlu0 %v2108, 104
    %v3259 = vpop.permute.xlu0 %3258
    %3260 = vrot.lane.b32.xlu0 %v2188, 104
    %v3261 = vpop.permute.xlu0 %3260
    %v3262 = vsel %vm308, %v3259, 0
    %v3264 = vsel %vm308, %v3261, 0
    %3266 = vmatprep.subr.mxu0 0.0
    %3267 = vmatpush1.xpose.msra.mxu0 0.0
    %3268 = vmatprep.subr.mxu0 0.0
    %3269 = vmatpush1.xpose.msra.mxu0 0.0
    %3270 = vmatprep.subr.mxu0 0.0
    %3271 = vmatpush1.xpose.msra.mxu0 0.0
    %3272 = vmatprep.subr.mxu0 0.0
    %3273 = vmatpush1.xpose.msra.mxu0 0.0
    %3274 = vmatprep.subr.mxu0 0.0
    %3275 = vmatpush1.xpose.msra.mxu0 0.0
    %3276 = vmatprep.subr.mxu0 0.0
    %3277 = vmatpush1.xpose.msra.mxu0 0.0
    %3278 = vmatprep.subr.mxu0 0.0
    %3279 = vmatpush1.xpose.msra.mxu0 0.0
    %3280 = vmatprep.subr.mxu0 0.0
    %3281 = vmatpush1.xpose.msra.mxu0 0.0
    %3282 = vmatprep.subr.mxu0 0.0
    %3283 = vmatpush1.xpose.msra.mxu0 0.0
    %3284 = vmatprep.subr.mxu0 0.0
    %3285 = vmatpush1.xpose.msra.mxu0 0.0
    %3286 = vmatprep.subr.mxu0 0.0
    %3287 = vmatpush1.xpose.msra.mxu0 0.0
    %3288 = vmatprep.subr.mxu0 0.0
    %3289 = vmatpush1.xpose.msra.mxu0 0.0
    %3290 = vmatprep.subr.mxu0 0.0
    %3291 = vmatpush1.xpose.msra.mxu0 0.0
    %3292 = vmatprep.subr.mxu0 0.0
    %3293 = vmatpush1.xpose.msra.mxu0 0.0
    %3294 = vmatprep.subr.mxu0 0.0
    %3295 = vmatpush1.xpose.msra.mxu0 0.0
    %3296 = vmatprep.subr.mxu0 0.0
    %3297 = vmatpush1.xpose.msra.mxu0 %v3264
    %3298 = vmatprep.subr.mxu0 0.0
    %3299 = vmatpush2.xpose.msra.mxu0 0.0
    %3300 = vmatprep.subr.mxu0 0.0
    %3301 = vmatpush2.xpose.msra.mxu0 0.0
    %3302 = vmatprep.subr.mxu0 0.0
    %3303 = vmatpush2.xpose.msra.mxu0 0.0
    %3304 = vmatprep.subr.mxu0 0.0
    %3305 = vmatpush2.xpose.msra.mxu0 0.0
    %3306 = vmatprep.subr.mxu0 0.0
    %3307 = vmatpush2.xpose.msra.mxu0 0.0
    %3308 = vmatprep.subr.mxu0 0.0
    %3309 = vmatpush2.xpose.msra.mxu0 0.0
    %3310 = vmatprep.subr.mxu0 0.0
    %3311 = vmatpush2.xpose.msra.mxu0 0.0
    %3312 = vmatprep.subr.mxu0 0.0
    %3313 = vmatpush2.xpose.msra.mxu0 0.0
    %3314 = vmatprep.subr.mxu0 0.0
    %3315 = vmatpush2.xpose.msra.mxu0 0.0
    %3316 = vmatprep.subr.mxu0 0.0
    %3317 = vmatpush2.xpose.msra.mxu0 0.0
    %3318 = vmatprep.subr.mxu0 0.0
    %3319 = vmatpush2.xpose.msra.mxu0 0.0
    %3320 = vmatprep.subr.mxu0 0.0
    %3321 = vmatpush2.xpose.msra.mxu0 0.0
    %3322 = vmatprep.subr.mxu0 0.0
    %3323 = vmatpush2.xpose.msra.mxu0 0.0
    %3324 = vmatprep.subr.mxu0 0.0
    %3325 = vmatpush2.xpose.msra.mxu0 0.0
    %3326 = vmatprep.subr.mxu0 0.0
    %3327 = vmatpush2.xpose.msra.mxu0 0.0
    %3328 = vmatprep.subr.mxu0 0.0
    %3329 = vmatpush2.xpose.msra.mxu0 0.0
    %3330 = vmatprep.mubr.f32.mxu0 0.0
    %3331 = vmatmul.mubr.f32.gmra.mxu0 %v3262
    %v3332 = vpop.f32.mrf.mxu0
    %v3333 = vadd.f32 0.0, %v3332
    %v3334 = vpop.f32.mrf.mxu0
    %3335 = vdwg.mxu0
    %3336 = vrot.lane.b32.xlu0 %v2113, 104
    %v3337 = vpop.permute.xlu0 %3336
    %3338 = vrot.lane.b32.xlu0 %v2193, 104
    %v3339 = vpop.permute.xlu0 %3338
    %v3340 = vsel %vm308, %v3337, 0
    %v3342 = vsel %vm308, %v3339, 0
    %3344 = vmatprep.subr.mxu0 0.0
    %3345 = vmatpush1.xpose.msra.mxu0 0.0
    %3346 = vmatprep.subr.mxu0 0.0
    %3347 = vmatpush1.xpose.msra.mxu0 0.0
    %3348 = vmatprep.subr.mxu0 0.0
    %3349 = vmatpush1.xpose.msra.mxu0 0.0
    %3350 = vmatprep.subr.mxu0 0.0
    %3351 = vmatpush1.xpose.msra.mxu0 0.0
    %3352 = vmatprep.subr.mxu0 0.0
    %3353 = vmatpush1.xpose.msra.mxu0 0.0
    %3354 = vmatprep.subr.mxu0 0.0
    %3355 = vmatpush1.xpose.msra.mxu0 0.0
    %3356 = vmatprep.subr.mxu0 0.0
    %3357 = vmatpush1.xpose.msra.mxu0 0.0
    %3358 = vmatprep.subr.mxu0 0.0
    %3359 = vmatpush1.xpose.msra.mxu0 0.0
    %3360 = vmatprep.subr.mxu0 0.0
    %3361 = vmatpush1.xpose.msra.mxu0 0.0
    %3362 = vmatprep.subr.mxu0 0.0
    %3363 = vmatpush1.xpose.msra.mxu0 0.0
    %3364 = vmatprep.subr.mxu0 0.0
    %3365 = vmatpush1.xpose.msra.mxu0 0.0
    %3366 = vmatprep.subr.mxu0 0.0
    %3367 = vmatpush1.xpose.msra.mxu0 0.0
    %3368 = vmatprep.subr.mxu0 0.0
    %3369 = vmatpush1.xpose.msra.mxu0 0.0
    %3370 = vmatprep.subr.mxu0 0.0
    %3371 = vmatpush1.xpose.msra.mxu0 0.0
    %3372 = vmatprep.subr.mxu0 0.0
    %3373 = vmatpush1.xpose.msra.mxu0 0.0
    %3374 = vmatprep.subr.mxu0 0.0
    %3375 = vmatpush1.xpose.msra.mxu0 %v3342
    %3376 = vmatprep.subr.mxu0 0.0
    %3377 = vmatpush2.xpose.msra.mxu0 0.0
    %3378 = vmatprep.subr.mxu0 0.0
    %3379 = vmatpush2.xpose.msra.mxu0 0.0
    %3380 = vmatprep.subr.mxu0 0.0
    %3381 = vmatpush2.xpose.msra.mxu0 0.0
    %3382 = vmatprep.subr.mxu0 0.0
    %3383 = vmatpush2.xpose.msra.mxu0 0.0
    %3384 = vmatprep.subr.mxu0 0.0
    %3385 = vmatpush2.xpose.msra.mxu0 0.0
    %3386 = vmatprep.subr.mxu0 0.0
    %3387 = vmatpush2.xpose.msra.mxu0 0.0
    %3388 = vmatprep.subr.mxu0 0.0
    %3389 = vmatpush2.xpose.msra.mxu0 0.0
    %3390 = vmatprep.subr.mxu0 0.0
    %3391 = vmatpush2.xpose.msra.mxu0 0.0
    %3392 = vmatprep.subr.mxu0 0.0
    %3393 = vmatpush2.xpose.msra.mxu0 0.0
    %3394 = vmatprep.subr.mxu0 0.0
    %3395 = vmatpush2.xpose.msra.mxu0 0.0
    %3396 = vmatprep.subr.mxu0 0.0
    %3397 = vmatpush2.xpose.msra.mxu0 0.0
    %3398 = vmatprep.subr.mxu0 0.0
    %3399 = vmatpush2.xpose.msra.mxu0 0.0
    %3400 = vmatprep.subr.mxu0 0.0
    %3401 = vmatpush2.xpose.msra.mxu0 0.0
    %3402 = vmatprep.subr.mxu0 0.0
    %3403 = vmatpush2.xpose.msra.mxu0 0.0
    %3404 = vmatprep.subr.mxu0 0.0
    %3405 = vmatpush2.xpose.msra.mxu0 0.0
    %3406 = vmatprep.subr.mxu0 0.0
    %3407 = vmatpush2.xpose.msra.mxu0 0.0
    %3408 = vmatprep.mubr.f32.mxu0 0.0
    %3409 = vmatmul.mubr.f32.gmra.mxu0 %v3340
    %v3410 = vpop.f32.mrf.mxu0
    %v3411 = vadd.f32 0.0, %v3410
    %v3412 = vpop.f32.mrf.mxu0
    %3413 = vdwg.mxu0
    %v3414 = vsel %vm308, %v3333, -inf
    %3415 = vmax.xlane.f32.xlu0 %v3414
    %v3416 = vpop.xlane.xlu0 %3415
    %v3417 = vsel %vm308, %v3411, -inf
    %3418 = vmax.xlane.f32.xlu0 %v3417
    %v3419 = vpop.xlane.xlu0 %3418
    %v3420 = vsub.f32 %v3333, %v3416
    %v3421 = vsub.f32 %v3411, %v3419
    %v3422 = vmul.f32 %v3420, 1.442695
    %v3423 = vpow.pop %v3422
    %v3424 = vmul.f32 %v3421, 1.442695
    %v3425 = vpow.pop %v3424
    %v3426 = vsel %vm308, %v3423, 0.0
    %3427 = vadd.xlane.f32.xlu0 %v3426
    %v3428 = vpop.xlane.xlu0 %3427
    %v3429 = vsel %vm308, %v3425, 0.0
    %3430 = vadd.xlane.f32.xlu0 %v3429
    %v3431 = vpop.xlane.xlu0 %3430
    %v3432 = vrcp.pop %v3428
    %v3433 = vrcp.pop %v3431
    %v3434 = vmul.f32 %v3423, %v3432
    %v3435 = vmul.f32 %v3425, %v3433
    %3436 = vrot.lane.b32.xlu0 %v2268, 104
    %v3437 = vpop.permute.xlu0 %3436
    %v3440 = vsel %vm308, %v3434, 0
    %3442 = vmatprep.subr.mxu0 0.0
    %3443 = vmatpush1.msra.mxu0 0.0
    %3444 = vmatprep.subr.mxu0 0.0
    %3445 = vmatpush1.msra.mxu0 0.0
    %3446 = vmatprep.subr.mxu0 0.0
    %3447 = vmatpush1.msra.mxu0 0.0
    %3448 = vmatprep.subr.mxu0 0.0
    %3449 = vmatpush1.msra.mxu0 0.0
    %3450 = vmatprep.subr.mxu0 0.0
    %3451 = vmatpush1.msra.mxu0 0.0
    %3452 = vmatprep.subr.mxu0 0.0
    %3453 = vmatpush1.msra.mxu0 0.0
    %3454 = vmatprep.subr.mxu0 0.0
    %3455 = vmatpush1.msra.mxu0 0.0
    %3456 = vmatprep.subr.mxu0 0.0
    %3457 = vmatpush1.msra.mxu0 0.0
    %3458 = vmatprep.subr.mxu0 0.0
    %3459 = vmatpush1.msra.mxu0 0.0
    %3460 = vmatprep.subr.mxu0 0.0
    %3461 = vmatpush1.msra.mxu0 0.0
    %3462 = vmatprep.subr.mxu0 0.0
    %3463 = vmatpush1.msra.mxu0 0.0
    %3464 = vmatprep.subr.mxu0 0.0
    %3465 = vmatpush1.msra.mxu0 0.0
    %3466 = vmatprep.subr.mxu0 0.0
    %3467 = vmatpush1.msra.mxu0 0.0
    %3468 = vmatprep.subr.mxu0 0.0
    %3469 = vmatpush1.msra.mxu0 0.0
    %3470 = vmatprep.subr.mxu0 0.0
    %3471 = vmatpush1.msra.mxu0 0.0
    %3472 = vmatprep.subr.mxu0 0.0
    %3473 = vmatpush1.msra.mxu0 %v3437
    %3474 = vmatprep.subr.mxu0 0.0
    %3475 = vmatpush2.msra.mxu0 0.0
    %3476 = vmatprep.subr.mxu0 0.0
    %3477 = vmatpush2.msra.mxu0 0.0
    %3478 = vmatprep.subr.mxu0 0.0
    %3479 = vmatpush2.msra.mxu0 0.0
    %3480 = vmatprep.subr.mxu0 0.0
    %3481 = vmatpush2.msra.mxu0 0.0
    %3482 = vmatprep.subr.mxu0 0.0
    %3483 = vmatpush2.msra.mxu0 0.0
    %3484 = vmatprep.subr.mxu0 0.0
    %3485 = vmatpush2.msra.mxu0 0.0
    %3486 = vmatprep.subr.mxu0 0.0
    %3487 = vmatpush2.msra.mxu0 0.0
    %3488 = vmatprep.subr.mxu0 0.0
    %3489 = vmatpush2.msra.mxu0 0.0
    %3490 = vmatprep.subr.mxu0 0.0
    %3491 = vmatpush2.msra.mxu0 0.0
    %3492 = vmatprep.subr.mxu0 0.0
    %3493 = vmatpush2.msra.mxu0 0.0
    %3494 = vmatprep.subr.mxu0 0.0
    %3495 = vmatpush2.msra.mxu0 0.0
    %3496 = vmatprep.subr.mxu0 0.0
    %3497 = vmatpush2.msra.mxu0 0.0
    %3498 = vmatprep.subr.mxu0 0.0
    %3499 = vmatpush2.msra.mxu0 0.0
    %3500 = vmatprep.subr.mxu0 0.0
    %3501 = vmatpush2.msra.mxu0 0.0
    %3502 = vmatprep.subr.mxu0 0.0
    %3503 = vmatpush2.msra.mxu0 0.0
    %3504 = vmatprep.subr.mxu0 0.0
    %3505 = vmatpush2.msra.mxu0 0.0
    %3506 = vmatprep.mubr.f32.mxu0 0.0
    %3507 = vmatmul.mubr.f32.gmra.mxu0 %v3440
    %v3508 = vpop.f32.mrf.mxu0
    %v3509 = vadd.f32 0.0, %v3508
    %v3510 = vpop.f32.mrf.mxu0
    %3511 = vdwg.mxu0
    %3512 = vrot.lane.b32.xlu0 %v2273, 104
    %v3513 = vpop.permute.xlu0 %3512
    %v3516 = vsel %vm308, %v3435, 0
    %3518 = vmatprep.subr.mxu0 0.0
    %3519 = vmatpush1.msra.mxu0 0.0
    %3520 = vmatprep.subr.mxu0 0.0
    %3521 = vmatpush1.msra.mxu0 0.0
    %3522 = vmatprep.subr.mxu0 0.0
    %3523 = vmatpush1.msra.mxu0 0.0
    %3524 = vmatprep.subr.mxu0 0.0
    %3525 = vmatpush1.msra.mxu0 0.0
    %3526 = vmatprep.subr.mxu0 0.0
    %3527 = vmatpush1.msra.mxu0 0.0
    %3528 = vmatprep.subr.mxu0 0.0
    %3529 = vmatpush1.msra.mxu0 0.0
    %3530 = vmatprep.subr.mxu0 0.0
    %3531 = vmatpush1.msra.mxu0 0.0
    %3532 = vmatprep.subr.mxu0 0.0
    %3533 = vmatpush1.msra.mxu0 0.0
    %3534 = vmatprep.subr.mxu0 0.0
    %3535 = vmatpush1.msra.mxu0 0.0
    %3536 = vmatprep.subr.mxu0 0.0
    %3537 = vmatpush1.msra.mxu0 0.0
    %3538 = vmatprep.subr.mxu0 0.0
    %3539 = vmatpush1.msra.mxu0 0.0
    %3540 = vmatprep.subr.mxu0 0.0
    %3541 = vmatpush1.msra.mxu0 0.0
    %3542 = vmatprep.subr.mxu0 0.0
    %3543 = vmatpush1.msra.mxu0 0.0
    %3544 = vmatprep.subr.mxu0 0.0
    %3545 = vmatpush1.msra.mxu0 0.0
    %3546 = vmatprep.subr.mxu0 0.0
    %3547 = vmatpush1.msra.mxu0 0.0
    %3548 = vmatprep.subr.mxu0 0.0
    %3549 = vmatpush1.msra.mxu0 %v3513
    %3550 = vmatprep.subr.mxu0 0.0
    %3551 = vmatpush2.msra.mxu0 0.0
    %3552 = vmatprep.subr.mxu0 0.0
    %3553 = vmatpush2.msra.mxu0 0.0
    %3554 = vmatprep.subr.mxu0 0.0
    %3555 = vmatpush2.msra.mxu0 0.0
    %3556 = vmatprep.subr.mxu0 0.0
    %3557 = vmatpush2.msra.mxu0 0.0
    %3558 = vmatprep.subr.mxu0 0.0
    %3559 = vmatpush2.msra.mxu0 0.0
    %3560 = vmatprep.subr.mxu0 0.0
    %3561 = vmatpush2.msra.mxu0 0.0
    %3562 = vmatprep.subr.mxu0 0.0
    %3563 = vmatpush2.msra.mxu0 0.0
    %3564 = vmatprep.subr.mxu0 0.0
    %3565 = vmatpush2.msra.mxu0 0.0
    %3566 = vmatprep.subr.mxu0 0.0
    %3567 = vmatpush2.msra.mxu0 0.0
    %3568 = vmatprep.subr.mxu0 0.0
    %3569 = vmatpush2.msra.mxu0 0.0
    %3570 = vmatprep.subr.mxu0 0.0
    %3571 = vmatpush2.msra.mxu0 0.0
    %3572 = vmatprep.subr.mxu0 0.0
    %3573 = vmatpush2.msra.mxu0 0.0
    %3574 = vmatprep.subr.mxu0 0.0
    %3575 = vmatpush2.msra.mxu0 0.0
    %3576 = vmatprep.subr.mxu0 0.0
    %3577 = vmatpush2.msra.mxu0 0.0
    %3578 = vmatprep.subr.mxu0 0.0
    %3579 = vmatpush2.msra.mxu0 0.0
    %3580 = vmatprep.subr.mxu0 0.0
    %3581 = vmatpush2.msra.mxu0 0.0
    %3582 = vmatprep.mubr.f32.mxu0 0.0
    %3583 = vmatmul.mubr.f32.gmra.mxu0 %v3516
    %v3584 = vpop.f32.mrf.mxu0
    %v3585 = vadd.f32 0.0, %v3584
    %v3586 = vpop.f32.mrf.mxu0
    %3587 = vdwg.mxu0
    %3590 = vrot.lane.b32.xlu0 %v2848, 8
    %v3591 = vpop.permute.xlu0 %3590
    %3592 = vrot.lane.b32.xlu0 %v2925, 8
    %v3593 = vpop.permute.xlu0 %3592
    %3598 = vrot.lane.b32.xlu0 %v3179, 16
    %v3599 = vpop.permute.xlu0 %3598
    %3600 = vrot.lane.b32.xlu0 %v3255, 16
    %v3601 = vpop.permute.xlu0 %3600
    %3606 = vrot.lane.b32.xlu0 %v3509, 24
    %v3607 = vpop.permute.xlu0 %3606
    %3608 = vrot.lane.b32.xlu0 %v3585, 24
    %v3609 = vpop.permute.xlu0 %3608
    %v3612 = vsel %vm308, %v2520, %v3591
    %v3613 = vsel %vm308, %v2593, %v3593
    %v3614 = vsel %vm1647, %v3612, %v3599
    %v3615 = vsel %vm1647, %v3613, %v3601
    %v3616 = vsel %vm1650, %v3614, %v3607
    %v3617 = vsel %vm1650, %v3615, %v3609
    %s3618 = scalar_lea.vmem %s4, 32
    %v3619 = vld [vmem:[%s3618] sm:$0xff]
    %v3620 = vld [vmem:[%s3618 + $0x8] sm:$0xff]
    %v3621 = vld [vmem:[%s3618 + $0x10] sm:$0xff]
    %v3622 = vld [vmem:[%s3618 + $0x18] sm:$0xff]
    %s3623 = scalar_lea.vmem %s5, 1
    %v3624 = vld [vmem:[%s3623] sm:$0x1]
    %v3626 = vlaneseq
    %v3627 = vshrl.u32 %v3626, 7
    %v3628 = vsub.s32 0, %v3627
    %v3629 = vrot.slane %v3624, %v3628
    %v3632 = vsel %vm68, %v3616, 0
    %v3635 = vsel %vm68, %v3617, 0
    %3637 = vmatprep.subr.mxu0 0.0
    %3638 = vmatpush1.msra.mxu0 0.0
    %3639 = vmatprep.subr.mxu0 0.0
    %3640 = vmatpush1.msra.mxu0 0.0
    %3641 = vmatprep.subr.mxu0 0.0
    %3642 = vmatpush1.msra.mxu0 0.0
    %3643 = vmatprep.subr.mxu0 0.0
    %3644 = vmatpush1.msra.mxu0 0.0
    %3645 = vmatprep.subr.mxu0 0.0
    %3646 = vmatpush1.msra.mxu0 0.0
    %3647 = vmatprep.subr.mxu0 0.0
    %3648 = vmatpush1.msra.mxu0 0.0
    %3649 = vmatprep.subr.mxu0 0.0
    %3650 = vmatpush1.msra.mxu0 0.0
    %3651 = vmatprep.subr.mxu0 0.0
    %3652 = vmatpush1.msra.mxu0 0.0
    %3653 = vmatprep.subr.mxu0 0.0
    %3654 = vmatpush1.msra.mxu0 0.0
    %3655 = vmatprep.subr.mxu0 0.0
    %3656 = vmatpush1.msra.mxu0 0.0
    %3657 = vmatprep.subr.mxu0 0.0
    %3658 = vmatpush1.msra.mxu0 0.0
    %3659 = vmatprep.subr.mxu0 0.0
    %3660 = vmatpush1.msra.mxu0 0.0
    %3661 = vmatprep.subr.mxu0 0.0
    %3662 = vmatpush1.msra.mxu0 %v3622
    %3663 = vmatprep.subr.mxu0 0.0
    %3664 = vmatpush1.msra.mxu0 %v3621
    %3665 = vmatprep.subr.mxu0 0.0
    %3666 = vmatpush1.msra.mxu0 %v3620
    %3667 = vmatprep.subr.mxu0 0.0
    %3668 = vmatpush1.msra.mxu0 %v3619
    %3669 = vmatprep.subr.mxu0 0.0
    %3670 = vmatpush2.msra.mxu0 0.0
    %3671 = vmatprep.subr.mxu0 0.0
    %3672 = vmatpush2.msra.mxu0 0.0
    %3673 = vmatprep.subr.mxu0 0.0
    %3674 = vmatpush2.msra.mxu0 0.0
    %3675 = vmatprep.subr.mxu0 0.0
    %3676 = vmatpush2.msra.mxu0 0.0
    %3677 = vmatprep.subr.mxu0 0.0
    %3678 = vmatpush2.msra.mxu0 0.0
    %3679 = vmatprep.subr.mxu0 0.0
    %3680 = vmatpush2.msra.mxu0 0.0
    %3681 = vmatprep.subr.mxu0 0.0
    %3682 = vmatpush2.msra.mxu0 0.0
    %3683 = vmatprep.subr.mxu0 0.0
    %3684 = vmatpush2.msra.mxu0 0.0
    %3685 = vmatprep.subr.mxu0 0.0
    %3686 = vmatpush2.msra.mxu0 0.0
    %3687 = vmatprep.subr.mxu0 0.0
    %3688 = vmatpush2.msra.mxu0 0.0
    %3689 = vmatprep.subr.mxu0 0.0
    %3690 = vmatpush2.msra.mxu0 0.0
    %3691 = vmatprep.subr.mxu0 0.0
    %3692 = vmatpush2.msra.mxu0 0.0
    %3693 = vmatprep.subr.mxu0 0.0
    %3694 = vmatpush2.msra.mxu0 0.0
    %3695 = vmatprep.subr.mxu0 0.0
    %3696 = vmatpush2.msra.mxu0 0.0
    %3697 = vmatprep.subr.mxu0 0.0
    %3698 = vmatpush2.msra.mxu0 0.0
    %3699 = vmatprep.subr.mxu0 0.0
    %3700 = vmatpush2.msra.mxu0 0.0
    %3701 = vmatprep.mubr.f32.mxu0 0.0
    %3702 = vmatmul.mubr.f32.gmra.mxu0 %v3632
    %v3703 = vpop.f32.mrf.mxu0
    %v3704 = vadd.f32 %v3629, %v3703
    %v3705 = vpop.f32.mrf.mxu0
    %3706 = vmatprep.mubr.f32.mxu0 0.0
    %3707 = vmatmul.mubr.f32.gmra.mxu0 %v3635
    %v3708 = vpop.f32.mrf.mxu0
    %v3709 = vadd.f32 %v3629, %v3708
    %v3710 = vpop.f32.mrf.mxu0
    %3711 = vdwg.mxu0
    %v3712 = vadd.f32 %v2028, %v3704
    %v3713 = vadd.f32 %v2029, %v3709
    %s3714 = scalar_lea.vmem %s6, 1
    %v3715 = vld [vmem:[%s3714] sm:$0x1]
    %s3716 = scalar_lea.vmem %s7, 1
    %v3717 = vld [vmem:[%s3716] sm:$0x1]
    %v3718 = vsel %vm68, %v3712, 0.0
    %3719 = vadd.xlane.f32.xlu0 %v3718
    %v3720 = vpop.xlane.xlu0 %3719
    %v3721 = vsel %vm68, %v3713, 0.0
    %3722 = vadd.xlane.f32.xlu0 %v3721
    %v3723 = vpop.xlane.xlu0 %3722
    %v3724 = vmul.f32 %v3720, %v1755
    %v3725 = vmul.f32 %v3723, %v1755
    %v3726 = vsub.f32 %v3712, %v3724
    %v3727 = vsub.f32 %v3713, %v3725
    %v3728 = vmul.f32 %v3726, %v3726
    %v3729 = vmul.f32 %v3727, %v3727
    %v3730 = vsel %vm68, %v3728, 0.0
    %3731 = vadd.xlane.f32.xlu0 %v3730
    %v3732 = vpop.xlane.xlu0 %3731
    %v3733 = vsel %vm68, %v3729, 0.0
    %3734 = vadd.xlane.f32.xlu0 %v3733
    %v3735 = vpop.xlane.xlu0 %3734
    %v3736 = vmul.f32 %v3732, %v1755
    %v3737 = vmul.f32 %v3735, %v1755
    %v3738 = vadd.f32 %v3736, 1e-05
    %v3739 = vadd.f32 %v3737, 1e-05
    %v3740 = vrsqrt.pop %v3738
    %v3741 = vrsqrt.pop %v3739
    %v3742 = vmul.f32 %v3726, %v3740
    %v3743 = vmul.f32 %v3727, %v3741
    %v3745 = vlaneseq
    %v3746 = vshrl.u32 %v3745, 7
    %v3747 = vsub.s32 0, %v3746
    %v3748 = vrot.slane %v3715, %v3747
    %v3750 = vmul.f32 %v3742, %v3748
    %v3751 = vmul.f32 %v3743, %v3748
    %v3753 = vlaneseq
    %v3754 = vshrl.u32 %v3753, 7
    %v3755 = vsub.s32 0, %v3754
    %v3756 = vrot.slane %v3717, %v3755
    %v3758 = vadd.f32 %v3750, %v3756
    %v3759 = vadd.f32 %v3751, %v3756
    %s3760 = scalar_lea.vmem %s8, 32
    %v3761 = vld [vmem:[%s3760] sm:$0xff]
    %v3762 = vld [vmem:[%s3760 + $0x8] sm:$0xff]
    %v3763 = vld [vmem:[%s3760 + $0x10] sm:$0xff]
    %v3764 = vld [vmem:[%s3760 + $0x18] sm:$0xff]
    %s3765 = scalar_lea.vmem %s9, 1
    %v3766 = vld [vmem:[%s3765] sm:$0x1]
    %v3768 = vlaneseq
    %v3769 = vshrl.u32 %v3768, 7
    %v3770 = vsub.s32 0, %v3769
    %v3771 = vrot.slane %v3766, %v3770
    %v3774 = vsel %vm68, %v3758, 0
    %v3777 = vsel %vm68, %v3759, 0
    %3779 = vmatprep.subr.mxu0 0.0
    %3780 = vmatpush1.msra.mxu0 0.0
    %3781 = vmatprep.subr.mxu0 0.0
    %3782 = vmatpush1.msra.mxu0 0.0
    %3783 = vmatprep.subr.mxu0 0.0
    %3784 = vmatpush1.msra.mxu0 0.0
    %3785 = vmatprep.subr.mxu0 0.0
    %3786 = vmatpush1.msra.mxu0 0.0
    %3787 = vmatprep.subr.mxu0 0.0
    %3788 = vmatpush1.msra.mxu0 0.0
    %3789 = vmatprep.subr.mxu0 0.0
    %3790 = vmatpush1.msra.mxu0 0.0
    %3791 = vmatprep.subr.mxu0 0.0
    %3792 = vmatpush1.msra.mxu0 0.0
    %3793 = vmatprep.subr.mxu0 0.0
    %3794 = vmatpush1.msra.mxu0 0.0
    %3795 = vmatprep.subr.mxu0 0.0
    %3796 = vmatpush1.msra.mxu0 0.0
    %3797 = vmatprep.subr.mxu0 0.0
    %3798 = vmatpush1.msra.mxu0 0.0
    %3799 = vmatprep.subr.mxu0 0.0
    %3800 = vmatpush1.msra.mxu0 0.0
    %3801 = vmatprep.subr.mxu0 0.0
    %3802 = vmatpush1.msra.mxu0 0.0
    %3803 = vmatprep.subr.mxu0 0.0
    %3804 = vmatpush1.msra.mxu0 %v3764
    %3805 = vmatprep.subr.mxu0 0.0
    %3806 = vmatpush1.msra.mxu0 %v3763
    %3807 = vmatprep.subr.mxu0 0.0
    %3808 = vmatpush1.msra.mxu0 %v3762
    %3809 = vmatprep.subr.mxu0 0.0
    %3810 = vmatpush1.msra.mxu0 %v3761
    %3811 = vmatprep.subr.mxu0 0.0
    %3812 = vmatpush2.msra.mxu0 0.0
    %3813 = vmatprep.subr.mxu0 0.0
    %3814 = vmatpush2.msra.mxu0 0.0
    %3815 = vmatprep.subr.mxu0 0.0
    %3816 = vmatpush2.msra.mxu0 0.0
    %3817 = vmatprep.subr.mxu0 0.0
    %3818 = vmatpush2.msra.mxu0 0.0
    %3819 = vmatprep.subr.mxu0 0.0
    %3820 = vmatpush2.msra.mxu0 0.0
    %3821 = vmatprep.subr.mxu0 0.0
    %3822 = vmatpush2.msra.mxu0 0.0
    %3823 = vmatprep.subr.mxu0 0.0
    %3824 = vmatpush2.msra.mxu0 0.0
    %3825 = vmatprep.subr.mxu0 0.0
    %3826 = vmatpush2.msra.mxu0 0.0
    %3827 = vmatprep.subr.mxu0 0.0
    %3828 = vmatpush2.msra.mxu0 0.0
    %3829 = vmatprep.subr.mxu0 0.0
    %3830 = vmatpush2.msra.mxu0 0.0
    %3831 = vmatprep.subr.mxu0 0.0
    %3832 = vmatpush2.msra.mxu0 0.0
    %3833 = vmatprep.subr.mxu0 0.0
    %3834 = vmatpush2.msra.mxu0 0.0
    %3835 = vmatprep.subr.mxu0 0.0
    %3836 = vmatpush2.msra.mxu0 0.0
    %3837 = vmatprep.subr.mxu0 0.0
    %3838 = vmatpush2.msra.mxu0 0.0
    %3839 = vmatprep.subr.mxu0 0.0
    %3840 = vmatpush2.msra.mxu0 0.0
    %3841 = vmatprep.subr.mxu0 0.0
    %3842 = vmatpush2.msra.mxu0 0.0
    %3843 = vmatprep.mubr.f32.mxu0 0.0
    %3844 = vmatmul.mubr.f32.gmra.mxu0 %v3774
    %v3845 = vpop.f32.mrf.mxu0
    %v3846 = vadd.f32 %v3771, %v3845
    %v3847 = vpop.f32.mrf.mxu0
    %3848 = vmatprep.mubr.f32.mxu0 0.0
    %3849 = vmatmul.mubr.f32.gmra.mxu0 %v3777
    %v3850 = vpop.f32.mrf.mxu0
    %v3851 = vadd.f32 %v3771, %v3850
    %v3852 = vpop.f32.mrf.mxu0
    %3853 = vdwg.mxu0
    %v3854 = vmax.f32 %v3846, 0.0
    %v3855 = vmax.f32 %v3851, 0.0
    %s3856 = scalar_lea.vmem %s10, 128
    %v3857 = vld [vmem:[%s3856] sm:$0xff]
    %v3858 = vld [vmem:[%s3856 + $0x8] sm:$0xff]
    %v3859 = vld [vmem:[%s3856 + $0x10] sm:$0xff]
    %v3860 = vld [vmem:[%s3856 + $0x18] sm:$0xff]
    %v3861 = vld [vmem:[%s3856 + $0x20] sm:$0xff]
    %v3862 = vld [vmem:[%s3856 + $0x28] sm:$0xff]
    %v3863 = vld [vmem:[%s3856 + $0x30] sm:$0xff]
    %v3864 = vld [vmem:[%s3856 + $0x38] sm:$0xff]
    %v3865 = vld [vmem:[%s3856 + $0x40] sm:$0xff]
    %v3866 = vld [vmem:[%s3856 + $0x48] sm:$0xff]
    %v3867 = vld [vmem:[%s3856 + $0x50] sm:$0xff]
    %v3868 = vld [vmem:[%s3856 + $0x58] sm:$0xff]
    %v3869 = vld [vmem:[%s3856 + $0x60] sm:$0xff]
    %v3870 = vld [vmem:[%s3856 + $0x68] sm:$0xff]
    %v3871 = vld [vmem:[%s3856 + $0x70] sm:$0xff]
    %v3872 = vld [vmem:[%s3856 + $0x78] sm:$0xff]
    %s3873 = scalar_lea.vmem %s11, 1
    %v3874 = vld [vmem:[%s3873] sm:$0x1]
    %v3876 = vlaneseq
    %v3877 = vshrl.u32 %v3876, 7
    %v3878 = vsub.s32 0, %v3877
    %v3879 = vrot.slane %v3874, %v3878
    %3881 = vmatprep.subr.mxu0 0.0
    %3882 = vmatpush1.msra.mxu0 %v3872
    %3883 = vmatprep.subr.mxu0 0.0
    %3884 = vmatpush1.msra.mxu0 %v3871
    %3885 = vmatprep.subr.mxu0 0.0
    %3886 = vmatpush1.msra.mxu0 %v3870
    %3887 = vmatprep.subr.mxu0 0.0
    %3888 = vmatpush1.msra.mxu0 %v3869
    %3889 = vmatprep.subr.mxu0 0.0
    %3890 = vmatpush1.msra.mxu0 %v3868
    %3891 = vmatprep.subr.mxu0 0.0
    %3892 = vmatpush1.msra.mxu0 %v3867
    %3893 = vmatprep.subr.mxu0 0.0
    %3894 = vmatpush1.msra.mxu0 %v3866
    %3895 = vmatprep.subr.mxu0 0.0
    %3896 = vmatpush1.msra.mxu0 %v3865
    %3897 = vmatprep.subr.mxu0 0.0
    %3898 = vmatpush1.msra.mxu0 %v3864
    %3899 = vmatprep.subr.mxu0 0.0
    %3900 = vmatpush1.msra.mxu0 %v3863
    %3901 = vmatprep.subr.mxu0 0.0
    %3902 = vmatpush1.msra.mxu0 %v3862
    %3903 = vmatprep.subr.mxu0 0.0
    %3904 = vmatpush1.msra.mxu0 %v3861
    %3905 = vmatprep.subr.mxu0 0.0
    %3906 = vmatpush1.msra.mxu0 %v3860
    %3907 = vmatprep.subr.mxu0 0.0
    %3908 = vmatpush1.msra.mxu0 %v3859
    %3909 = vmatprep.subr.mxu0 0.0
    %3910 = vmatpush1.msra.mxu0 %v3858
    %3911 = vmatprep.subr.mxu0 0.0
    %3912 = vmatpush1.msra.mxu0 %v3857
    %3913 = vmatprep.subr.mxu0 0.0
    %3914 = vmatpush2.msra.mxu0 0.0
    %3915 = vmatprep.subr.mxu0 0.0
    %3916 = vmatpush2.msra.mxu0 0.0
    %3917 = vmatprep.subr.mxu0 0.0
    %3918 = vmatpush2.msra.mxu0 0.0
    %3919 = vmatprep.subr.mxu0 0.0
    %3920 = vmatpush2.msra.mxu0 0.0
    %3921 = vmatprep.subr.mxu0 0.0
    %3922 = vmatpush2.msra.mxu0 0.0
    %3923 = vmatprep.subr.mxu0 0.0
    %3924 = vmatpush2.msra.mxu0 0.0
    %3925 = vmatprep.subr.mxu0 0.0
    %3926 = vmatpush2.msra.mxu0 0.0
    %3927 = vmatprep.subr.mxu0 0.0
    %3928 = vmatpush2.msra.mxu0 0.0
    %3929 = vmatprep.subr.mxu0 0.0
    %3930 = vmatpush2.msra.mxu0 0.0
    %3931 = vmatprep.subr.mxu0 0.0
    %3932 = vmatpush2.msra.mxu0 0.0
    %3933 = vmatprep.subr.mxu0 0.0
    %3934 = vmatpush2.msra.mxu0 0.0
    %3935 = vmatprep.subr.mxu0 0.0
    %3936 = vmatpush2.msra.mxu0 0.0
    %3937 = vmatprep.subr.mxu0 0.0
    %3938 = vmatpush2.msra.mxu0 0.0
    %3939 = vmatprep.subr.mxu0 0.0
    %3940 = vmatpush2.msra.mxu0 0.0
    %3941 = vmatprep.subr.mxu0 0.0
    %3942 = vmatpush2.msra.mxu0 0.0
    %3943 = vmatprep.subr.mxu0 0.0
    %3944 = vmatpush2.msra.mxu0 0.0
    %3945 = vmatprep.mubr.f32.mxu0 0.0
    %3946 = vmatmul.mubr.f32.gmra.mxu0 %v3854
    %v3947 = vpop.f32.mrf.mxu0
    %v3948 = vadd.f32 %v3879, %v3947
    %v3949 = vpop.f32.mrf.mxu0
    %3950 = vmatprep.mubr.f32.mxu0 0.0
    %3951 = vmatmul.mubr.f32.gmra.mxu0 %v3855
    %v3952 = vpop.f32.mrf.mxu0
    %v3953 = vadd.f32 %v3879, %v3952
    %v3954 = vpop.f32.mrf.mxu0
    %3955 = vdwg.mxu0
    %v3956 = vadd.f32 %v3758, %v3948
    %v3957 = vadd.f32 %v3759, %v3953
    %s3958 = scalar_lea.vmem %s12, 1
    %v3959 = vld [vmem:[%s3958] sm:$0x1]
    %s3960 = scalar_lea.vmem %s13, 1
    %v3961 = vld [vmem:[%s3960] sm:$0x1]
    %v3962 = vsel %vm68, %v3956, 0.0
    %3963 = vadd.xlane.f32.xlu0 %v3962
    %v3964 = vpop.xlane.xlu0 %3963
    %v3965 = vsel %vm68, %v3957, 0.0
    %3966 = vadd.xlane.f32.xlu0 %v3965
    %v3967 = vpop.xlane.xlu0 %3966
    %v3968 = vmul.f32 %v3964, %v1755
    %v3969 = vmul.f32 %v3967, %v1755
    %v3970 = vsub.f32 %v3956, %v3968
    %v3971 = vsub.f32 %v3957, %v3969
    %v3972 = vmul.f32 %v3970, %v3970
    %v3973 = vmul.f32 %v3971, %v3971
    %v3974 = vsel %vm68, %v3972, 0.0
    %3975 = vadd.xlane.f32.xlu0 %v3974
    %v3976 = vpop.xlane.xlu0 %3975
    %v3977 = vsel %vm68, %v3973, 0.0
    %3978 = vadd.xlane.f32.xlu0 %v3977
    %v3979 = vpop.xlane.xlu0 %3978
    %v3980 = vmul.f32 %v3976, %v1755
    %v3981 = vmul.f32 %v3979, %v1755
    %v3982 = vadd.f32 %v3980, 1e-05
    %v3983 = vadd.f32 %v3981, 1e-05
    %v3984 = vrsqrt.pop %v3982
    %v3985 = vrsqrt.pop %v3983
    %v3986 = vmul.f32 %v3970, %v3984
    %v3987 = vmul.f32 %v3971, %v3985
    %v3989 = vlaneseq
    %v3990 = vshrl.u32 %v3989, 7
    %v3991 = vsub.s32 0, %v3990
    %v3992 = vrot.slane %v3959, %v3991
    %v3994 = vmul.f32 %v3986, %v3992
    %v3995 = vmul.f32 %v3987, %v3992
    %v3997 = vlaneseq
    %v3998 = vshrl.u32 %v3997, 7
    %v3999 = vsub.s32 0, %v3998
    %v4000 = vrot.slane %v3961, %v3999
    %v4002 = vadd.f32 %v3994, %v4000
    %v4003 = vadd.f32 %v3995, %v4000
    %4004 = vst.msk [vmem:[#allocation5] sm:$0xff] %vm68, %v4002
    %4005 = vst.msk [vmem:[#allocation5 + $0x8] sm:$0xff] %vm68, %v4003
    // Predicated region
    $region62: #{tpu_custom_call.1} parent=1 // pred_check
      _
    $region63: #{tpu_custom_call.1} parent=1 // pred_check_branch
      %4007 = sbr.rel (0) target = $region65
    $region64: #{tpu_custom_call.1} parent=1 // pred_region
      %s4009 = ssub.s32 256, 256
      %4010 = vsyncadd [#allocation4], %s4009
      %s4011 = sshll.u32 [#allocation5], 4
      %s4012 = int_to_ptr.vmem [resolvable:$true] %s4011
      %4017 = dma.vmem_to_hbm [thread:$0]  %s4012, 256, %s14, [#allocation4], 128, 128, 8
    $region65: #{tpu_custom_call.1} parent=1 // pred_fallthru
      _
    // Predicated region
    $region66: #{tpu_custom_call.1} parent=1 // pred_check
      _
    $region67: #{tpu_custom_call.1} parent=1 // pred_check_branch
      %4019 = sbr.rel (0) target = $region69
    $region68: #{tpu_custom_call.1} parent=1 // pred_region
      %4020 = dma.done [#allocation4], 256
    $region69: #{tpu_custom_call.1} parent=1 // pred_fallthru
      _
    %4021 = vsyncpa [#allocation3], 1
    %4022 = vsyncpa [#allocation4], 1

</llo_original>
